<compile_context>
chip_gen: v7x
topology: tpu7x:2x2x1
jax: 0.10.0
libtpu: 0.0.40
codegen_flags: <defaults>
</compile_context>

<pallas_src>
import jax
import jax.numpy as jnp
from jax.experimental import pallas as pl
from jax.experimental.pallas import tpu as pltpu


def _layer_norm(v, gamma, beta, eps=1e-5):
    mu = jnp.mean(v, axis=-1, keepdims=True)
    var = jnp.mean((v - mu) ** 2, axis=-1, keepdims=True)
    return (v - mu) * jax.lax.rsqrt(var + eps) * gamma + beta


def bilstm_kernel(x_ref, wx_ref, wh_ref, b_ref, aux_ref,
                  out_ref, hn_ref, cn_ref, h_s, c_s):
    """One grid step == one direction x one chunk of T timesteps.

    x_ref:   (T, B, D)   chunk of inputs (chunk order reversed for d==1 via index_map)
    wx_ref:  (D, 4H)     fused input->gate weights, gate order [i, f, o, g]
    wh_ref:  (H, 4H)     fused hidden->gate weights
    b_ref:   (1, 4H)     fused gate bias
    aux_ref: (6, H)      [ln_c.gamma, ln_c.beta, ln_h.gamma, ln_h.beta, init_h, init_c]
    out_ref: (T, B, H)   hidden outputs for this chunk (backward written time-flipped)
    hn_ref/cn_ref: (B,H) final states, written only on the last chunk
    h_s/c_s: (B, H)      VMEM scratch carrying the recurrent state across chunks
    """
    d = pl.program_id(0)                 # 0 = forward, 1 = backward
    chunk = pl.program_id(1)
    T = x_ref.shape[0]
    B, H = h_s.shape

    @pl.when(chunk == 0)
    def _():
        h_s[...] = jnp.broadcast_to(aux_ref[4:5, :], (B, H))
        c_s[...] = jnp.broadcast_to(aux_ref[5:6, :], (B, H))

    gamma_c = aux_ref[0:1, :]
    beta_c = aux_ref[1:2, :]
    gamma_h = aux_ref[2:3, :]
    beta_h = aux_ref[3:4, :]

    wx = wx_ref[...]
    wh = wh_ref[...]
    wdt = wx.dtype
    b_all = b_ref[...]                   # (1, 4H) float32

    def step(t, carry):
        # Processing-order step t -> position inside the chunk
        # (backward direction walks the chunk in reverse).
        tt = t + d * (T - 1 - 2 * t)
        x_t = x_ref[tt].astype(wdt)      # (B, D)
        h = h_s[...]
        c = c_s[...]

        # Single fused pre-activation: (B, 4H), gates [i, f, o, g] along lanes.
        pre = (jnp.dot(x_t, wx, preferred_element_type=jnp.float32)
               + jnp.dot(h.astype(wdt), wh, preferred_element_type=jnp.float32)
               + b_all)

        i_t = jax.nn.sigmoid(pre[:, 0 * H:1 * H])
        f_t = jax.nn.sigmoid(pre[:, 1 * H:2 * H])
        o_t = jax.nn.sigmoid(pre[:, 2 * H:3 * H])
        g_t = jnp.tanh(pre[:, 3 * H:4 * H])

        new_c = _layer_norm(f_t * c + i_t * g_t, gamma_c, beta_c)
        new_h = _layer_norm(o_t * jnp.tanh(new_c), gamma_h, beta_h)

        h_s[...] = new_h
        c_s[...] = new_c
        out_ref[tt] = new_h.astype(out_ref.dtype)
        return carry

    jax.lax.fori_loop(0, T, step, 0, unroll=(T <= 8))

    @pl.when(chunk == pl.num_programs(1) - 1)
    def _():
        hn_ref[...] = h_s[...].astype(hn_ref.dtype)
        cn_ref[...] = c_s[...].astype(cn_ref.dtype)


def _pick_chunk(seq_len, cap=16):
    t = max(1, min(seq_len, cap))
    while seq_len % t:
        t -= 1
    return t


def bilstm_forward(x, fwd_params, bwd_params, *, chunk=None):
    """Reproduces BiLSTMWrapper.forward.

    x: (B, S, D) batch-major input (same as the PyTorch module).
    Returns: outputs (S, B, 2H)   -- seq-first, matching torch.stack(lstm_outputs)
             (h_n (B, 2H), c_n (B, 2H)).
    """
    B, S, D = x.shape
    H = fwd_params["aux"].shape[-1]
    H4 = 4 * H

    x_tm = jnp.transpose(x, (1, 0, 2))                        # (S, B, D) time-major

    # Stack the two directions on a leading axis indexed by the direction grid dim.
    wx = jnp.stack([fwd_params["wx"], bwd_params["wx"]])      # (2, D, 4H)
    wh = jnp.stack([fwd_params["wh"], bwd_params["wh"]])      # (2, H, 4H)
    b = jnp.stack([fwd_params["b"], bwd_params["b"]])         # (2, 1, 4H)
    aux = jnp.stack([fwd_params["aux"], bwd_params["aux"]])   # (2, 6, H)

    T = chunk if chunk is not None else _pick_chunk(S)
    assert S % T == 0
    nc = S // T

    def x_index(di, ci):
        # Forward walks chunks 0..nc-1, backward walks them in reverse.
        return (ci + di * (nc - 1 - 2 * ci), 0, 0)

    def out_index(di, ci):
        return (di, ci + di * (nc - 1 - 2 * ci), 0, 0)

    def dir_index(di, ci):
        return (di, 0, 0)

    grid_spec = pltpu.PrefetchScalarGridSpec(
        num_scalar_prefetch=0,
        grid=(2, nc),                                  # (direction, time chunk)
        in_specs=[
            pl.BlockSpec((T, B, D), x_index),          # x chunk
            pl.BlockSpec((None, D, H4), dir_index),    # Wx (resident per direction)
            pl.BlockSpec((None, H, H4), dir_index),    # Wh
            pl.BlockSpec((None, 1, H4), dir_index),    # fused gate bias
            pl.BlockSpec((None, 6, H), dir_index),     # LayerNorm + init params
        ],
        out_specs=(
            pl.BlockSpec((None, T, B, H), out_index),  # per-direction outputs
            pl.BlockSpec((None, B, H), dir_index),     # h_n
            pl.BlockSpec((None, B, H), dir_index),     # c_n
        ),
        scratch_shapes=[
            pltpu.VMEM((B, H), jnp.float32),           # recurrent h state
            pltpu.VMEM((B, H), jnp.float32),           # recurrent c state
        ],
    )

    out_shapes = (
        jax.ShapeDtypeStruct((2, S, B, H), jnp.float32),
        jax.ShapeDtypeStruct((2, B, H), jnp.float32),
        jax.ShapeDtypeStruct((2, B, H), jnp.float32),
    )

    out, hn, cn = pl.pallas_call(
        bilstm_kernel,
        out_shape=out_shapes,
        grid_spec=grid_spec,
        compiler_params=pltpu.CompilerParams(
            # Direction axis is independent -> v7x megacore runs fwd/bwd on
            # separate TensorCores; time-chunk axis must stay ordered.
            dimension_semantics=("parallel", "arbitrary"),
        ),
    )(x_tm, wx, wh, b, aux)

    outputs = jnp.concatenate([out[0], out[1]], axis=-1)      # (S, B, 2H)
    h_n = jnp.concatenate([hn[0], hn[1]], axis=-1)            # (B, 2H)
    c_n = jnp.concatenate([cn[0], cn[1]], axis=-1)            # (B, 2H)
    return outputs, (h_n, c_n)


def init_lstm_params(key, input_size, hidden_size, param_dtype=jnp.bfloat16):
    """Deterministic init mirroring LSTMLayer._init_weights, with the four gate
    weight matrices packed along the last axis in gate order [i, f, o, g]."""
    keys = jax.random.split(key, 9)
    xavier = jax.nn.initializers.glorot_uniform()
    ortho = jax.nn.initializers.orthogonal()
    wx = jnp.concatenate(
        [xavier(keys[i], (input_size, hidden_size), jnp.float32) for i in range(4)],
        axis=-1).astype(param_dtype)                           # (D, 4H)
    wh = jnp.concatenate(
        [ortho(keys[4 + i], (hidden_size, hidden_size), jnp.float32) for i in range(4)],
        axis=-1).astype(param_dtype)                           # (H, 4H)
    b = jnp.concatenate([
        jnp.zeros((hidden_size,), jnp.float32),   # b_i = 0
        jnp.ones((hidden_size,), jnp.float32),    # b_f = 1
        jnp.zeros((hidden_size,), jnp.float32),   # b_o = 0
        jnp.zeros((hidden_size,), jnp.float32),   # b_g = 0
    ]).reshape(1, 4 * hidden_size)                             # (1, 4H) float32
    init_hc = 0.01 * jax.random.normal(keys[8], (2, hidden_size), jnp.float32)
    aux = jnp.concatenate([
        jnp.ones((1, hidden_size), jnp.float32),   # layer_norm_cell.weight
        jnp.zeros((1, hidden_size), jnp.float32),  # layer_norm_cell.bias
        jnp.ones((1, hidden_size), jnp.float32),   # layer_norm_hidden.weight
        jnp.zeros((1, hidden_size), jnp.float32),  # layer_norm_hidden.bias
        init_hc,                                   # init_h_t, init_c_t
    ], axis=0)                                     # (6, H) float32
    return {"wx": wx, "wh": wh, "b": b, "aux": aux}


if __name__ == "__main__":
    B, S, D, H = 2, 8, 16, 32
    key = jax.random.PRNGKey(0)
    k_x, k_f, k_b = jax.random.split(key, 3)
    x = jax.random.normal(k_x, (B, S, D), jnp.float32)
    fwd_params = init_lstm_params(k_f, D, H)
    bwd_params = init_lstm_params(k_b, D, H)

    outputs, (h_n, c_n) = jax.jit(bilstm_forward)(x, fwd_params, bwd_params)
    jax.block_until_ready((outputs, h_n, c_n))

    assert outputs.shape == (S, B, 2 * H), outputs.shape
    assert h_n.shape == (B, 2 * H) and c_n.shape == (B, 2 * H)
    assert bool(jnp.all(jnp.isfinite(outputs)))
    # Final states must coincide with the corresponding output time slots:
    # forward h_n == outputs at t = S-1; backward h_n == outputs at t = 0.
    assert bool(jnp.allclose(h_n[:, :H], outputs[-1, :, :H]))
    assert bool(jnp.allclose(h_n[:, H:], outputs[0, :, H:]))
    print("KERNEL_OK")
</pallas_src>

<mosaic_0001>
module attributes {stable_mosaic.version = 11 : i64} {
  func.func @bilstm_kernel(%arg0: i32, %arg1: i32, %arg2: memref<8x2x16xf32, #tpu.memory_space<vmem>>, %arg3: memref<1x16x128xbf16, #tpu.memory_space<vmem>>, %arg4: memref<1x32x128xbf16, #tpu.memory_space<vmem>>, %arg5: memref<1x1x128xf32, #tpu.memory_space<vmem>>, %arg6: memref<1x6x32xf32, #tpu.memory_space<vmem>>, %arg7: memref<1x8x2x32xf32, #tpu.memory_space<vmem>>, %arg8: memref<1x2x32xf32, #tpu.memory_space<vmem>>, %arg9: memref<1x2x32xf32, #tpu.memory_space<vmem>>, %arg10: memref<2x32xf32, #tpu.memory_space<vmem>>, %arg11: memref<2x32xf32, #tpu.memory_space<vmem>>) attributes {dimension_semantics = [#tpu.dimension_semantics<parallel>, #tpu.dimension_semantics<arbitrary>], iteration_bounds = array<i64: 2, 1>, scalar_prefetch = 0 : i64, scratch_operands = 2 : i64, tpu.core_type = #tpu.core_type<tc>, window_params = [{transform_indices = @transform_0, window_bounds = array<i64: 8, 2, 16>}, {transform_indices = @transform_1, window_bounds = array<i64: 1, 16, 128>}, {transform_indices = @transform_2, window_bounds = array<i64: 1, 32, 128>}, {transform_indices = @transform_3, window_bounds = array<i64: 1, 1, 128>}, {transform_indices = @transform_4, window_bounds = array<i64: 1, 6, 32>}, {transform_indices = @transform_5, window_bounds = array<i64: 1, 8, 2, 32>}, {transform_indices = @transform_6, window_bounds = array<i64: 1, 2, 32>}, {transform_indices = @transform_7, window_bounds = array<i64: 1, 2, 32>}]} {
    %c0_i32 = arith.constant 0 : i32
    %0 = arith.cmpi eq, %arg1, %c0_i32 : i32
    %1 = arith.extui %0 : i1 to i32
    %c0_i32_0 = arith.constant 0 : i32
    %2 = arith.cmpi ne, %1, %c0_i32_0 : i32
    scf.if %2 {
      %c0_260 = arith.constant 0 : index
      %c4 = arith.constant 4 : index
      %c0_261 = arith.constant 0 : index
      %748 = vector.load %arg6[%c0_260, %c4, %c0_261] : memref<1x6x32xf32, #tpu.memory_space<vmem>>, vector<1x1x32xf32>
      %749 = vector.shape_cast %748 : vector<1x1x32xf32> to vector<1x32xf32>
      %750 = vector.shape_cast %749 : vector<1x32xf32> to vector<1x32xf32>
      %751 = vector.broadcast %750 : vector<1x32xf32> to vector<2x32xf32>
      %c0_262 = arith.constant 0 : index
      %c0_263 = arith.constant 0 : index
      %752 = vector.load %arg10[%c0_262, %c0_263] : memref<2x32xf32, #tpu.memory_space<vmem>>, vector<2x32xf32>
      tpu.vector_store %arg10[%c0_262, %c0_263], %751 {strides = array<i32>} : memref<2x32xf32, #tpu.memory_space<vmem>>, vector<2x32xf32>,
      %c0_264 = arith.constant 0 : index
      %c5 = arith.constant 5 : index
      %c0_265 = arith.constant 0 : index
      %753 = vector.load %arg6[%c0_264, %c5, %c0_265] : memref<1x6x32xf32, #tpu.memory_space<vmem>>, vector<1x1x32xf32>
      %754 = vector.shape_cast %753 : vector<1x1x32xf32> to vector<1x32xf32>
      %755 = vector.shape_cast %754 : vector<1x32xf32> to vector<1x32xf32>
      %756 = vector.broadcast %755 : vector<1x32xf32> to vector<2x32xf32>
      %c0_266 = arith.constant 0 : index
      %c0_267 = arith.constant 0 : index
      %757 = vector.load %arg11[%c0_266, %c0_267] : memref<2x32xf32, #tpu.memory_space<vmem>>, vector<2x32xf32>
      tpu.vector_store %arg11[%c0_266, %c0_267], %756 {strides = array<i32>} : memref<2x32xf32, #tpu.memory_space<vmem>>, vector<2x32xf32>,
    } else {
    }
    %c0 = arith.constant 0 : index
    %c0_1 = arith.constant 0 : index
    %c0_2 = arith.constant 0 : index
    %3 = vector.load %arg6[%c0, %c0_1, %c0_2] : memref<1x6x32xf32, #tpu.memory_space<vmem>>, vector<1x1x32xf32>
    %4 = vector.shape_cast %3 : vector<1x1x32xf32> to vector<1x32xf32>
    %c0_3 = arith.constant 0 : index
    %c1 = arith.constant 1 : index
    %c0_4 = arith.constant 0 : index
    %5 = vector.load %arg6[%c0_3, %c1, %c0_4] : memref<1x6x32xf32, #tpu.memory_space<vmem>>, vector<1x1x32xf32>
    %6 = vector.shape_cast %5 : vector<1x1x32xf32> to vector<1x32xf32>
    %c0_5 = arith.constant 0 : index
    %c2 = arith.constant 2 : index
    %c0_6 = arith.constant 0 : index
    %7 = vector.load %arg6[%c0_5, %c2, %c0_6] : memref<1x6x32xf32, #tpu.memory_space<vmem>>, vector<1x1x32xf32>
    %8 = vector.shape_cast %7 : vector<1x1x32xf32> to vector<1x32xf32>
    %c0_7 = arith.constant 0 : index
    %c3 = arith.constant 3 : index
    %c0_8 = arith.constant 0 : index
    %9 = vector.load %arg6[%c0_7, %c3, %c0_8] : memref<1x6x32xf32, #tpu.memory_space<vmem>>, vector<1x1x32xf32>
    %10 = vector.shape_cast %9 : vector<1x1x32xf32> to vector<1x32xf32>
    %c0_9 = arith.constant 0 : index
    %c0_10 = arith.constant 0 : index
    %c0_11 = arith.constant 0 : index
    %11 = vector.load %arg3[%c0_9, %c0_10, %c0_11] : memref<1x16x128xbf16, #tpu.memory_space<vmem>>, vector<1x16x128xbf16>
    %12 = vector.shape_cast %11 : vector<1x16x128xbf16> to vector<16x128xbf16>
    %c0_12 = arith.constant 0 : index
    %c0_13 = arith.constant 0 : index
    %c0_14 = arith.constant 0 : index
    %13 = vector.load %arg4[%c0_12, %c0_13, %c0_14] : memref<1x32x128xbf16, #tpu.memory_space<vmem>>, vector<1x32x128xbf16>
    %14 = vector.shape_cast %13 : vector<1x32x128xbf16> to vector<32x128xbf16>
    %c0_15 = arith.constant 0 : index
    %c0_16 = arith.constant 0 : index
    %c0_17 = arith.constant 0 : index
    %15 = vector.load %arg5[%c0_15, %c0_16, %c0_17] : memref<1x1x128xf32, #tpu.memory_space<vmem>>, vector<1x1x128xf32>
    %16 = vector.shape_cast %15 : vector<1x1x128xf32> to vector<1x128xf32>
    %c0_i32_18 = arith.constant 0 : i32
    %c2_i32 = arith.constant 2 : i32
    %17 = arith.muli %c2_i32, %c0_i32_18 : i32
    %c7_i32 = arith.constant 7 : i32
    %18 = arith.subi %c7_i32, %17 : i32
    %19 = arith.muli %arg0, %18 : i32
    %20 = arith.addi %c0_i32_18, %19 : i32
    %21 = arith.index_cast %20 : i32 to index
    %c0_19 = arith.constant 0 : index
    %c0_20 = arith.constant 0 : index
    %22 = vector.load %arg2[%21, %c0_19, %c0_20] : memref<8x2x16xf32, #tpu.memory_space<vmem>>, vector<1x2x16xf32>
    %23 = vector.shape_cast %22 : vector<1x2x16xf32> to vector<2x16xf32>
    %24 = arith.truncf %23 : vector<2x16xf32> to vector<2x16xbf16>
    %c0_21 = arith.constant 0 : index
    %c0_22 = arith.constant 0 : index
    %25 = vector.load %arg10[%c0_21, %c0_22] : memref<2x32xf32, #tpu.memory_space<vmem>>, vector<2x32xf32>
    %c0_23 = arith.constant 0 : index
    %c0_24 = arith.constant 0 : index
    %26 = vector.load %arg11[%c0_23, %c0_24] : memref<2x32xf32, #tpu.memory_space<vmem>>, vector<2x32xf32>
    %cst = arith.constant dense<0.000000e+00> : vector<2x128xf32>
    %27 = tpu.matmul %24, %12, %cst {dimension_numbers = #tpu.dot_dimension_numbers<[1], [0], [0], [1], [0, 0, 1, 1], [], []>} : vector<2x16xbf16>, vector<16x128xbf16>, vector<2x128xf32> -> vector<2x128xf32>
    %28 = arith.truncf %25 : vector<2x32xf32> to vector<2x32xbf16>
    %cst_25 = arith.constant dense<0.000000e+00> : vector<2x128xf32>
    %29 = tpu.matmul %28, %14, %cst_25 {dimension_numbers = #tpu.dot_dimension_numbers<[1], [0], [0], [1], [0, 0, 1, 1], [], []>} : vector<2x32xbf16>, vector<32x128xbf16>, vector<2x128xf32> -> vector<2x128xf32>
    %30 = arith.addf %27, %29 : vector<2x128xf32>
    %31 = vector.broadcast %16 : vector<1x128xf32> to vector<2x128xf32>
    %32 = arith.addf %30, %31 : vector<2x128xf32>
    %33 = vector.extract_strided_slice %32 {offsets = [0, 0], sizes = [2, 32], strides = [1, 1]} : vector<2x128xf32> to vector<2x32xf32>
    %34 = arith.negf %33 : vector<2x32xf32>
    %35 = math.exp %34 : vector<2x32xf32>
    %cst_26 = arith.constant 1.000000e+00 : f32
    %36 = vector.broadcast %cst_26 : f32 to vector<2x32xf32>
    %37 = arith.addf %36, %35 : vector<2x32xf32>
    %38 = arith.divf %36, %37 : vector<2x32xf32>
    %39 = vector.extract_strided_slice %32 {offsets = [0, 32], sizes = [2, 32], strides = [1, 1]} : vector<2x128xf32> to vector<2x32xf32>
    %40 = arith.negf %39 : vector<2x32xf32>
    %41 = math.exp %40 : vector<2x32xf32>
    %cst_27 = arith.constant 1.000000e+00 : f32
    %42 = vector.broadcast %cst_27 : f32 to vector<2x32xf32>
    %43 = arith.addf %42, %41 : vector<2x32xf32>
    %44 = arith.divf %42, %43 : vector<2x32xf32>
    %45 = vector.extract_strided_slice %32 {offsets = [0, 64], sizes = [2, 32], strides = [1, 1]} : vector<2x128xf32> to vector<2x32xf32>
    %46 = arith.negf %45 : vector<2x32xf32>
    %47 = math.exp %46 : vector<2x32xf32>
    %cst_28 = arith.constant 1.000000e+00 : f32
    %48 = vector.broadcast %cst_28 : f32 to vector<2x32xf32>
    %49 = arith.addf %48, %47 : vector<2x32xf32>
    %50 = arith.divf %48, %49 : vector<2x32xf32>
    %51 = vector.extract_strided_slice %32 {offsets = [0, 96], sizes = [2, 32], strides = [1, 1]} : vector<2x128xf32> to vector<2x32xf32>
    %52 = math.tanh %51 : vector<2x32xf32>
    %53 = arith.mulf %44, %26 : vector<2x32xf32>
    %54 = arith.mulf %38, %52 : vector<2x32xf32>
    %55 = arith.addf %53, %54 : vector<2x32xf32>
    %cst_29 = arith.constant dense<0.000000e+00> : vector<2xf32>
    %56 = vector.multi_reduction <add>, %55, %cst_29 [1] : vector<2x32xf32> to vector<2xf32>
    %57 = vector.shape_cast %56 : vector<2xf32> to vector<2x1xf32>
    %cst_30 = arith.constant 3.200000e+01 : f32
    %58 = vector.broadcast %cst_30 : f32 to vector<2x1xf32>
    %59 = arith.divf %57, %58 : vector<2x1xf32>
    %60 = vector.broadcast %59 : vector<2x1xf32> to vector<2x32xf32>
    %61 = arith.subf %55, %60 : vector<2x32xf32>
    %62 = arith.mulf %61, %61 : vector<2x32xf32>
    %cst_31 = arith.constant dense<0.000000e+00> : vector<2xf32>
    %63 = vector.multi_reduction <add>, %62, %cst_31 [1] : vector<2x32xf32> to vector<2xf32>
    %64 = vector.shape_cast %63 : vector<2xf32> to vector<2x1xf32>
    %cst_32 = arith.constant 3.200000e+01 : f32
    %65 = vector.broadcast %cst_32 : f32 to vector<2x1xf32>
    %66 = arith.divf %64, %65 : vector<2x1xf32>
    %67 = vector.broadcast %59 : vector<2x1xf32> to vector<2x32xf32>
    %68 = arith.subf %55, %67 : vector<2x32xf32>
    %cst_33 = arith.constant 9.99999974E-6 : f32
    %69 = vector.broadcast %cst_33 : f32 to vector<2x1xf32>
    %70 = arith.addf %66, %69 : vector<2x1xf32>
    %71 = math.rsqrt %70 : vector<2x1xf32>
    %72 = vector.broadcast %71 : vector<2x1xf32> to vector<2x32xf32>
    %73 = arith.mulf %68, %72 : vector<2x32xf32>
    %74 = vector.broadcast %4 : vector<1x32xf32> to vector<2x32xf32>
    %75 = arith.mulf %73, %74 : vector<2x32xf32>
    %76 = vector.broadcast %6 : vector<1x32xf32> to vector<2x32xf32>
    %77 = arith.addf %75, %76 : vector<2x32xf32>
    %78 = math.tanh %77 : vector<2x32xf32>
    %79 = arith.mulf %50, %78 : vector<2x32xf32>
    %cst_34 = arith.constant dense<0.000000e+00> : vector<2xf32>
    %80 = vector.multi_reduction <add>, %79, %cst_34 [1] : vector<2x32xf32> to vector<2xf32>
    %81 = vector.shape_cast %80 : vector<2xf32> to vector<2x1xf32>
    %cst_35 = arith.constant 3.200000e+01 : f32
    %82 = vector.broadcast %cst_35 : f32 to vector<2x1xf32>
    %83 = arith.divf %81, %82 : vector<2x1xf32>
    %84 = vector.broadcast %83 : vector<2x1xf32> to vector<2x32xf32>
    %85 = arith.subf %79, %84 : vector<2x32xf32>
    %86 = arith.mulf %85, %85 : vector<2x32xf32>
    %cst_36 = arith.constant dense<0.000000e+00> : vector<2xf32>
    %87 = vector.multi_reduction <add>, %86, %cst_36 [1] : vector<2x32xf32> to vector<2xf32>
    %88 = vector.shape_cast %87 : vector<2xf32> to vector<2x1xf32>
    %cst_37 = arith.constant 3.200000e+01 : f32
    %89 = vector.broadcast %cst_37 : f32 to vector<2x1xf32>
    %90 = arith.divf %88, %89 : vector<2x1xf32>
    %91 = vector.broadcast %83 : vector<2x1xf32> to vector<2x32xf32>
    %92 = arith.subf %79, %91 : vector<2x32xf32>
    %cst_38 = arith.constant 9.99999974E-6 : f32
    %93 = vector.broadcast %cst_38 : f32 to vector<2x1xf32>
    %94 = arith.addf %90, %93 : vector<2x1xf32>
    %95 = math.rsqrt %94 : vector<2x1xf32>
    %96 = vector.broadcast %95 : vector<2x1xf32> to vector<2x32xf32>
    %97 = arith.mulf %92, %96 : vector<2x32xf32>
    %98 = vector.broadcast %8 : vector<1x32xf32> to vector<2x32xf32>
    %99 = arith.mulf %97, %98 : vector<2x32xf32>
    %100 = vector.broadcast %10 : vector<1x32xf32> to vector<2x32xf32>
    %101 = arith.addf %99, %100 : vector<2x32xf32>
    %c0_39 = arith.constant 0 : index
    %c0_40 = arith.constant 0 : index
    %102 = vector.load %arg10[%c0_39, %c0_40] : memref<2x32xf32, #tpu.memory_space<vmem>>, vector<2x32xf32>
    tpu.vector_store %arg10[%c0_39, %c0_40], %101 {strides = array<i32>} : memref<2x32xf32, #tpu.memory_space<vmem>>, vector<2x32xf32>,
    %c0_41 = arith.constant 0 : index
    %c0_42 = arith.constant 0 : index
    %103 = vector.load %arg11[%c0_41, %c0_42] : memref<2x32xf32, #tpu.memory_space<vmem>>, vector<2x32xf32>
    tpu.vector_store %arg11[%c0_41, %c0_42], %77 {strides = array<i32>} : memref<2x32xf32, #tpu.memory_space<vmem>>, vector<2x32xf32>,
    %c0_43 = arith.constant 0 : index
    %104 = arith.index_cast %20 : i32 to index
    %c0_44 = arith.constant 0 : index
    %c0_45 = arith.constant 0 : index
    %105 = vector.load %arg7[%c0_43, %104, %c0_44, %c0_45] : memref<1x8x2x32xf32, #tpu.memory_space<vmem>>, vector<1x1x2x32xf32>
    %106 = vector.shape_cast %105 : vector<1x1x2x32xf32> to vector<2x32xf32>
    %107 = vector.shape_cast %101 : vector<2x32xf32> to vector<1x1x2x32xf32>
    tpu.vector_store %arg7[%c0_43, %104, %c0_44, %c0_45], %107 {strides = array<i32>} : memref<1x8x2x32xf32, #tpu.memory_space<vmem>>, vector<1x1x2x32xf32>,
    %c1_i32 = arith.constant 1 : i32
    %c2_i32_46 = arith.constant 2 : i32
    %108 = arith.muli %c2_i32_46, %c1_i32 : i32
    %c7_i32_47 = arith.constant 7 : i32
    %109 = arith.subi %c7_i32_47, %108 : i32
    %110 = arith.muli %arg0, %109 : i32
    %111 = arith.addi %c1_i32, %110 : i32
    %112 = arith.index_cast %111 : i32 to index
    %c0_48 = arith.constant 0 : index
    %c0_49 = arith.constant 0 : index
    %113 = vector.load %arg2[%112, %c0_48, %c0_49] : memref<8x2x16xf32, #tpu.memory_space<vmem>>, vector<1x2x16xf32>
    %114 = vector.shape_cast %113 : vector<1x2x16xf32> to vector<2x16xf32>
    %115 = arith.truncf %114 : vector<2x16xf32> to vector<2x16xbf16>
    %c0_50 = arith.constant 0 : index
    %c0_51 = arith.constant 0 : index
    %116 = vector.load %arg10[%c0_50, %c0_51] : memref<2x32xf32, #tpu.memory_space<vmem>>, vector<2x32xf32>
    %c0_52 = arith.constant 0 : index
    %c0_53 = arith.constant 0 : index
    %117 = vector.load %arg11[%c0_52, %c0_53] : memref<2x32xf32, #tpu.memory_space<vmem>>, vector<2x32xf32>
    %cst_54 = arith.constant dense<0.000000e+00> : vector<2x128xf32>
    %118 = tpu.matmul %115, %12, %cst_54 {dimension_numbers = #tpu.dot_dimension_numbers<[1], [0], [0], [1], [0, 0, 1, 1], [], []>} : vector<2x16xbf16>, vector<16x128xbf16>, vector<2x128xf32> -> vector<2x128xf32>
    %119 = arith.truncf %116 : vector<2x32xf32> to vector<2x32xbf16>
    %cst_55 = arith.constant dense<0.000000e+00> : vector<2x128xf32>
    %120 = tpu.matmul %119, %14, %cst_55 {dimension_numbers = #tpu.dot_dimension_numbers<[1], [0], [0], [1], [0, 0, 1, 1], [], []>} : vector<2x32xbf16>, vector<32x128xbf16>, vector<2x128xf32> -> vector<2x128xf32>
    %121 = arith.addf %118, %120 : vector<2x128xf32>
    %122 = vector.broadcast %16 : vector<1x128xf32> to vector<2x128xf32>
    %123 = arith.addf %121, %122 : vector<2x128xf32>
    %124 = vector.extract_strided_slice %123 {offsets = [0, 0], sizes = [2, 32], strides = [1, 1]} : vector<2x128xf32> to vector<2x32xf32>
    %125 = arith.negf %124 : vector<2x32xf32>
    %126 = math.exp %125 : vector<2x32xf32>
    %cst_56 = arith.constant 1.000000e+00 : f32
    %127 = vector.broadcast %cst_56 : f32 to vector<2x32xf32>
    %128 = arith.addf %127, %126 : vector<2x32xf32>
    %129 = arith.divf %127, %128 : vector<2x32xf32>
    %130 = vector.extract_strided_slice %123 {offsets = [0, 32], sizes = [2, 32], strides = [1, 1]} : vector<2x128xf32> to vector<2x32xf32>
    %131 = arith.negf %130 : vector<2x32xf32>
    %132 = math.exp %131 : vector<2x32xf32>
    %cst_57 = arith.constant 1.000000e+00 : f32
    %133 = vector.broadcast %cst_57 : f32 to vector<2x32xf32>
    %134 = arith.addf %133, %132 : vector<2x32xf32>
    %135 = arith.divf %133, %134 : vector<2x32xf32>
    %136 = vector.extract_strided_slice %123 {offsets = [0, 64], sizes = [2, 32], strides = [1, 1]} : vector<2x128xf32> to vector<2x32xf32>
    %137 = arith.negf %136 : vector<2x32xf32>
    %138 = math.exp %137 : vector<2x32xf32>
    %cst_58 = arith.constant 1.000000e+00 : f32
    %139 = vector.broadcast %cst_58 : f32 to vector<2x32xf32>
    %140 = arith.addf %139, %138 : vector<2x32xf32>
    %141 = arith.divf %139, %140 : vector<2x32xf32>
    %142 = vector.extract_strided_slice %123 {offsets = [0, 96], sizes = [2, 32], strides = [1, 1]} : vector<2x128xf32> to vector<2x32xf32>
    %143 = math.tanh %142 : vector<2x32xf32>
    %144 = arith.mulf %135, %117 : vector<2x32xf32>
    %145 = arith.mulf %129, %143 : vector<2x32xf32>
    %146 = arith.addf %144, %145 : vector<2x32xf32>
    %cst_59 = arith.constant dense<0.000000e+00> : vector<2xf32>
    %147 = vector.multi_reduction <add>, %146, %cst_59 [1] : vector<2x32xf32> to vector<2xf32>
    %148 = vector.shape_cast %147 : vector<2xf32> to vector<2x1xf32>
    %cst_60 = arith.constant 3.200000e+01 : f32
    %149 = vector.broadcast %cst_60 : f32 to vector<2x1xf32>
    %150 = arith.divf %148, %149 : vector<2x1xf32>
    %151 = vector.broadcast %150 : vector<2x1xf32> to vector<2x32xf32>
    %152 = arith.subf %146, %151 : vector<2x32xf32>
    %153 = arith.mulf %152, %152 : vector<2x32xf32>
    %cst_61 = arith.constant dense<0.000000e+00> : vector<2xf32>
    %154 = vector.multi_reduction <add>, %153, %cst_61 [1] : vector<2x32xf32> to vector<2xf32>
    %155 = vector.shape_cast %154 : vector<2xf32> to vector<2x1xf32>
    %cst_62 = arith.constant 3.200000e+01 : f32
    %156 = vector.broadcast %cst_62 : f32 to vector<2x1xf32>
    %157 = arith.divf %155, %156 : vector<2x1xf32>
    %158 = vector.broadcast %150 : vector<2x1xf32> to vector<2x32xf32>
    %159 = arith.subf %146, %158 : vector<2x32xf32>
    %cst_63 = arith.constant 9.99999974E-6 : f32
    %160 = vector.broadcast %cst_63 : f32 to vector<2x1xf32>
    %161 = arith.addf %157, %160 : vector<2x1xf32>
    %162 = math.rsqrt %161 : vector<2x1xf32>
    %163 = vector.broadcast %162 : vector<2x1xf32> to vector<2x32xf32>
    %164 = arith.mulf %159, %163 : vector<2x32xf32>
    %165 = vector.broadcast %4 : vector<1x32xf32> to vector<2x32xf32>
    %166 = arith.mulf %164, %165 : vector<2x32xf32>
    %167 = vector.broadcast %6 : vector<1x32xf32> to vector<2x32xf32>
    %168 = arith.addf %166, %167 : vector<2x32xf32>
    %169 = math.tanh %168 : vector<2x32xf32>
    %170 = arith.mulf %141, %169 : vector<2x32xf32>
    %cst_64 = arith.constant dense<0.000000e+00> : vector<2xf32>
    %171 = vector.multi_reduction <add>, %170, %cst_64 [1] : vector<2x32xf32> to vector<2xf32>
    %172 = vector.shape_cast %171 : vector<2xf32> to vector<2x1xf32>
    %cst_65 = arith.constant 3.200000e+01 : f32
    %173 = vector.broadcast %cst_65 : f32 to vector<2x1xf32>
    %174 = arith.divf %172, %173 : vector<2x1xf32>
    %175 = vector.broadcast %174 : vector<2x1xf32> to vector<2x32xf32>
    %176 = arith.subf %170, %175 : vector<2x32xf32>
    %177 = arith.mulf %176, %176 : vector<2x32xf32>
    %cst_66 = arith.constant dense<0.000000e+00> : vector<2xf32>
    %178 = vector.multi_reduction <add>, %177, %cst_66 [1] : vector<2x32xf32> to vector<2xf32>
    %179 = vector.shape_cast %178 : vector<2xf32> to vector<2x1xf32>
    %cst_67 = arith.constant 3.200000e+01 : f32
    %180 = vector.broadcast %cst_67 : f32 to vector<2x1xf32>
    %181 = arith.divf %179, %180 : vector<2x1xf32>
    %182 = vector.broadcast %174 : vector<2x1xf32> to vector<2x32xf32>
    %183 = arith.subf %170, %182 : vector<2x32xf32>
    %cst_68 = arith.constant 9.99999974E-6 : f32
    %184 = vector.broadcast %cst_68 : f32 to vector<2x1xf32>
    %185 = arith.addf %181, %184 : vector<2x1xf32>
    %186 = math.rsqrt %185 : vector<2x1xf32>
    %187 = vector.broadcast %186 : vector<2x1xf32> to vector<2x32xf32>
    %188 = arith.mulf %183, %187 : vector<2x32xf32>
    %189 = vector.broadcast %8 : vector<1x32xf32> to vector<2x32xf32>
    %190 = arith.mulf %188, %189 : vector<2x32xf32>
    %191 = vector.broadcast %10 : vector<1x32xf32> to vector<2x32xf32>
    %192 = arith.addf %190, %191 : vector<2x32xf32>
    %c0_69 = arith.constant 0 : index
    %c0_70 = arith.constant 0 : index
    %193 = vector.load %arg10[%c0_69, %c0_70] : memref<2x32xf32, #tpu.memory_space<vmem>>, vector<2x32xf32>
    tpu.vector_store %arg10[%c0_69, %c0_70], %192 {strides = array<i32>} : memref<2x32xf32, #tpu.memory_space<vmem>>, vector<2x32xf32>,
    %c0_71 = arith.constant 0 : index
    %c0_72 = arith.constant 0 : index
    %194 = vector.load %arg11[%c0_71, %c0_72] : memref<2x32xf32, #tpu.memory_space<vmem>>, vector<2x32xf32>
    tpu.vector_store %arg11[%c0_71, %c0_72], %168 {strides = array<i32>} : memref<2x32xf32, #tpu.memory_space<vmem>>, vector<2x32xf32>,
    %c0_73 = arith.constant 0 : index
    %195 = arith.index_cast %111 : i32 to index
    %c0_74 = arith.constant 0 : index
    %c0_75 = arith.constant 0 : index
    %196 = vector.load %arg7[%c0_73, %195, %c0_74, %c0_75] : memref<1x8x2x32xf32, #tpu.memory_space<vmem>>, vector<1x1x2x32xf32>
    %197 = vector.shape_cast %196 : vector<1x1x2x32xf32> to vector<2x32xf32>
    %198 = vector.shape_cast %192 : vector<2x32xf32> to vector<1x1x2x32xf32>
    tpu.vector_store %arg7[%c0_73, %195, %c0_74, %c0_75], %198 {strides = array<i32>} : memref<1x8x2x32xf32, #tpu.memory_space<vmem>>, vector<1x1x2x32xf32>,
    %c2_i32_76 = arith.constant 2 : i32
    %c2_i32_77 = arith.constant 2 : i32
    %199 = arith.muli %c2_i32_77, %c2_i32_76 : i32
    %c7_i32_78 = arith.constant 7 : i32
    %200 = arith.subi %c7_i32_78, %199 : i32
    %201 = arith.muli %arg0, %200 : i32
    %202 = arith.addi %c2_i32_76, %201 : i32
    %203 = arith.index_cast %202 : i32 to index
    %c0_79 = arith.constant 0 : index
    %c0_80 = arith.constant 0 : index
    %204 = vector.load %arg2[%203, %c0_79, %c0_80] : memref<8x2x16xf32, #tpu.memory_space<vmem>>, vector<1x2x16xf32>
    %205 = vector.shape_cast %204 : vector<1x2x16xf32> to vector<2x16xf32>
    %206 = arith.truncf %205 : vector<2x16xf32> to vector<2x16xbf16>
    %c0_81 = arith.constant 0 : index
    %c0_82 = arith.constant 0 : index
    %207 = vector.load %arg10[%c0_81, %c0_82] : memref<2x32xf32, #tpu.memory_space<vmem>>, vector<2x32xf32>
    %c0_83 = arith.constant 0 : index
    %c0_84 = arith.constant 0 : index
    %208 = vector.load %arg11[%c0_83, %c0_84] : memref<2x32xf32, #tpu.memory_space<vmem>>, vector<2x32xf32>
    %cst_85 = arith.constant dense<0.000000e+00> : vector<2x128xf32>
    %209 = tpu.matmul %206, %12, %cst_85 {dimension_numbers = #tpu.dot_dimension_numbers<[1], [0], [0], [1], [0, 0, 1, 1], [], []>} : vector<2x16xbf16>, vector<16x128xbf16>, vector<2x128xf32> -> vector<2x128xf32>
    %210 = arith.truncf %207 : vector<2x32xf32> to vector<2x32xbf16>
    %cst_86 = arith.constant dense<0.000000e+00> : vector<2x128xf32>
    %211 = tpu.matmul %210, %14, %cst_86 {dimension_numbers = #tpu.dot_dimension_numbers<[1], [0], [0], [1], [0, 0, 1, 1], [], []>} : vector<2x32xbf16>, vector<32x128xbf16>, vector<2x128xf32> -> vector<2x128xf32>
    %212 = arith.addf %209, %211 : vector<2x128xf32>
    %213 = vector.broadcast %16 : vector<1x128xf32> to vector<2x128xf32>
    %214 = arith.addf %212, %213 : vector<2x128xf32>
    %215 = vector.extract_strided_slice %214 {offsets = [0, 0], sizes = [2, 32], strides = [1, 1]} : vector<2x128xf32> to vector<2x32xf32>
    %216 = arith.negf %215 : vector<2x32xf32>
    %217 = math.exp %216 : vector<2x32xf32>
    %cst_87 = arith.constant 1.000000e+00 : f32
    %218 = vector.broadcast %cst_87 : f32 to vector<2x32xf32>
    %219 = arith.addf %218, %217 : vector<2x32xf32>
    %220 = arith.divf %218, %219 : vector<2x32xf32>
    %221 = vector.extract_strided_slice %214 {offsets = [0, 32], sizes = [2, 32], strides = [1, 1]} : vector<2x128xf32> to vector<2x32xf32>
    %222 = arith.negf %221 : vector<2x32xf32>
    %223 = math.exp %222 : vector<2x32xf32>
    %cst_88 = arith.constant 1.000000e+00 : f32
    %224 = vector.broadcast %cst_88 : f32 to vector<2x32xf32>
    %225 = arith.addf %224, %223 : vector<2x32xf32>
    %226 = arith.divf %224, %225 : vector<2x32xf32>
    %227 = vector.extract_strided_slice %214 {offsets = [0, 64], sizes = [2, 32], strides = [1, 1]} : vector<2x128xf32> to vector<2x32xf32>
    %228 = arith.negf %227 : vector<2x32xf32>
    %229 = math.exp %228 : vector<2x32xf32>
    %cst_89 = arith.constant 1.000000e+00 : f32
    %230 = vector.broadcast %cst_89 : f32 to vector<2x32xf32>
    %231 = arith.addf %230, %229 : vector<2x32xf32>
    %232 = arith.divf %230, %231 : vector<2x32xf32>
    %233 = vector.extract_strided_slice %214 {offsets = [0, 96], sizes = [2, 32], strides = [1, 1]} : vector<2x128xf32> to vector<2x32xf32>
    %234 = math.tanh %233 : vector<2x32xf32>
    %235 = arith.mulf %226, %208 : vector<2x32xf32>
    %236 = arith.mulf %220, %234 : vector<2x32xf32>
    %237 = arith.addf %235, %236 : vector<2x32xf32>
    %cst_90 = arith.constant dense<0.000000e+00> : vector<2xf32>
    %238 = vector.multi_reduction <add>, %237, %cst_90 [1] : vector<2x32xf32> to vector<2xf32>
    %239 = vector.shape_cast %238 : vector<2xf32> to vector<2x1xf32>
    %cst_91 = arith.constant 3.200000e+01 : f32
    %240 = vector.broadcast %cst_91 : f32 to vector<2x1xf32>
    %241 = arith.divf %239, %240 : vector<2x1xf32>
    %242 = vector.broadcast %241 : vector<2x1xf32> to vector<2x32xf32>
    %243 = arith.subf %237, %242 : vector<2x32xf32>
    %244 = arith.mulf %243, %243 : vector<2x32xf32>
    %cst_92 = arith.constant dense<0.000000e+00> : vector<2xf32>
    %245 = vector.multi_reduction <add>, %244, %cst_92 [1] : vector<2x32xf32> to vector<2xf32>
    %246 = vector.shape_cast %245 : vector<2xf32> to vector<2x1xf32>
    %cst_93 = arith.constant 3.200000e+01 : f32
    %247 = vector.broadcast %cst_93 : f32 to vector<2x1xf32>
    %248 = arith.divf %246, %247 : vector<2x1xf32>
    %249 = vector.broadcast %241 : vector<2x1xf32> to vector<2x32xf32>
    %250 = arith.subf %237, %249 : vector<2x32xf32>
    %cst_94 = arith.constant 9.99999974E-6 : f32
    %251 = vector.broadcast %cst_94 : f32 to vector<2x1xf32>
    %252 = arith.addf %248, %251 : vector<2x1xf32>
    %253 = math.rsqrt %252 : vector<2x1xf32>
    %254 = vector.broadcast %253 : vector<2x1xf32> to vector<2x32xf32>
    %255 = arith.mulf %250, %254 : vector<2x32xf32>
    %256 = vector.broadcast %4 : vector<1x32xf32> to vector<2x32xf32>
    %257 = arith.mulf %255, %256 : vector<2x32xf32>
    %258 = vector.broadcast %6 : vector<1x32xf32> to vector<2x32xf32>
    %259 = arith.addf %257, %258 : vector<2x32xf32>
    %260 = math.tanh %259 : vector<2x32xf32>
    %261 = arith.mulf %232, %260 : vector<2x32xf32>
    %cst_95 = arith.constant dense<0.000000e+00> : vector<2xf32>
    %262 = vector.multi_reduction <add>, %261, %cst_95 [1] : vector<2x32xf32> to vector<2xf32>
    %263 = vector.shape_cast %262 : vector<2xf32> to vector<2x1xf32>
    %cst_96 = arith.constant 3.200000e+01 : f32
    %264 = vector.broadcast %cst_96 : f32 to vector<2x1xf32>
    %265 = arith.divf %263, %264 : vector<2x1xf32>
    %266 = vector.broadcast %265 : vector<2x1xf32> to vector<2x32xf32>
    %267 = arith.subf %261, %266 : vector<2x32xf32>
    %268 = arith.mulf %267, %267 : vector<2x32xf32>
    %cst_97 = arith.constant dense<0.000000e+00> : vector<2xf32>
    %269 = vector.multi_reduction <add>, %268, %cst_97 [1] : vector<2x32xf32> to vector<2xf32>
    %270 = vector.shape_cast %269 : vector<2xf32> to vector<2x1xf32>
    %cst_98 = arith.constant 3.200000e+01 : f32
    %271 = vector.broadcast %cst_98 : f32 to vector<2x1xf32>
    %272 = arith.divf %270, %271 : vector<2x1xf32>
    %273 = vector.broadcast %265 : vector<2x1xf32> to vector<2x32xf32>
    %274 = arith.subf %261, %273 : vector<2x32xf32>
    %cst_99 = arith.constant 9.99999974E-6 : f32
    %275 = vector.broadcast %cst_99 : f32 to vector<2x1xf32>
    %276 = arith.addf %272, %275 : vector<2x1xf32>
    %277 = math.rsqrt %276 : vector<2x1xf32>
    %278 = vector.broadcast %277 : vector<2x1xf32> to vector<2x32xf32>
    %279 = arith.mulf %274, %278 : vector<2x32xf32>
    %280 = vector.broadcast %8 : vector<1x32xf32> to vector<2x32xf32>
    %281 = arith.mulf %279, %280 : vector<2x32xf32>
    %282 = vector.broadcast %10 : vector<1x32xf32> to vector<2x32xf32>
    %283 = arith.addf %281, %282 : vector<2x32xf32>
    %c0_100 = arith.constant 0 : index
    %c0_101 = arith.constant 0 : index
    %284 = vector.load %arg10[%c0_100, %c0_101] : memref<2x32xf32, #tpu.memory_space<vmem>>, vector<2x32xf32>
    tpu.vector_store %arg10[%c0_100, %c0_101], %283 {strides = array<i32>} : memref<2x32xf32, #tpu.memory_space<vmem>>, vector<2x32xf32>,
    %c0_102 = arith.constant 0 : index
    %c0_103 = arith.constant 0 : index
    %285 = vector.load %arg11[%c0_102, %c0_103] : memref<2x32xf32, #tpu.memory_space<vmem>>, vector<2x32xf32>
    tpu.vector_store %arg11[%c0_102, %c0_103], %259 {strides = array<i32>} : memref<2x32xf32, #tpu.memory_space<vmem>>, vector<2x32xf32>,
    %c0_104 = arith.constant 0 : index
    %286 = arith.index_cast %202 : i32 to index
    %c0_105 = arith.constant 0 : index
    %c0_106 = arith.constant 0 : index
    %287 = vector.load %arg7[%c0_104, %286, %c0_105, %c0_106] : memref<1x8x2x32xf32, #tpu.memory_space<vmem>>, vector<1x1x2x32xf32>
    %288 = vector.shape_cast %287 : vector<1x1x2x32xf32> to vector<2x32xf32>
    %289 = vector.shape_cast %283 : vector<2x32xf32> to vector<1x1x2x32xf32>
    tpu.vector_store %arg7[%c0_104, %286, %c0_105, %c0_106], %289 {strides = array<i32>} : memref<1x8x2x32xf32, #tpu.memory_space<vmem>>, vector<1x1x2x32xf32>,
    %c3_i32 = arith.constant 3 : i32
    %c2_i32_107 = arith.constant 2 : i32
    %290 = arith.muli %c2_i32_107, %c3_i32 : i32
    %c7_i32_108 = arith.constant 7 : i32
    %291 = arith.subi %c7_i32_108, %290 : i32
    %292 = arith.muli %arg0, %291 : i32
    %293 = arith.addi %c3_i32, %292 : i32
    %294 = arith.index_cast %293 : i32 to index
    %c0_109 = arith.constant 0 : index
    %c0_110 = arith.constant 0 : index
    %295 = vector.load %arg2[%294, %c0_109, %c0_110] : memref<8x2x16xf32, #tpu.memory_space<vmem>>, vector<1x2x16xf32>
    %296 = vector.shape_cast %295 : vector<1x2x16xf32> to vector<2x16xf32>
    %297 = arith.truncf %296 : vector<2x16xf32> to vector<2x16xbf16>
    %c0_111 = arith.constant 0 : index
    %c0_112 = arith.constant 0 : index
    %298 = vector.load %arg10[%c0_111, %c0_112] : memref<2x32xf32, #tpu.memory_space<vmem>>, vector<2x32xf32>
    %c0_113 = arith.constant 0 : index
    %c0_114 = arith.constant 0 : index
    %299 = vector.load %arg11[%c0_113, %c0_114] : memref<2x32xf32, #tpu.memory_space<vmem>>, vector<2x32xf32>
    %cst_115 = arith.constant dense<0.000000e+00> : vector<2x128xf32>
    %300 = tpu.matmul %297, %12, %cst_115 {dimension_numbers = #tpu.dot_dimension_numbers<[1], [0], [0], [1], [0, 0, 1, 1], [], []>} : vector<2x16xbf16>, vector<16x128xbf16>, vector<2x128xf32> -> vector<2x128xf32>
    %301 = arith.truncf %298 : vector<2x32xf32> to vector<2x32xbf16>
    %cst_116 = arith.constant dense<0.000000e+00> : vector<2x128xf32>
    %302 = tpu.matmul %301, %14, %cst_116 {dimension_numbers = #tpu.dot_dimension_numbers<[1], [0], [0], [1], [0, 0, 1, 1], [], []>} : vector<2x32xbf16>, vector<32x128xbf16>, vector<2x128xf32> -> vector<2x128xf32>
    %303 = arith.addf %300, %302 : vector<2x128xf32>
    %304 = vector.broadcast %16 : vector<1x128xf32> to vector<2x128xf32>
    %305 = arith.addf %303, %304 : vector<2x128xf32>
    %306 = vector.extract_strided_slice %305 {offsets = [0, 0], sizes = [2, 32], strides = [1, 1]} : vector<2x128xf32> to vector<2x32xf32>
    %307 = arith.negf %306 : vector<2x32xf32>
    %308 = math.exp %307 : vector<2x32xf32>
    %cst_117 = arith.constant 1.000000e+00 : f32
    %309 = vector.broadcast %cst_117 : f32 to vector<2x32xf32>
    %310 = arith.addf %309, %308 : vector<2x32xf32>
    %311 = arith.divf %309, %310 : vector<2x32xf32>
    %312 = vector.extract_strided_slice %305 {offsets = [0, 32], sizes = [2, 32], strides = [1, 1]} : vector<2x128xf32> to vector<2x32xf32>
    %313 = arith.negf %312 : vector<2x32xf32>
    %314 = math.exp %313 : vector<2x32xf32>
    %cst_118 = arith.constant 1.000000e+00 : f32
    %315 = vector.broadcast %cst_118 : f32 to vector<2x32xf32>
    %316 = arith.addf %315, %314 : vector<2x32xf32>
    %317 = arith.divf %315, %316 : vector<2x32xf32>
    %318 = vector.extract_strided_slice %305 {offsets = [0, 64], sizes = [2, 32], strides = [1, 1]} : vector<2x128xf32> to vector<2x32xf32>
    %319 = arith.negf %318 : vector<2x32xf32>
    %320 = math.exp %319 : vector<2x32xf32>
    %cst_119 = arith.constant 1.000000e+00 : f32
    %321 = vector.broadcast %cst_119 : f32 to vector<2x32xf32>
    %322 = arith.addf %321, %320 : vector<2x32xf32>
    %323 = arith.divf %321, %322 : vector<2x32xf32>
    %324 = vector.extract_strided_slice %305 {offsets = [0, 96], sizes = [2, 32], strides = [1, 1]} : vector<2x128xf32> to vector<2x32xf32>
    %325 = math.tanh %324 : vector<2x32xf32>
    %326 = arith.mulf %317, %299 : vector<2x32xf32>
    %327 = arith.mulf %311, %325 : vector<2x32xf32>
    %328 = arith.addf %326, %327 : vector<2x32xf32>
    %cst_120 = arith.constant dense<0.000000e+00> : vector<2xf32>
    %329 = vector.multi_reduction <add>, %328, %cst_120 [1] : vector<2x32xf32> to vector<2xf32>
    %330 = vector.shape_cast %329 : vector<2xf32> to vector<2x1xf32>
    %cst_121 = arith.constant 3.200000e+01 : f32
    %331 = vector.broadcast %cst_121 : f32 to vector<2x1xf32>
    %332 = arith.divf %330, %331 : vector<2x1xf32>
    %333 = vector.broadcast %332 : vector<2x1xf32> to vector<2x32xf32>
    %334 = arith.subf %328, %333 : vector<2x32xf32>
    %335 = arith.mulf %334, %334 : vector<2x32xf32>
    %cst_122 = arith.constant dense<0.000000e+00> : vector<2xf32>
    %336 = vector.multi_reduction <add>, %335, %cst_122 [1] : vector<2x32xf32> to vector<2xf32>
    %337 = vector.shape_cast %336 : vector<2xf32> to vector<2x1xf32>
    %cst_123 = arith.constant 3.200000e+01 : f32
    %338 = vector.broadcast %cst_123 : f32 to vector<2x1xf32>
    %339 = arith.divf %337, %338 : vector<2x1xf32>
    %340 = vector.broadcast %332 : vector<2x1xf32> to vector<2x32xf32>
    %341 = arith.subf %328, %340 : vector<2x32xf32>
    %cst_124 = arith.constant 9.99999974E-6 : f32
    %342 = vector.broadcast %cst_124 : f32 to vector<2x1xf32>
    %343 = arith.addf %339, %342 : vector<2x1xf32>
    %344 = math.rsqrt %343 : vector<2x1xf32>
    %345 = vector.broadcast %344 : vector<2x1xf32> to vector<2x32xf32>
    %346 = arith.mulf %341, %345 : vector<2x32xf32>
    %347 = vector.broadcast %4 : vector<1x32xf32> to vector<2x32xf32>
    %348 = arith.mulf %346, %347 : vector<2x32xf32>
    %349 = vector.broadcast %6 : vector<1x32xf32> to vector<2x32xf32>
    %350 = arith.addf %348, %349 : vector<2x32xf32>
    %351 = math.tanh %350 : vector<2x32xf32>
    %352 = arith.mulf %323, %351 : vector<2x32xf32>
    %cst_125 = arith.constant dense<0.000000e+00> : vector<2xf32>
    %353 = vector.multi_reduction <add>, %352, %cst_125 [1] : vector<2x32xf32> to vector<2xf32>
    %354 = vector.shape_cast %353 : vector<2xf32> to vector<2x1xf32>
    %cst_126 = arith.constant 3.200000e+01 : f32
    %355 = vector.broadcast %cst_126 : f32 to vector<2x1xf32>
    %356 = arith.divf %354, %355 : vector<2x1xf32>
    %357 = vector.broadcast %356 : vector<2x1xf32> to vector<2x32xf32>
    %358 = arith.subf %352, %357 : vector<2x32xf32>
    %359 = arith.mulf %358, %358 : vector<2x32xf32>
    %cst_127 = arith.constant dense<0.000000e+00> : vector<2xf32>
    %360 = vector.multi_reduction <add>, %359, %cst_127 [1] : vector<2x32xf32> to vector<2xf32>
    %361 = vector.shape_cast %360 : vector<2xf32> to vector<2x1xf32>
    %cst_128 = arith.constant 3.200000e+01 : f32
    %362 = vector.broadcast %cst_128 : f32 to vector<2x1xf32>
    %363 = arith.divf %361, %362 : vector<2x1xf32>
    %364 = vector.broadcast %356 : vector<2x1xf32> to vector<2x32xf32>
    %365 = arith.subf %352, %364 : vector<2x32xf32>
    %cst_129 = arith.constant 9.99999974E-6 : f32
    %366 = vector.broadcast %cst_129 : f32 to vector<2x1xf32>
    %367 = arith.addf %363, %366 : vector<2x1xf32>
    %368 = math.rsqrt %367 : vector<2x1xf32>
    %369 = vector.broadcast %368 : vector<2x1xf32> to vector<2x32xf32>
    %370 = arith.mulf %365, %369 : vector<2x32xf32>
    %371 = vector.broadcast %8 : vector<1x32xf32> to vector<2x32xf32>
    %372 = arith.mulf %370, %371 : vector<2x32xf32>
    %373 = vector.broadcast %10 : vector<1x32xf32> to vector<2x32xf32>
    %374 = arith.addf %372, %373 : vector<2x32xf32>
    %c0_130 = arith.constant 0 : index
    %c0_131 = arith.constant 0 : index
    %375 = vector.load %arg10[%c0_130, %c0_131] : memref<2x32xf32, #tpu.memory_space<vmem>>, vector<2x32xf32>
    tpu.vector_store %arg10[%c0_130, %c0_131], %374 {strides = array<i32>} : memref<2x32xf32, #tpu.memory_space<vmem>>, vector<2x32xf32>,
    %c0_132 = arith.constant 0 : index
    %c0_133 = arith.constant 0 : index
    %376 = vector.load %arg11[%c0_132, %c0_133] : memref<2x32xf32, #tpu.memory_space<vmem>>, vector<2x32xf32>
    tpu.vector_store %arg11[%c0_132, %c0_133], %350 {strides = array<i32>} : memref<2x32xf32, #tpu.memory_space<vmem>>, vector<2x32xf32>,
    %c0_134 = arith.constant 0 : index
    %377 = arith.index_cast %293 : i32 to index
    %c0_135 = arith.constant 0 : index
    %c0_136 = arith.constant 0 : index
    %378 = vector.load %arg7[%c0_134, %377, %c0_135, %c0_136] : memref<1x8x2x32xf32, #tpu.memory_space<vmem>>, vector<1x1x2x32xf32>
    %379 = vector.shape_cast %378 : vector<1x1x2x32xf32> to vector<2x32xf32>
    %380 = vector.shape_cast %374 : vector<2x32xf32> to vector<1x1x2x32xf32>
    tpu.vector_store %arg7[%c0_134, %377, %c0_135, %c0_136], %380 {strides = array<i32>} : memref<1x8x2x32xf32, #tpu.memory_space<vmem>>, vector<1x1x2x32xf32>,
    %c4_i32 = arith.constant 4 : i32
    %c2_i32_137 = arith.constant 2 : i32
    %381 = arith.muli %c2_i32_137, %c4_i32 : i32
    %c7_i32_138 = arith.constant 7 : i32
    %382 = arith.subi %c7_i32_138, %381 : i32
    %383 = arith.muli %arg0, %382 : i32
    %384 = arith.addi %c4_i32, %383 : i32
    %385 = arith.index_cast %384 : i32 to index
    %c0_139 = arith.constant 0 : index
    %c0_140 = arith.constant 0 : index
    %386 = vector.load %arg2[%385, %c0_139, %c0_140] : memref<8x2x16xf32, #tpu.memory_space<vmem>>, vector<1x2x16xf32>
    %387 = vector.shape_cast %386 : vector<1x2x16xf32> to vector<2x16xf32>
    %388 = arith.truncf %387 : vector<2x16xf32> to vector<2x16xbf16>
    %c0_141 = arith.constant 0 : index
    %c0_142 = arith.constant 0 : index
    %389 = vector.load %arg10[%c0_141, %c0_142] : memref<2x32xf32, #tpu.memory_space<vmem>>, vector<2x32xf32>
    %c0_143 = arith.constant 0 : index
    %c0_144 = arith.constant 0 : index
    %390 = vector.load %arg11[%c0_143, %c0_144] : memref<2x32xf32, #tpu.memory_space<vmem>>, vector<2x32xf32>
    %cst_145 = arith.constant dense<0.000000e+00> : vector<2x128xf32>
    %391 = tpu.matmul %388, %12, %cst_145 {dimension_numbers = #tpu.dot_dimension_numbers<[1], [0], [0], [1], [0, 0, 1, 1], [], []>} : vector<2x16xbf16>, vector<16x128xbf16>, vector<2x128xf32> -> vector<2x128xf32>
    %392 = arith.truncf %389 : vector<2x32xf32> to vector<2x32xbf16>
    %cst_146 = arith.constant dense<0.000000e+00> : vector<2x128xf32>
    %393 = tpu.matmul %392, %14, %cst_146 {dimension_numbers = #tpu.dot_dimension_numbers<[1], [0], [0], [1], [0, 0, 1, 1], [], []>} : vector<2x32xbf16>, vector<32x128xbf16>, vector<2x128xf32> -> vector<2x128xf32>
    %394 = arith.addf %391, %393 : vector<2x128xf32>
    %395 = vector.broadcast %16 : vector<1x128xf32> to vector<2x128xf32>
    %396 = arith.addf %394, %395 : vector<2x128xf32>
    %397 = vector.extract_strided_slice %396 {offsets = [0, 0], sizes = [2, 32], strides = [1, 1]} : vector<2x128xf32> to vector<2x32xf32>
    %398 = arith.negf %397 : vector<2x32xf32>
    %399 = math.exp %398 : vector<2x32xf32>
    %cst_147 = arith.constant 1.000000e+00 : f32
    %400 = vector.broadcast %cst_147 : f32 to vector<2x32xf32>
    %401 = arith.addf %400, %399 : vector<2x32xf32>
    %402 = arith.divf %400, %401 : vector<2x32xf32>
    %403 = vector.extract_strided_slice %396 {offsets = [0, 32], sizes = [2, 32], strides = [1, 1]} : vector<2x128xf32> to vector<2x32xf32>
    %404 = arith.negf %403 : vector<2x32xf32>
    %405 = math.exp %404 : vector<2x32xf32>
    %cst_148 = arith.constant 1.000000e+00 : f32
    %406 = vector.broadcast %cst_148 : f32 to vector<2x32xf32>
    %407 = arith.addf %406, %405 : vector<2x32xf32>
    %408 = arith.divf %406, %407 : vector<2x32xf32>
    %409 = vector.extract_strided_slice %396 {offsets = [0, 64], sizes = [2, 32], strides = [1, 1]} : vector<2x128xf32> to vector<2x32xf32>
    %410 = arith.negf %409 : vector<2x32xf32>
    %411 = math.exp %410 : vector<2x32xf32>
    %cst_149 = arith.constant 1.000000e+00 : f32
    %412 = vector.broadcast %cst_149 : f32 to vector<2x32xf32>
    %413 = arith.addf %412, %411 : vector<2x32xf32>
    %414 = arith.divf %412, %413 : vector<2x32xf32>
    %415 = vector.extract_strided_slice %396 {offsets = [0, 96], sizes = [2, 32], strides = [1, 1]} : vector<2x128xf32> to vector<2x32xf32>
    %416 = math.tanh %415 : vector<2x32xf32>
    %417 = arith.mulf %408, %390 : vector<2x32xf32>
    %418 = arith.mulf %402, %416 : vector<2x32xf32>
    %419 = arith.addf %417, %418 : vector<2x32xf32>
    %cst_150 = arith.constant dense<0.000000e+00> : vector<2xf32>
    %420 = vector.multi_reduction <add>, %419, %cst_150 [1] : vector<2x32xf32> to vector<2xf32>
    %421 = vector.shape_cast %420 : vector<2xf32> to vector<2x1xf32>
    %cst_151 = arith.constant 3.200000e+01 : f32
    %422 = vector.broadcast %cst_151 : f32 to vector<2x1xf32>
    %423 = arith.divf %421, %422 : vector<2x1xf32>
    %424 = vector.broadcast %423 : vector<2x1xf32> to vector<2x32xf32>
    %425 = arith.subf %419, %424 : vector<2x32xf32>
    %426 = arith.mulf %425, %425 : vector<2x32xf32>
    %cst_152 = arith.constant dense<0.000000e+00> : vector<2xf32>
    %427 = vector.multi_reduction <add>, %426, %cst_152 [1] : vector<2x32xf32> to vector<2xf32>
    %428 = vector.shape_cast %427 : vector<2xf32> to vector<2x1xf32>
    %cst_153 = arith.constant 3.200000e+01 : f32
    %429 = vector.broadcast %cst_153 : f32 to vector<2x1xf32>
    %430 = arith.divf %428, %429 : vector<2x1xf32>
    %431 = vector.broadcast %423 : vector<2x1xf32> to vector<2x32xf32>
    %432 = arith.subf %419, %431 : vector<2x32xf32>
    %cst_154 = arith.constant 9.99999974E-6 : f32
    %433 = vector.broadcast %cst_154 : f32 to vector<2x1xf32>
    %434 = arith.addf %430, %433 : vector<2x1xf32>
    %435 = math.rsqrt %434 : vector<2x1xf32>
    %436 = vector.broadcast %435 : vector<2x1xf32> to vector<2x32xf32>
    %437 = arith.mulf %432, %436 : vector<2x32xf32>
    %438 = vector.broadcast %4 : vector<1x32xf32> to vector<2x32xf32>
    %439 = arith.mulf %437, %438 : vector<2x32xf32>
    %440 = vector.broadcast %6 : vector<1x32xf32> to vector<2x32xf32>
    %441 = arith.addf %439, %440 : vector<2x32xf32>
    %442 = math.tanh %441 : vector<2x32xf32>
    %443 = arith.mulf %414, %442 : vector<2x32xf32>
    %cst_155 = arith.constant dense<0.000000e+00> : vector<2xf32>
    %444 = vector.multi_reduction <add>, %443, %cst_155 [1] : vector<2x32xf32> to vector<2xf32>
    %445 = vector.shape_cast %444 : vector<2xf32> to vector<2x1xf32>
    %cst_156 = arith.constant 3.200000e+01 : f32
    %446 = vector.broadcast %cst_156 : f32 to vector<2x1xf32>
    %447 = arith.divf %445, %446 : vector<2x1xf32>
    %448 = vector.broadcast %447 : vector<2x1xf32> to vector<2x32xf32>
    %449 = arith.subf %443, %448 : vector<2x32xf32>
    %450 = arith.mulf %449, %449 : vector<2x32xf32>
    %cst_157 = arith.constant dense<0.000000e+00> : vector<2xf32>
    %451 = vector.multi_reduction <add>, %450, %cst_157 [1] : vector<2x32xf32> to vector<2xf32>
    %452 = vector.shape_cast %451 : vector<2xf32> to vector<2x1xf32>
    %cst_158 = arith.constant 3.200000e+01 : f32
    %453 = vector.broadcast %cst_158 : f32 to vector<2x1xf32>
    %454 = arith.divf %452, %453 : vector<2x1xf32>
    %455 = vector.broadcast %447 : vector<2x1xf32> to vector<2x32xf32>
    %456 = arith.subf %443, %455 : vector<2x32xf32>
    %cst_159 = arith.constant 9.99999974E-6 : f32
    %457 = vector.broadcast %cst_159 : f32 to vector<2x1xf32>
    %458 = arith.addf %454, %457 : vector<2x1xf32>
    %459 = math.rsqrt %458 : vector<2x1xf32>
    %460 = vector.broadcast %459 : vector<2x1xf32> to vector<2x32xf32>
    %461 = arith.mulf %456, %460 : vector<2x32xf32>
    %462 = vector.broadcast %8 : vector<1x32xf32> to vector<2x32xf32>
    %463 = arith.mulf %461, %462 : vector<2x32xf32>
    %464 = vector.broadcast %10 : vector<1x32xf32> to vector<2x32xf32>
    %465 = arith.addf %463, %464 : vector<2x32xf32>
    %c0_160 = arith.constant 0 : index
    %c0_161 = arith.constant 0 : index
    %466 = vector.load %arg10[%c0_160, %c0_161] : memref<2x32xf32, #tpu.memory_space<vmem>>, vector<2x32xf32>
    tpu.vector_store %arg10[%c0_160, %c0_161], %465 {strides = array<i32>} : memref<2x32xf32, #tpu.memory_space<vmem>>, vector<2x32xf32>,
    %c0_162 = arith.constant 0 : index
    %c0_163 = arith.constant 0 : index
    %467 = vector.load %arg11[%c0_162, %c0_163] : memref<2x32xf32, #tpu.memory_space<vmem>>, vector<2x32xf32>
    tpu.vector_store %arg11[%c0_162, %c0_163], %441 {strides = array<i32>} : memref<2x32xf32, #tpu.memory_space<vmem>>, vector<2x32xf32>,
    %c0_164 = arith.constant 0 : index
    %468 = arith.index_cast %384 : i32 to index
    %c0_165 = arith.constant 0 : index
    %c0_166 = arith.constant 0 : index
    %469 = vector.load %arg7[%c0_164, %468, %c0_165, %c0_166] : memref<1x8x2x32xf32, #tpu.memory_space<vmem>>, vector<1x1x2x32xf32>
    %470 = vector.shape_cast %469 : vector<1x1x2x32xf32> to vector<2x32xf32>
    %471 = vector.shape_cast %465 : vector<2x32xf32> to vector<1x1x2x32xf32>
    tpu.vector_store %arg7[%c0_164, %468, %c0_165, %c0_166], %471 {strides = array<i32>} : memref<1x8x2x32xf32, #tpu.memory_space<vmem>>, vector<1x1x2x32xf32>,
    %c5_i32 = arith.constant 5 : i32
    %c2_i32_167 = arith.constant 2 : i32
    %472 = arith.muli %c2_i32_167, %c5_i32 : i32
    %c7_i32_168 = arith.constant 7 : i32
    %473 = arith.subi %c7_i32_168, %472 : i32
    %474 = arith.muli %arg0, %473 : i32
    %475 = arith.addi %c5_i32, %474 : i32
    %476 = arith.index_cast %475 : i32 to index
    %c0_169 = arith.constant 0 : index
    %c0_170 = arith.constant 0 : index
    %477 = vector.load %arg2[%476, %c0_169, %c0_170] : memref<8x2x16xf32, #tpu.memory_space<vmem>>, vector<1x2x16xf32>
    %478 = vector.shape_cast %477 : vector<1x2x16xf32> to vector<2x16xf32>
    %479 = arith.truncf %478 : vector<2x16xf32> to vector<2x16xbf16>
    %c0_171 = arith.constant 0 : index
    %c0_172 = arith.constant 0 : index
    %480 = vector.load %arg10[%c0_171, %c0_172] : memref<2x32xf32, #tpu.memory_space<vmem>>, vector<2x32xf32>
    %c0_173 = arith.constant 0 : index
    %c0_174 = arith.constant 0 : index
    %481 = vector.load %arg11[%c0_173, %c0_174] : memref<2x32xf32, #tpu.memory_space<vmem>>, vector<2x32xf32>
    %cst_175 = arith.constant dense<0.000000e+00> : vector<2x128xf32>
    %482 = tpu.matmul %479, %12, %cst_175 {dimension_numbers = #tpu.dot_dimension_numbers<[1], [0], [0], [1], [0, 0, 1, 1], [], []>} : vector<2x16xbf16>, vector<16x128xbf16>, vector<2x128xf32> -> vector<2x128xf32>
    %483 = arith.truncf %480 : vector<2x32xf32> to vector<2x32xbf16>
    %cst_176 = arith.constant dense<0.000000e+00> : vector<2x128xf32>
    %484 = tpu.matmul %483, %14, %cst_176 {dimension_numbers = #tpu.dot_dimension_numbers<[1], [0], [0], [1], [0, 0, 1, 1], [], []>} : vector<2x32xbf16>, vector<32x128xbf16>, vector<2x128xf32> -> vector<2x128xf32>
    %485 = arith.addf %482, %484 : vector<2x128xf32>
    %486 = vector.broadcast %16 : vector<1x128xf32> to vector<2x128xf32>
    %487 = arith.addf %485, %486 : vector<2x128xf32>
    %488 = vector.extract_strided_slice %487 {offsets = [0, 0], sizes = [2, 32], strides = [1, 1]} : vector<2x128xf32> to vector<2x32xf32>
    %489 = arith.negf %488 : vector<2x32xf32>
    %490 = math.exp %489 : vector<2x32xf32>
    %cst_177 = arith.constant 1.000000e+00 : f32
    %491 = vector.broadcast %cst_177 : f32 to vector<2x32xf32>
    %492 = arith.addf %491, %490 : vector<2x32xf32>
    %493 = arith.divf %491, %492 : vector<2x32xf32>
    %494 = vector.extract_strided_slice %487 {offsets = [0, 32], sizes = [2, 32], strides = [1, 1]} : vector<2x128xf32> to vector<2x32xf32>
    %495 = arith.negf %494 : vector<2x32xf32>
    %496 = math.exp %495 : vector<2x32xf32>
    %cst_178 = arith.constant 1.000000e+00 : f32
    %497 = vector.broadcast %cst_178 : f32 to vector<2x32xf32>
    %498 = arith.addf %497, %496 : vector<2x32xf32>
    %499 = arith.divf %497, %498 : vector<2x32xf32>
    %500 = vector.extract_strided_slice %487 {offsets = [0, 64], sizes = [2, 32], strides = [1, 1]} : vector<2x128xf32> to vector<2x32xf32>
    %501 = arith.negf %500 : vector<2x32xf32>
    %502 = math.exp %501 : vector<2x32xf32>
    %cst_179 = arith.constant 1.000000e+00 : f32
    %503 = vector.broadcast %cst_179 : f32 to vector<2x32xf32>
    %504 = arith.addf %503, %502 : vector<2x32xf32>
    %505 = arith.divf %503, %504 : vector<2x32xf32>
    %506 = vector.extract_strided_slice %487 {offsets = [0, 96], sizes = [2, 32], strides = [1, 1]} : vector<2x128xf32> to vector<2x32xf32>
    %507 = math.tanh %506 : vector<2x32xf32>
    %508 = arith.mulf %499, %481 : vector<2x32xf32>
    %509 = arith.mulf %493, %507 : vector<2x32xf32>
    %510 = arith.addf %508, %509 : vector<2x32xf32>
    %cst_180 = arith.constant dense<0.000000e+00> : vector<2xf32>
    %511 = vector.multi_reduction <add>, %510, %cst_180 [1] : vector<2x32xf32> to vector<2xf32>
    %512 = vector.shape_cast %511 : vector<2xf32> to vector<2x1xf32>
    %cst_181 = arith.constant 3.200000e+01 : f32
    %513 = vector.broadcast %cst_181 : f32 to vector<2x1xf32>
    %514 = arith.divf %512, %513 : vector<2x1xf32>
    %515 = vector.broadcast %514 : vector<2x1xf32> to vector<2x32xf32>
    %516 = arith.subf %510, %515 : vector<2x32xf32>
    %517 = arith.mulf %516, %516 : vector<2x32xf32>
    %cst_182 = arith.constant dense<0.000000e+00> : vector<2xf32>
    %518 = vector.multi_reduction <add>, %517, %cst_182 [1] : vector<2x32xf32> to vector<2xf32>
    %519 = vector.shape_cast %518 : vector<2xf32> to vector<2x1xf32>
    %cst_183 = arith.constant 3.200000e+01 : f32
    %520 = vector.broadcast %cst_183 : f32 to vector<2x1xf32>
    %521 = arith.divf %519, %520 : vector<2x1xf32>
    %522 = vector.broadcast %514 : vector<2x1xf32> to vector<2x32xf32>
    %523 = arith.subf %510, %522 : vector<2x32xf32>
    %cst_184 = arith.constant 9.99999974E-6 : f32
    %524 = vector.broadcast %cst_184 : f32 to vector<2x1xf32>
    %525 = arith.addf %521, %524 : vector<2x1xf32>
    %526 = math.rsqrt %525 : vector<2x1xf32>
    %527 = vector.broadcast %526 : vector<2x1xf32> to vector<2x32xf32>
    %528 = arith.mulf %523, %527 : vector<2x32xf32>
    %529 = vector.broadcast %4 : vector<1x32xf32> to vector<2x32xf32>
    %530 = arith.mulf %528, %529 : vector<2x32xf32>
    %531 = vector.broadcast %6 : vector<1x32xf32> to vector<2x32xf32>
    %532 = arith.addf %530, %531 : vector<2x32xf32>
    %533 = math.tanh %532 : vector<2x32xf32>
    %534 = arith.mulf %505, %533 : vector<2x32xf32>
    %cst_185 = arith.constant dense<0.000000e+00> : vector<2xf32>
    %535 = vector.multi_reduction <add>, %534, %cst_185 [1] : vector<2x32xf32> to vector<2xf32>
    %536 = vector.shape_cast %535 : vector<2xf32> to vector<2x1xf32>
    %cst_186 = arith.constant 3.200000e+01 : f32
    %537 = vector.broadcast %cst_186 : f32 to vector<2x1xf32>
    %538 = arith.divf %536, %537 : vector<2x1xf32>
    %539 = vector.broadcast %538 : vector<2x1xf32> to vector<2x32xf32>
    %540 = arith.subf %534, %539 : vector<2x32xf32>
    %541 = arith.mulf %540, %540 : vector<2x32xf32>
    %cst_187 = arith.constant dense<0.000000e+00> : vector<2xf32>
    %542 = vector.multi_reduction <add>, %541, %cst_187 [1] : vector<2x32xf32> to vector<2xf32>
    %543 = vector.shape_cast %542 : vector<2xf32> to vector<2x1xf32>
    %cst_188 = arith.constant 3.200000e+01 : f32
    %544 = vector.broadcast %cst_188 : f32 to vector<2x1xf32>
    %545 = arith.divf %543, %544 : vector<2x1xf32>
    %546 = vector.broadcast %538 : vector<2x1xf32> to vector<2x32xf32>
    %547 = arith.subf %534, %546 : vector<2x32xf32>
    %cst_189 = arith.constant 9.99999974E-6 : f32
    %548 = vector.broadcast %cst_189 : f32 to vector<2x1xf32>
    %549 = arith.addf %545, %548 : vector<2x1xf32>
    %550 = math.rsqrt %549 : vector<2x1xf32>
    %551 = vector.broadcast %550 : vector<2x1xf32> to vector<2x32xf32>
    %552 = arith.mulf %547, %551 : vector<2x32xf32>
    %553 = vector.broadcast %8 : vector<1x32xf32> to vector<2x32xf32>
    %554 = arith.mulf %552, %553 : vector<2x32xf32>
    %555 = vector.broadcast %10 : vector<1x32xf32> to vector<2x32xf32>
    %556 = arith.addf %554, %555 : vector<2x32xf32>
    %c0_190 = arith.constant 0 : index
    %c0_191 = arith.constant 0 : index
    %557 = vector.load %arg10[%c0_190, %c0_191] : memref<2x32xf32, #tpu.memory_space<vmem>>, vector<2x32xf32>
    tpu.vector_store %arg10[%c0_190, %c0_191], %556 {strides = array<i32>} : memref<2x32xf32, #tpu.memory_space<vmem>>, vector<2x32xf32>,
    %c0_192 = arith.constant 0 : index
    %c0_193 = arith.constant 0 : index
    %558 = vector.load %arg11[%c0_192, %c0_193] : memref<2x32xf32, #tpu.memory_space<vmem>>, vector<2x32xf32>
    tpu.vector_store %arg11[%c0_192, %c0_193], %532 {strides = array<i32>} : memref<2x32xf32, #tpu.memory_space<vmem>>, vector<2x32xf32>,
    %c0_194 = arith.constant 0 : index
    %559 = arith.index_cast %475 : i32 to index
    %c0_195 = arith.constant 0 : index
    %c0_196 = arith.constant 0 : index
    %560 = vector.load %arg7[%c0_194, %559, %c0_195, %c0_196] : memref<1x8x2x32xf32, #tpu.memory_space<vmem>>, vector<1x1x2x32xf32>
    %561 = vector.shape_cast %560 : vector<1x1x2x32xf32> to vector<2x32xf32>
    %562 = vector.shape_cast %556 : vector<2x32xf32> to vector<1x1x2x32xf32>
    tpu.vector_store %arg7[%c0_194, %559, %c0_195, %c0_196], %562 {strides = array<i32>} : memref<1x8x2x32xf32, #tpu.memory_space<vmem>>, vector<1x1x2x32xf32>,
    %c6_i32 = arith.constant 6 : i32
    %c2_i32_197 = arith.constant 2 : i32
    %563 = arith.muli %c2_i32_197, %c6_i32 : i32
    %c7_i32_198 = arith.constant 7 : i32
    %564 = arith.subi %c7_i32_198, %563 : i32
    %565 = arith.muli %arg0, %564 : i32
    %566 = arith.addi %c6_i32, %565 : i32
    %567 = arith.index_cast %566 : i32 to index
    %c0_199 = arith.constant 0 : index
    %c0_200 = arith.constant 0 : index
    %568 = vector.load %arg2[%567, %c0_199, %c0_200] : memref<8x2x16xf32, #tpu.memory_space<vmem>>, vector<1x2x16xf32>
    %569 = vector.shape_cast %568 : vector<1x2x16xf32> to vector<2x16xf32>
    %570 = arith.truncf %569 : vector<2x16xf32> to vector<2x16xbf16>
    %c0_201 = arith.constant 0 : index
    %c0_202 = arith.constant 0 : index
    %571 = vector.load %arg10[%c0_201, %c0_202] : memref<2x32xf32, #tpu.memory_space<vmem>>, vector<2x32xf32>
    %c0_203 = arith.constant 0 : index
    %c0_204 = arith.constant 0 : index
    %572 = vector.load %arg11[%c0_203, %c0_204] : memref<2x32xf32, #tpu.memory_space<vmem>>, vector<2x32xf32>
    %cst_205 = arith.constant dense<0.000000e+00> : vector<2x128xf32>
    %573 = tpu.matmul %570, %12, %cst_205 {dimension_numbers = #tpu.dot_dimension_numbers<[1], [0], [0], [1], [0, 0, 1, 1], [], []>} : vector<2x16xbf16>, vector<16x128xbf16>, vector<2x128xf32> -> vector<2x128xf32>
    %574 = arith.truncf %571 : vector<2x32xf32> to vector<2x32xbf16>
    %cst_206 = arith.constant dense<0.000000e+00> : vector<2x128xf32>
    %575 = tpu.matmul %574, %14, %cst_206 {dimension_numbers = #tpu.dot_dimension_numbers<[1], [0], [0], [1], [0, 0, 1, 1], [], []>} : vector<2x32xbf16>, vector<32x128xbf16>, vector<2x128xf32> -> vector<2x128xf32>
    %576 = arith.addf %573, %575 : vector<2x128xf32>
    %577 = vector.broadcast %16 : vector<1x128xf32> to vector<2x128xf32>
    %578 = arith.addf %576, %577 : vector<2x128xf32>
    %579 = vector.extract_strided_slice %578 {offsets = [0, 0], sizes = [2, 32], strides = [1, 1]} : vector<2x128xf32> to vector<2x32xf32>
    %580 = arith.negf %579 : vector<2x32xf32>
    %581 = math.exp %580 : vector<2x32xf32>
    %cst_207 = arith.constant 1.000000e+00 : f32
    %582 = vector.broadcast %cst_207 : f32 to vector<2x32xf32>
    %583 = arith.addf %582, %581 : vector<2x32xf32>
    %584 = arith.divf %582, %583 : vector<2x32xf32>
    %585 = vector.extract_strided_slice %578 {offsets = [0, 32], sizes = [2, 32], strides = [1, 1]} : vector<2x128xf32> to vector<2x32xf32>
    %586 = arith.negf %585 : vector<2x32xf32>
    %587 = math.exp %586 : vector<2x32xf32>
    %cst_208 = arith.constant 1.000000e+00 : f32
    %588 = vector.broadcast %cst_208 : f32 to vector<2x32xf32>
    %589 = arith.addf %588, %587 : vector<2x32xf32>
    %590 = arith.divf %588, %589 : vector<2x32xf32>
    %591 = vector.extract_strided_slice %578 {offsets = [0, 64], sizes = [2, 32], strides = [1, 1]} : vector<2x128xf32> to vector<2x32xf32>
    %592 = arith.negf %591 : vector<2x32xf32>
    %593 = math.exp %592 : vector<2x32xf32>
    %cst_209 = arith.constant 1.000000e+00 : f32
    %594 = vector.broadcast %cst_209 : f32 to vector<2x32xf32>
    %595 = arith.addf %594, %593 : vector<2x32xf32>
    %596 = arith.divf %594, %595 : vector<2x32xf32>
    %597 = vector.extract_strided_slice %578 {offsets = [0, 96], sizes = [2, 32], strides = [1, 1]} : vector<2x128xf32> to vector<2x32xf32>
    %598 = math.tanh %597 : vector<2x32xf32>
    %599 = arith.mulf %590, %572 : vector<2x32xf32>
    %600 = arith.mulf %584, %598 : vector<2x32xf32>
    %601 = arith.addf %599, %600 : vector<2x32xf32>
    %cst_210 = arith.constant dense<0.000000e+00> : vector<2xf32>
    %602 = vector.multi_reduction <add>, %601, %cst_210 [1] : vector<2x32xf32> to vector<2xf32>
    %603 = vector.shape_cast %602 : vector<2xf32> to vector<2x1xf32>
    %cst_211 = arith.constant 3.200000e+01 : f32
    %604 = vector.broadcast %cst_211 : f32 to vector<2x1xf32>
    %605 = arith.divf %603, %604 : vector<2x1xf32>
    %606 = vector.broadcast %605 : vector<2x1xf32> to vector<2x32xf32>
    %607 = arith.subf %601, %606 : vector<2x32xf32>
    %608 = arith.mulf %607, %607 : vector<2x32xf32>
    %cst_212 = arith.constant dense<0.000000e+00> : vector<2xf32>
    %609 = vector.multi_reduction <add>, %608, %cst_212 [1] : vector<2x32xf32> to vector<2xf32>
    %610 = vector.shape_cast %609 : vector<2xf32> to vector<2x1xf32>
    %cst_213 = arith.constant 3.200000e+01 : f32
    %611 = vector.broadcast %cst_213 : f32 to vector<2x1xf32>
    %612 = arith.divf %610, %611 : vector<2x1xf32>
    %613 = vector.broadcast %605 : vector<2x1xf32> to vector<2x32xf32>
    %614 = arith.subf %601, %613 : vector<2x32xf32>
    %cst_214 = arith.constant 9.99999974E-6 : f32
    %615 = vector.broadcast %cst_214 : f32 to vector<2x1xf32>
    %616 = arith.addf %612, %615 : vector<2x1xf32>
    %617 = math.rsqrt %616 : vector<2x1xf32>
    %618 = vector.broadcast %617 : vector<2x1xf32> to vector<2x32xf32>
    %619 = arith.mulf %614, %618 : vector<2x32xf32>
    %620 = vector.broadcast %4 : vector<1x32xf32> to vector<2x32xf32>
    %621 = arith.mulf %619, %620 : vector<2x32xf32>
    %622 = vector.broadcast %6 : vector<1x32xf32> to vector<2x32xf32>
    %623 = arith.addf %621, %622 : vector<2x32xf32>
    %624 = math.tanh %623 : vector<2x32xf32>
    %625 = arith.mulf %596, %624 : vector<2x32xf32>
    %cst_215 = arith.constant dense<0.000000e+00> : vector<2xf32>
    %626 = vector.multi_reduction <add>, %625, %cst_215 [1] : vector<2x32xf32> to vector<2xf32>
    %627 = vector.shape_cast %626 : vector<2xf32> to vector<2x1xf32>
    %cst_216 = arith.constant 3.200000e+01 : f32
    %628 = vector.broadcast %cst_216 : f32 to vector<2x1xf32>
    %629 = arith.divf %627, %628 : vector<2x1xf32>
    %630 = vector.broadcast %629 : vector<2x1xf32> to vector<2x32xf32>
    %631 = arith.subf %625, %630 : vector<2x32xf32>
    %632 = arith.mulf %631, %631 : vector<2x32xf32>
    %cst_217 = arith.constant dense<0.000000e+00> : vector<2xf32>
    %633 = vector.multi_reduction <add>, %632, %cst_217 [1] : vector<2x32xf32> to vector<2xf32>
    %634 = vector.shape_cast %633 : vector<2xf32> to vector<2x1xf32>
    %cst_218 = arith.constant 3.200000e+01 : f32
    %635 = vector.broadcast %cst_218 : f32 to vector<2x1xf32>
    %636 = arith.divf %634, %635 : vector<2x1xf32>
    %637 = vector.broadcast %629 : vector<2x1xf32> to vector<2x32xf32>
    %638 = arith.subf %625, %637 : vector<2x32xf32>
    %cst_219 = arith.constant 9.99999974E-6 : f32
    %639 = vector.broadcast %cst_219 : f32 to vector<2x1xf32>
    %640 = arith.addf %636, %639 : vector<2x1xf32>
    %641 = math.rsqrt %640 : vector<2x1xf32>
    %642 = vector.broadcast %641 : vector<2x1xf32> to vector<2x32xf32>
    %643 = arith.mulf %638, %642 : vector<2x32xf32>
    %644 = vector.broadcast %8 : vector<1x32xf32> to vector<2x32xf32>
    %645 = arith.mulf %643, %644 : vector<2x32xf32>
    %646 = vector.broadcast %10 : vector<1x32xf32> to vector<2x32xf32>
    %647 = arith.addf %645, %646 : vector<2x32xf32>
    %c0_220 = arith.constant 0 : index
    %c0_221 = arith.constant 0 : index
    %648 = vector.load %arg10[%c0_220, %c0_221] : memref<2x32xf32, #tpu.memory_space<vmem>>, vector<2x32xf32>
    tpu.vector_store %arg10[%c0_220, %c0_221], %647 {strides = array<i32>} : memref<2x32xf32, #tpu.memory_space<vmem>>, vector<2x32xf32>,
    %c0_222 = arith.constant 0 : index
    %c0_223 = arith.constant 0 : index
    %649 = vector.load %arg11[%c0_222, %c0_223] : memref<2x32xf32, #tpu.memory_space<vmem>>, vector<2x32xf32>
    tpu.vector_store %arg11[%c0_222, %c0_223], %623 {strides = array<i32>} : memref<2x32xf32, #tpu.memory_space<vmem>>, vector<2x32xf32>,
    %c0_224 = arith.constant 0 : index
    %650 = arith.index_cast %566 : i32 to index
    %c0_225 = arith.constant 0 : index
    %c0_226 = arith.constant 0 : index
    %651 = vector.load %arg7[%c0_224, %650, %c0_225, %c0_226] : memref<1x8x2x32xf32, #tpu.memory_space<vmem>>, vector<1x1x2x32xf32>
    %652 = vector.shape_cast %651 : vector<1x1x2x32xf32> to vector<2x32xf32>
    %653 = vector.shape_cast %647 : vector<2x32xf32> to vector<1x1x2x32xf32>
    tpu.vector_store %arg7[%c0_224, %650, %c0_225, %c0_226], %653 {strides = array<i32>} : memref<1x8x2x32xf32, #tpu.memory_space<vmem>>, vector<1x1x2x32xf32>,
    %c7_i32_227 = arith.constant 7 : i32
    %c2_i32_228 = arith.constant 2 : i32
    %654 = arith.muli %c2_i32_228, %c7_i32_227 : i32
    %c7_i32_229 = arith.constant 7 : i32
    %655 = arith.subi %c7_i32_229, %654 : i32
    %656 = arith.muli %arg0, %655 : i32
    %657 = arith.addi %c7_i32_227, %656 : i32
    %658 = arith.index_cast %657 : i32 to index
    %c0_230 = arith.constant 0 : index
    %c0_231 = arith.constant 0 : index
    %659 = vector.load %arg2[%658, %c0_230, %c0_231] : memref<8x2x16xf32, #tpu.memory_space<vmem>>, vector<1x2x16xf32>
    %660 = vector.shape_cast %659 : vector<1x2x16xf32> to vector<2x16xf32>
    %661 = arith.truncf %660 : vector<2x16xf32> to vector<2x16xbf16>
    %c0_232 = arith.constant 0 : index
    %c0_233 = arith.constant 0 : index
    %662 = vector.load %arg10[%c0_232, %c0_233] : memref<2x32xf32, #tpu.memory_space<vmem>>, vector<2x32xf32>
    %c0_234 = arith.constant 0 : index
    %c0_235 = arith.constant 0 : index
    %663 = vector.load %arg11[%c0_234, %c0_235] : memref<2x32xf32, #tpu.memory_space<vmem>>, vector<2x32xf32>
    %cst_236 = arith.constant dense<0.000000e+00> : vector<2x128xf32>
    %664 = tpu.matmul %661, %12, %cst_236 {dimension_numbers = #tpu.dot_dimension_numbers<[1], [0], [0], [1], [0, 0, 1, 1], [], []>} : vector<2x16xbf16>, vector<16x128xbf16>, vector<2x128xf32> -> vector<2x128xf32>
    %665 = arith.truncf %662 : vector<2x32xf32> to vector<2x32xbf16>
    %cst_237 = arith.constant dense<0.000000e+00> : vector<2x128xf32>
    %666 = tpu.matmul %665, %14, %cst_237 {dimension_numbers = #tpu.dot_dimension_numbers<[1], [0], [0], [1], [0, 0, 1, 1], [], []>} : vector<2x32xbf16>, vector<32x128xbf16>, vector<2x128xf32> -> vector<2x128xf32>
    %667 = arith.addf %664, %666 : vector<2x128xf32>
    %668 = vector.broadcast %16 : vector<1x128xf32> to vector<2x128xf32>
    %669 = arith.addf %667, %668 : vector<2x128xf32>
    %670 = vector.extract_strided_slice %669 {offsets = [0, 0], sizes = [2, 32], strides = [1, 1]} : vector<2x128xf32> to vector<2x32xf32>
    %671 = arith.negf %670 : vector<2x32xf32>
    %672 = math.exp %671 : vector<2x32xf32>
    %cst_238 = arith.constant 1.000000e+00 : f32
    %673 = vector.broadcast %cst_238 : f32 to vector<2x32xf32>
    %674 = arith.addf %673, %672 : vector<2x32xf32>
    %675 = arith.divf %673, %674 : vector<2x32xf32>
    %676 = vector.extract_strided_slice %669 {offsets = [0, 32], sizes = [2, 32], strides = [1, 1]} : vector<2x128xf32> to vector<2x32xf32>
    %677 = arith.negf %676 : vector<2x32xf32>
    %678 = math.exp %677 : vector<2x32xf32>
    %cst_239 = arith.constant 1.000000e+00 : f32
    %679 = vector.broadcast %cst_239 : f32 to vector<2x32xf32>
    %680 = arith.addf %679, %678 : vector<2x32xf32>
    %681 = arith.divf %679, %680 : vector<2x32xf32>
    %682 = vector.extract_strided_slice %669 {offsets = [0, 64], sizes = [2, 32], strides = [1, 1]} : vector<2x128xf32> to vector<2x32xf32>
    %683 = arith.negf %682 : vector<2x32xf32>
    %684 = math.exp %683 : vector<2x32xf32>
    %cst_240 = arith.constant 1.000000e+00 : f32
    %685 = vector.broadcast %cst_240 : f32 to vector<2x32xf32>
    %686 = arith.addf %685, %684 : vector<2x32xf32>
    %687 = arith.divf %685, %686 : vector<2x32xf32>
    %688 = vector.extract_strided_slice %669 {offsets = [0, 96], sizes = [2, 32], strides = [1, 1]} : vector<2x128xf32> to vector<2x32xf32>
    %689 = math.tanh %688 : vector<2x32xf32>
    %690 = arith.mulf %681, %663 : vector<2x32xf32>
    %691 = arith.mulf %675, %689 : vector<2x32xf32>
    %692 = arith.addf %690, %691 : vector<2x32xf32>
    %cst_241 = arith.constant dense<0.000000e+00> : vector<2xf32>
    %693 = vector.multi_reduction <add>, %692, %cst_241 [1] : vector<2x32xf32> to vector<2xf32>
    %694 = vector.shape_cast %693 : vector<2xf32> to vector<2x1xf32>
    %cst_242 = arith.constant 3.200000e+01 : f32
    %695 = vector.broadcast %cst_242 : f32 to vector<2x1xf32>
    %696 = arith.divf %694, %695 : vector<2x1xf32>
    %697 = vector.broadcast %696 : vector<2x1xf32> to vector<2x32xf32>
    %698 = arith.subf %692, %697 : vector<2x32xf32>
    %699 = arith.mulf %698, %698 : vector<2x32xf32>
    %cst_243 = arith.constant dense<0.000000e+00> : vector<2xf32>
    %700 = vector.multi_reduction <add>, %699, %cst_243 [1] : vector<2x32xf32> to vector<2xf32>
    %701 = vector.shape_cast %700 : vector<2xf32> to vector<2x1xf32>
    %cst_244 = arith.constant 3.200000e+01 : f32
    %702 = vector.broadcast %cst_244 : f32 to vector<2x1xf32>
    %703 = arith.divf %701, %702 : vector<2x1xf32>
    %704 = vector.broadcast %696 : vector<2x1xf32> to vector<2x32xf32>
    %705 = arith.subf %692, %704 : vector<2x32xf32>
    %cst_245 = arith.constant 9.99999974E-6 : f32
    %706 = vector.broadcast %cst_245 : f32 to vector<2x1xf32>
    %707 = arith.addf %703, %706 : vector<2x1xf32>
    %708 = math.rsqrt %707 : vector<2x1xf32>
    %709 = vector.broadcast %708 : vector<2x1xf32> to vector<2x32xf32>
    %710 = arith.mulf %705, %709 : vector<2x32xf32>
    %711 = vector.broadcast %4 : vector<1x32xf32> to vector<2x32xf32>
    %712 = arith.mulf %710, %711 : vector<2x32xf32>
    %713 = vector.broadcast %6 : vector<1x32xf32> to vector<2x32xf32>
    %714 = arith.addf %712, %713 : vector<2x32xf32>
    %715 = math.tanh %714 : vector<2x32xf32>
    %716 = arith.mulf %687, %715 : vector<2x32xf32>
    %cst_246 = arith.constant dense<0.000000e+00> : vector<2xf32>
    %717 = vector.multi_reduction <add>, %716, %cst_246 [1] : vector<2x32xf32> to vector<2xf32>
    %718 = vector.shape_cast %717 : vector<2xf32> to vector<2x1xf32>
    %cst_247 = arith.constant 3.200000e+01 : f32
    %719 = vector.broadcast %cst_247 : f32 to vector<2x1xf32>
    %720 = arith.divf %718, %719 : vector<2x1xf32>
    %721 = vector.broadcast %720 : vector<2x1xf32> to vector<2x32xf32>
    %722 = arith.subf %716, %721 : vector<2x32xf32>
    %723 = arith.mulf %722, %722 : vector<2x32xf32>
    %cst_248 = arith.constant dense<0.000000e+00> : vector<2xf32>
    %724 = vector.multi_reduction <add>, %723, %cst_248 [1] : vector<2x32xf32> to vector<2xf32>
    %725 = vector.shape_cast %724 : vector<2xf32> to vector<2x1xf32>
    %cst_249 = arith.constant 3.200000e+01 : f32
    %726 = vector.broadcast %cst_249 : f32 to vector<2x1xf32>
    %727 = arith.divf %725, %726 : vector<2x1xf32>
    %728 = vector.broadcast %720 : vector<2x1xf32> to vector<2x32xf32>
    %729 = arith.subf %716, %728 : vector<2x32xf32>
    %cst_250 = arith.constant 9.99999974E-6 : f32
    %730 = vector.broadcast %cst_250 : f32 to vector<2x1xf32>
    %731 = arith.addf %727, %730 : vector<2x1xf32>
    %732 = math.rsqrt %731 : vector<2x1xf32>
    %733 = vector.broadcast %732 : vector<2x1xf32> to vector<2x32xf32>
    %734 = arith.mulf %729, %733 : vector<2x32xf32>
    %735 = vector.broadcast %8 : vector<1x32xf32> to vector<2x32xf32>
    %736 = arith.mulf %734, %735 : vector<2x32xf32>
    %737 = vector.broadcast %10 : vector<1x32xf32> to vector<2x32xf32>
    %738 = arith.addf %736, %737 : vector<2x32xf32>
    %c0_251 = arith.constant 0 : index
    %c0_252 = arith.constant 0 : index
    %739 = vector.load %arg10[%c0_251, %c0_252] : memref<2x32xf32, #tpu.memory_space<vmem>>, vector<2x32xf32>
    tpu.vector_store %arg10[%c0_251, %c0_252], %738 {strides = array<i32>} : memref<2x32xf32, #tpu.memory_space<vmem>>, vector<2x32xf32>,
    %c0_253 = arith.constant 0 : index
    %c0_254 = arith.constant 0 : index
    %740 = vector.load %arg11[%c0_253, %c0_254] : memref<2x32xf32, #tpu.memory_space<vmem>>, vector<2x32xf32>
    tpu.vector_store %arg11[%c0_253, %c0_254], %714 {strides = array<i32>} : memref<2x32xf32, #tpu.memory_space<vmem>>, vector<2x32xf32>,
    %c0_255 = arith.constant 0 : index
    %741 = arith.index_cast %657 : i32 to index
    %c0_256 = arith.constant 0 : index
    %c0_257 = arith.constant 0 : index
    %742 = vector.load %arg7[%c0_255, %741, %c0_256, %c0_257] : memref<1x8x2x32xf32, #tpu.memory_space<vmem>>, vector<1x1x2x32xf32>
    %743 = vector.shape_cast %742 : vector<1x1x2x32xf32> to vector<2x32xf32>
    %744 = vector.shape_cast %738 : vector<2x32xf32> to vector<1x1x2x32xf32>
    tpu.vector_store %arg7[%c0_255, %741, %c0_256, %c0_257], %744 {strides = array<i32>} : memref<1x8x2x32xf32, #tpu.memory_space<vmem>>, vector<1x1x2x32xf32>,
    %c8_i32 = arith.constant 8 : i32
    %c0_i32_258 = arith.constant 0 : i32
    %745 = arith.cmpi eq, %arg1, %c0_i32_258 : i32
    %746 = arith.extui %745 : i1 to i32
    %c0_i32_259 = arith.constant 0 : i32
    %747 = arith.cmpi ne, %746, %c0_i32_259 : i32
    scf.if %747 {
      %c0_260 = arith.constant 0 : index
      %c0_261 = arith.constant 0 : index
      %748 = vector.load %arg10[%c0_260, %c0_261] : memref<2x32xf32, #tpu.memory_space<vmem>>, vector<2x32xf32>
      %c0_262 = arith.constant 0 : index
      %c0_263 = arith.constant 0 : index
      %c0_264 = arith.constant 0 : index
      %749 = vector.load %arg8[%c0_262, %c0_263, %c0_264] : memref<1x2x32xf32, #tpu.memory_space<vmem>>, vector<1x2x32xf32>
      %750 = vector.shape_cast %749 : vector<1x2x32xf32> to vector<2x32xf32>
      %751 = vector.shape_cast %748 : vector<2x32xf32> to vector<1x2x32xf32>
      tpu.vector_store %arg8[%c0_262, %c0_263, %c0_264], %751 {strides = array<i32>} : memref<1x2x32xf32, #tpu.memory_space<vmem>>, vector<1x2x32xf32>,
      %c0_265 = arith.constant 0 : index
      %c0_266 = arith.constant 0 : index
      %752 = vector.load %arg11[%c0_265, %c0_266] : memref<2x32xf32, #tpu.memory_space<vmem>>, vector<2x32xf32>
      %c0_267 = arith.constant 0 : index
      %c0_268 = arith.constant 0 : index
      %c0_269 = arith.constant 0 : index
      %753 = vector.load %arg9[%c0_267, %c0_268, %c0_269] : memref<1x2x32xf32, #tpu.memory_space<vmem>>, vector<1x2x32xf32>
      %754 = vector.shape_cast %753 : vector<1x2x32xf32> to vector<2x32xf32>
      %755 = vector.shape_cast %752 : vector<2x32xf32> to vector<1x2x32xf32>
      tpu.vector_store %arg9[%c0_267, %c0_268, %c0_269], %755 {strides = array<i32>} : memref<1x2x32xf32, #tpu.memory_space<vmem>>, vector<1x2x32xf32>,
    } else {
    }
    return
  }
  func.func @transform_0(%arg0: i32, %arg1: i32) -> (i32, i32, i32) {
    %c2_i32 = arith.constant 2 : i32
    %0 = arith.muli %c2_i32, %arg1 : i32
    %c0_i32 = arith.constant 0 : i32
    %1 = arith.subi %c0_i32, %0 : i32
    %2 = arith.muli %arg0, %1 : i32
    %3 = arith.addi %arg1, %2 : i32
    %c0_i32_0 = arith.constant 0 : i32
    %c0_i32_1 = arith.constant 0 : i32
    %c0_i32_2 = arith.constant 0 : i32
    return %3, %c0_i32_0, %c0_i32_1 : i32, i32, i32
  }
  func.func @transform_1(%arg0: i32, %arg1: i32) -> (i32, i32, i32) {
    %c0_i32 = arith.constant 0 : i32
    %c0_i32_0 = arith.constant 0 : i32
    %c0_i32_1 = arith.constant 0 : i32
    return %arg0, %c0_i32, %c0_i32_0 : i32, i32, i32
  }
  func.func @transform_2(%arg0: i32, %arg1: i32) -> (i32, i32, i32) {
    %c0_i32 = arith.constant 0 : i32
    %c0_i32_0 = arith.constant 0 : i32
    %c0_i32_1 = arith.constant 0 : i32
    return %arg0, %c0_i32, %c0_i32_0 : i32, i32, i32
  }
  func.func @transform_3(%arg0: i32, %arg1: i32) -> (i32, i32, i32) {
    %c0_i32 = arith.constant 0 : i32
    %c0_i32_0 = arith.constant 0 : i32
    %c0_i32_1 = arith.constant 0 : i32
    return %arg0, %c0_i32, %c0_i32_0 : i32, i32, i32
  }
  func.func @transform_4(%arg0: i32, %arg1: i32) -> (i32, i32, i32) {
    %c0_i32 = arith.constant 0 : i32
    %c0_i32_0 = arith.constant 0 : i32
    %c0_i32_1 = arith.constant 0 : i32
    return %arg0, %c0_i32, %c0_i32_0 : i32, i32, i32
  }
  func.func @transform_5(%arg0: i32, %arg1: i32) -> (i32, i32, i32, i32) {
    %c2_i32 = arith.constant 2 : i32
    %0 = arith.muli %c2_i32, %arg1 : i32
    %c0_i32 = arith.constant 0 : i32
    %1 = arith.subi %c0_i32, %0 : i32
    %2 = arith.muli %arg0, %1 : i32
    %3 = arith.addi %arg1, %2 : i32
    %c0_i32_0 = arith.constant 0 : i32
    %c0_i32_1 = arith.constant 0 : i32
    %c0_i32_2 = arith.constant 0 : i32
    return %arg0, %3, %c0_i32_0, %c0_i32_1 : i32, i32, i32, i32
  }
  func.func @transform_6(%arg0: i32, %arg1: i32) -> (i32, i32, i32) {
    %c0_i32 = arith.constant 0 : i32
    %c0_i32_0 = arith.constant 0 : i32
    %c0_i32_1 = arith.constant 0 : i32
    return %arg0, %c0_i32, %c0_i32_0 : i32, i32, i32
  }
  func.func @transform_7(%arg0: i32, %arg1: i32) -> (i32, i32, i32) {
    %c0_i32 = arith.constant 0 : i32
    %c0_i32_0 = arith.constant 0 : i32
    %c0_i32_1 = arith.constant 0 : i32
    return %arg0, %c0_i32, %c0_i32_0 : i32, i32, i32
  }
}

</mosaic_0001>

<llo_original>
// kernel: bilstm_forward.1
$region0: #{bilstm_forward.1}
  #allocation0 [shape = 'u32[]', space=smem, size = 0x4, offset = 0x4, fixed_abs, tag = 'smem constant byte address 0x4 - core index']
  #allocation1 [shape = 'u32[144,128]{1,0:T(1,128)}', space=vmem, size = 0x12000, scoped, tag = 'internal scratch']
  #allocation2 [shape = 'f32[2,32]{1,0:T(2,128)}', space=vmem, size = 0x400, scoped, tag = 'scratch operand']
  #allocation3 [shape = 'f32[2,32]{1,0:T(2,128)}', space=vmem, size = 0x400, scoped, tag = 'scratch operand']
  %s0 = inlined_call_operand.vmem [shape: f32[8,2,16], index: 0, kind: input, shape index: {}]
  %s1 = inlined_call_operand.vmem [shape: bf16[2,16,128], index: 1, kind: input, shape index: {}]
  %s2 = inlined_call_operand.vmem [shape: bf16[2,32,128], index: 2, kind: input, shape index: {}]
  %s3 = inlined_call_operand.vmem [shape: f32[2,1,128], index: 3, kind: input, shape index: {}]
  %s4 = inlined_call_operand.vmem [shape: f32[2,6,32], index: 4, kind: input, shape index: {}]
  %s5 = inlined_call_operand.vmem [shape: f32[2,8,2,32], index: 5, kind: output, shape index: {0}]
  %s6 = inlined_call_operand.vmem [shape: f32[2,2,32], index: 6, kind: output, shape index: {1}]
  %s7 = inlined_call_operand.vmem [shape: f32[2,2,32], index: 7, kind: output, shape index: {2}]
  %8 = xla_tuple %s5, %s6, %s7
  %s9 = sld [smem:[#allocation0]]
  $region77: #{bilstm_forward.1} parent=0
    _
  %s11 = ssub.s32 1, %s9
  %s12 = scalar_select 0, %s11, %s9
  loop: start=0, step=1, limit=4
  $region2: #{bilstm_forward.1} parent=0 // loop_pre_header
    _
  $region3: #{bilstm_forward.1} parent=0 // loop_header
    %s14 = sphi 0, %s18
    %p15 = scmp.ge.s32.totalorder %s14, 4
    %s21 = sphi 0, %s33
    %s22 = sphi 0, %s29
    %s23 = sphi 0, %s21
    %s24 = sphi 0, %s22
    %s25 = sphi 0, %s23
    %s26 = sphi 0, %s24
    %s44 = sphi 0, %s46
    %s47 = sphi 0, %s44
    %s48 = sphi 0, %s47
    %s64 = sphi 0, %s48
    %s70 = sphi 0, %s72
    %s73 = sphi 0, %s70
    %s74 = sphi 0, %s73
    %s90 = sphi 0, %s74
    %s96 = sphi 0, %s98
    %s99 = sphi 0, %s96
    %s100 = sphi 0, %s99
    %s116 = sphi 0, %s100
    %s122 = sphi 0, %s124
    %s125 = sphi 0, %s122
    %s126 = sphi 0, %s125
    %s142 = sphi 0, %s126
    %s148 = sphi 0, %s150
    %s151 = sphi 0, %s148
    %s152 = sphi 0, %s151
    %s168 = sphi 0, %s152
    %s184 = sphi 0, %s186
    %s187 = sphi 0, %s184
    %s188 = sphi 0, %s187
    %s204 = sphi 0, %s188
    %s210 = sphi 0, %s212
    %s213 = sphi 0, %s210
    %s214 = sphi 0, %s213
    %s230 = sphi 0, %s214
    %s236 = sphi 0, %s238
    %s239 = sphi 0, %s236
    %s240 = sphi 0, %s239
    %s256 = sphi 0, %s240
  $region4: #{bilstm_forward.1} parent=0 // loop_header_branch
    %17 = sbr.rel (%p15) target = $region8
  $region5: #{bilstm_forward.1} parent=0 // loop_body
    %s19 = ssub.s32 %s14, 1
    %s20 = ssub.s32 %s14, 2
    %s27 = sadd.s32 1, %s22
    %p28 = scmp.ge.s32.totalorder %s27, 1
    %s29 = scalar_select %p28, 0, %s27
    %s30 = sadd.s32 1, %s21
    %s31 = scalar_select %p28, %s30, %s21
    %p32 = scmp.ge.s32.totalorder %s31, 2
    %s33 = scalar_select %p32, 0, %s31
    %s34 = smul.u32 %s22, 2
    %s35 = ssub.s32 0, %s34
    %s36 = smul.u32 %s21, %s35
    %s37 = sadd.s32 %s22, %s36
    %s38 = smul.u32 %s29, 2
    %s39 = ssub.s32 0, %s38
    %s40 = smul.u32 %s33, %s39
    %s41 = sadd.s32 %s29, %s40
    %s42 = ssub.s32 %s37, %s41
    %p43 = scmp.eq.s32.totalorder %s42, 0
    %s45 = sadd.s32 %s44, 1
    %s46 = scalar_select %p43, %s44, %s45
    %p49 = pneg %p43
    %p50 = scmp.eq.s32.totalorder %s14, 1
    %p51 = por %p49, %p50
    %p52 = scmp.ne.s32.totalorder %s44, %s47
    %p53 = scmp.eq.s32.totalorder %s14, 0
    %p54 = por %p52, %p53
    %p55 = scmp.ne.s32.totalorder %s44, %s47
    %p56 = scmp.eq.s32.totalorder %s19, 1
    %p57 = por %p55, %p56
    %p58 = scmp.ne.s32.totalorder %s47, %s48
    %p59 = scmp.eq.s32.totalorder %s19, 0
    %p60 = por %p58, %p59
    %p61 = scmp.ne.s32.totalorder %s47, %s48
    %p62 = scmp.eq.s32.totalorder %s20, 1
    %p63 = por %p61, %p62
    %p65 = scmp.ne.s32.totalorder %s48, %s64
    %p66 = scmp.eq.s32.totalorder %s20, 0
    %p67 = por %p65, %p66
    %s68 = ssub.s32 %s21, %s33
    %p69 = scmp.eq.s32.totalorder %s68, 0
    %s71 = sadd.s32 %s70, 1
    %s72 = scalar_select %p69, %s70, %s71
    %p75 = pneg %p69
    %p76 = scmp.eq.s32.totalorder %s14, 1
    %p77 = por %p75, %p76
    %p78 = scmp.ne.s32.totalorder %s70, %s73
    %p79 = scmp.eq.s32.totalorder %s14, 0
    %p80 = por %p78, %p79
    %p81 = scmp.ne.s32.totalorder %s70, %s73
    %p82 = scmp.eq.s32.totalorder %s19, 1
    %p83 = por %p81, %p82
    %p84 = scmp.ne.s32.totalorder %s73, %s74
    %p85 = scmp.eq.s32.totalorder %s19, 0
    %p86 = por %p84, %p85
    %p87 = scmp.ne.s32.totalorder %s73, %s74
    %p88 = scmp.eq.s32.totalorder %s20, 1
    %p89 = por %p87, %p88
    %p91 = scmp.ne.s32.totalorder %s74, %s90
    %p92 = scmp.eq.s32.totalorder %s20, 0
    %p93 = por %p91, %p92
    %s94 = ssub.s32 %s21, %s33
    %p95 = scmp.eq.s32.totalorder %s94, 0
    %s97 = sadd.s32 %s96, 1
    %s98 = scalar_select %p95, %s96, %s97
    %p101 = pneg %p95
    %p102 = scmp.eq.s32.totalorder %s14, 1
    %p103 = por %p101, %p102
    %p104 = scmp.ne.s32.totalorder %s96, %s99
    %p105 = scmp.eq.s32.totalorder %s14, 0
    %p106 = por %p104, %p105
    %p107 = scmp.ne.s32.totalorder %s96, %s99
    %p108 = scmp.eq.s32.totalorder %s19, 1
    %p109 = por %p107, %p108
    %p110 = scmp.ne.s32.totalorder %s99, %s100
    %p111 = scmp.eq.s32.totalorder %s19, 0
    %p112 = por %p110, %p111
    %p113 = scmp.ne.s32.totalorder %s99, %s100
    %p114 = scmp.eq.s32.totalorder %s20, 1
    %p115 = por %p113, %p114
    %p117 = scmp.ne.s32.totalorder %s100, %s116
    %p118 = scmp.eq.s32.totalorder %s20, 0
    %p119 = por %p117, %p118
    %s120 = ssub.s32 %s21, %s33
    %p121 = scmp.eq.s32.totalorder %s120, 0
    %s123 = sadd.s32 %s122, 1
    %s124 = scalar_select %p121, %s122, %s123
    %p127 = pneg %p121
    %p128 = scmp.eq.s32.totalorder %s14, 1
    %p129 = por %p127, %p128
    %p130 = scmp.ne.s32.totalorder %s122, %s125
    %p131 = scmp.eq.s32.totalorder %s14, 0
    %p132 = por %p130, %p131
    %p133 = scmp.ne.s32.totalorder %s122, %s125
    %p134 = scmp.eq.s32.totalorder %s19, 1
    %p135 = por %p133, %p134
    %p136 = scmp.ne.s32.totalorder %s125, %s126
    %p137 = scmp.eq.s32.totalorder %s19, 0
    %p138 = por %p136, %p137
    %p139 = scmp.ne.s32.totalorder %s125, %s126
    %p140 = scmp.eq.s32.totalorder %s20, 1
    %p141 = por %p139, %p140
    %p143 = scmp.ne.s32.totalorder %s126, %s142
    %p144 = scmp.eq.s32.totalorder %s20, 0
    %p145 = por %p143, %p144
    %s146 = ssub.s32 %s21, %s33
    %p147 = scmp.eq.s32.totalorder %s146, 0
    %s149 = sadd.s32 %s148, 1
    %s150 = scalar_select %p147, %s148, %s149
    %p153 = pneg %p147
    %p154 = scmp.eq.s32.totalorder %s14, 1
    %p155 = por %p153, %p154
    %p156 = scmp.ne.s32.totalorder %s148, %s151
    %p157 = scmp.eq.s32.totalorder %s14, 0
    %p158 = por %p156, %p157
    %p159 = scmp.ne.s32.totalorder %s148, %s151
    %p160 = scmp.eq.s32.totalorder %s19, 1
    %p161 = por %p159, %p160
    %p162 = scmp.ne.s32.totalorder %s151, %s152
    %p163 = scmp.eq.s32.totalorder %s19, 0
    %p164 = por %p162, %p163
    %p165 = scmp.ne.s32.totalorder %s151, %s152
    %p166 = scmp.eq.s32.totalorder %s20, 1
    %p167 = por %p165, %p166
    %p169 = scmp.ne.s32.totalorder %s152, %s168
    %p170 = scmp.eq.s32.totalorder %s20, 0
    %p171 = por %p169, %p170
    %s172 = smul.u32 %s22, 2
    %s173 = ssub.s32 0, %s172
    %s174 = smul.u32 %s21, %s173
    %s175 = sadd.s32 %s22, %s174
    %s176 = smul.u32 %s29, 2
    %s177 = ssub.s32 0, %s176
    %s178 = smul.u32 %s33, %s177
    %s179 = sadd.s32 %s29, %s178
    %s180 = ssub.s32 %s21, %s33
    %s181 = ssub.s32 %s175, %s179
    %s182 = sor.u32 %s180, %s181
    %p183 = scmp.eq.s32.totalorder %s182, 0
    %s185 = sadd.s32 %s184, 1
    %s186 = scalar_select %p183, %s184, %s185
    %p189 = pneg %p183
    %p190 = scmp.eq.s32.totalorder %s14, 1
    %p191 = por %p189, %p190
    %p192 = scmp.ne.s32.totalorder %s184, %s187
    %p193 = scmp.eq.s32.totalorder %s14, 0
    %p194 = por %p192, %p193
    %p195 = scmp.ne.s32.totalorder %s184, %s187
    %p196 = scmp.eq.s32.totalorder %s19, 1
    %p197 = por %p195, %p196
    %p198 = scmp.ne.s32.totalorder %s187, %s188
    %p199 = scmp.eq.s32.totalorder %s19, 0
    %p200 = por %p198, %p199
    %p201 = scmp.ne.s32.totalorder %s187, %s188
    %p202 = scmp.eq.s32.totalorder %s20, 1
    %p203 = por %p201, %p202
    %p205 = scmp.ne.s32.totalorder %s188, %s204
    %p206 = scmp.eq.s32.totalorder %s20, 0
    %p207 = por %p205, %p206
    %s208 = ssub.s32 %s21, %s33
    %p209 = scmp.eq.s32.totalorder %s208, 0
    %s211 = sadd.s32 %s210, 1
    %s212 = scalar_select %p209, %s210, %s211
    %p215 = pneg %p209
    %p216 = scmp.eq.s32.totalorder %s14, 1
    %p217 = por %p215, %p216
    %p218 = scmp.ne.s32.totalorder %s210, %s213
    %p219 = scmp.eq.s32.totalorder %s14, 0
    %p220 = por %p218, %p219
    %p221 = scmp.ne.s32.totalorder %s210, %s213
    %p222 = scmp.eq.s32.totalorder %s19, 1
    %p223 = por %p221, %p222
    %p224 = scmp.ne.s32.totalorder %s213, %s214
    %p225 = scmp.eq.s32.totalorder %s19, 0
    %p226 = por %p224, %p225
    %p227 = scmp.ne.s32.totalorder %s213, %s214
    %p228 = scmp.eq.s32.totalorder %s20, 1
    %p229 = por %p227, %p228
    %p231 = scmp.ne.s32.totalorder %s214, %s230
    %p232 = scmp.eq.s32.totalorder %s20, 0
    %p233 = por %p231, %p232
    %s234 = ssub.s32 %s21, %s33
    %p235 = scmp.eq.s32.totalorder %s234, 0
    %s237 = sadd.s32 %s236, 1
    %s238 = scalar_select %p235, %s236, %s237
    %p241 = pneg %p235
    %p242 = scmp.eq.s32.totalorder %s14, 1
    %p243 = por %p241, %p242
    %p244 = scmp.ne.s32.totalorder %s236, %s239
    %p245 = scmp.eq.s32.totalorder %s14, 0
    %p246 = por %p244, %p245
    %p247 = scmp.ne.s32.totalorder %s236, %s239
    %p248 = scmp.eq.s32.totalorder %s19, 1
    %p249 = por %p247, %p248
    %p250 = scmp.ne.s32.totalorder %s239, %s240
    %p251 = scmp.eq.s32.totalorder %s19, 0
    %p252 = por %p250, %p251
    %p253 = scmp.ne.s32.totalorder %s239, %s240
    %p254 = scmp.eq.s32.totalorder %s20, 1
    %p255 = por %p253, %p254
    %p257 = scmp.ne.s32.totalorder %s240, %s256
    %p258 = scmp.eq.s32.totalorder %s20, 0
    %p259 = por %p257, %p258
    %p260 = scmp.le.s32.totalorder 1, %s14
    %p261 = scmp.lt.s32.totalorder %s14, 3
    %p262 = pnand %p260, %p261
    %p263 = pneg %p262
    // Predicated region
    $region9: #{bilstm_forward.1} parent=5 // pred_check
      _
    $region10: #{bilstm_forward.1} parent=5 // pred_check_branch
      %265 = sbr.rel (%p262) target = $region12
    $region11: #{bilstm_forward.1} parent=5 // pred_region
      %s266 = ssub.s32 %s14, 1
    $region12: #{bilstm_forward.1} parent=5 // pred_fallthru
      _
    %p267 = scmp.lt.s32.totalorder %s14, 2
    // Predicated region
    $region13: #{bilstm_forward.1} parent=5 // pred_check
      %p268 = pneg %p267
    $region14: #{bilstm_forward.1} parent=5 // pred_check_branch
      %270 = sbr.rel (%p268) target = $region16
    $region15: #{bilstm_forward.1} parent=5 // pred_region
      // Predicated region
      $region17: #{bilstm_forward.1} parent=15 // pred_check
        %p271 = pneg %p54
      $region18: #{bilstm_forward.1} parent=15 // pred_check_branch
        %273 = sbr.rel (%p271) target = $region20
      $region19: #{bilstm_forward.1} parent=15 // pred_region
        %s274 = smul.u32 %s22, 2
        %s275 = ssub.s32 0, %s274
        %s276 = smul.u32 %s21, %s275
        %s277 = sadd.s32 %s22, %s276
        %s278 = smul.u32 8, %s277
        %p279 = scmp.lt.s32.totalorder %s278, 7
        %s280 = scalar_select %p279, %s278, 7
        %s281 = smul.addr %s280, 2
        %s282 = scalar_lea.vmem %s0, %s281
        %s283 = smul.u32 %s22, 2
        %s284 = ssub.s32 0, %s283
        %s285 = smul.u32 %s21, %s284
        %s286 = sadd.s32 %s22, %s285
        %s287 = smul.u32 8, %s286
      $region20: #{bilstm_forward.1} parent=15 // pred_fallthru
        _
      // Predicated region
      $region21: #{bilstm_forward.1} parent=15 // pred_check
        %p288 = pneg %p80
      $region22: #{bilstm_forward.1} parent=15 // pred_check_branch
        %290 = sbr.rel (%p288) target = $region24
      $region23: #{bilstm_forward.1} parent=15 // pred_region
        %p291 = scmp.lt.s32.totalorder %s21, 1
        %s292 = scalar_select %p291, %s21, 1
        %s293 = smul.addr %s292, 2
        %s294 = smul.addr %s293, 4
        %s295 = scalar_lea.vmem %s1, %s294
      $region24: #{bilstm_forward.1} parent=15 // pred_fallthru
        _
      // Predicated region
      $region25: #{bilstm_forward.1} parent=15 // pred_check
        %p296 = pneg %p106
      $region26: #{bilstm_forward.1} parent=15 // pred_check_branch
        %298 = sbr.rel (%p296) target = $region28
      $region27: #{bilstm_forward.1} parent=15 // pred_region
        %p299 = scmp.lt.s32.totalorder %s21, 1
        %s300 = scalar_select %p299, %s21, 1
        %s301 = smul.addr %s300, 4
        %s302 = smul.addr %s301, 4
        %s303 = scalar_lea.vmem %s2, %s302
      $region28: #{bilstm_forward.1} parent=15 // pred_fallthru
        _
      // Predicated region
      $region29: #{bilstm_forward.1} parent=15 // pred_check
        %p304 = pneg %p132
      $region30: #{bilstm_forward.1} parent=15 // pred_check_branch
        %306 = sbr.rel (%p304) target = $region32
      $region31: #{bilstm_forward.1} parent=15 // pred_region
        %p307 = scmp.lt.s32.totalorder %s21, 1
        %s308 = scalar_select %p307, %s21, 1
        %s309 = scalar_lea.vmem %s3, %s308
      $region32: #{bilstm_forward.1} parent=15 // pred_fallthru
        _
      // Predicated region
      $region33: #{bilstm_forward.1} parent=15 // pred_check
        %p310 = pneg %p158
      $region34: #{bilstm_forward.1} parent=15 // pred_check_branch
        %312 = sbr.rel (%p310) target = $region36
      $region35: #{bilstm_forward.1} parent=15 // pred_region
        %p313 = scmp.lt.s32.totalorder %s21, 1
        %s314 = scalar_select %p313, %s21, 1
        %s315 = smul.addr %s314, 8
        %s316 = scalar_lea.vmem %s4, %s315
      $region36: #{bilstm_forward.1} parent=15 // pred_fallthru
        _
    $region16: #{bilstm_forward.1} parent=5 // pred_fallthru
      _
    %p317 = scmp.le.s32.totalorder 1, %s14
    %p318 = scmp.lt.s32.totalorder %s14, 3
    %p319 = pnand %p317, %p318
    %p320 = pneg %p319
    // Predicated region
    $region37: #{bilstm_forward.1} parent=5 // pred_check
      _
    $region38: #{bilstm_forward.1} parent=5 // pred_check_branch
      %322 = sbr.rel (%p319) target = $region40
    $region39: #{bilstm_forward.1} parent=5 // pred_region
      %s323 = ssub.s32 %s14, 1
      %s324 = smul.u32 %s24, 2
      %s325 = ssub.s32 0, %s324
      %s326 = smul.u32 %s23, %s325
      %s327 = sadd.s32 %s24, %s326
      %s328 = smul.u32 8, %s327
      %p329 = scmp.lt.s32.totalorder %s328, 7
      %s330 = scalar_select %p329, %s328, 7
      %s331 = smul.addr %s330, 2
      %s332 = scalar_lea.vmem %s0, %s331
      %p333 = pneg %p60
      %p334 = pneg %p57
      %p335 = scmp.lt.s32.totalorder %s23, 1
      %s336 = scalar_select %p335, %s23, 1
      %s337 = smul.addr %s336, 2
      %s338 = smul.addr %s337, 4
      %s339 = scalar_lea.vmem %s1, %s338
      %p340 = pneg %p86
      %p341 = pneg %p83
      %p342 = scmp.lt.s32.totalorder %s23, 1
      %s343 = scalar_select %p342, %s23, 1
      %s344 = smul.addr %s343, 4
      %s345 = smul.addr %s344, 4
      %s346 = scalar_lea.vmem %s2, %s345
      %p347 = pneg %p112
      %p348 = pneg %p109
      %p349 = scmp.lt.s32.totalorder %s23, 1
      %s350 = scalar_select %p349, %s23, 1
      %s351 = scalar_lea.vmem %s3, %s350
      %p352 = pneg %p138
      %p353 = pneg %p135
      %p354 = scmp.lt.s32.totalorder %s23, 1
      %s355 = scalar_select %p354, %s23, 1
      %s356 = smul.addr %s355, 8
      %s357 = scalar_lea.vmem %s4, %s356
      %p358 = pneg %p164
      %p359 = pneg %p161
      %p360 = pneg %p200
      %p361 = pneg %p197
      %s362 = smul.u32 %s24, 2
      %s363 = ssub.s32 0, %s362
      %s364 = smul.u32 %s23, %s363
      %s365 = sadd.s32 %s24, %s364
      %s366 = smul.u32 8, %s365
      %p367 = scmp.lt.s32.totalorder %s23, 1
      %s368 = scalar_select %p367, %s23, 1
      %p369 = scmp.lt.s32.totalorder %s366, 7
      %s370 = scalar_select %p369, %s366, 7
      %s371 = smul.addr %s368, 8
      %s372 = sadd.s32 %s370, %s371
      %s373 = smul.addr %s372, 2
      %s374 = scalar_lea.vmem %s5, %s373
      %p375 = pneg %p226
      %p376 = pneg %p223
      %p377 = scmp.lt.s32.totalorder %s23, 1
      %s378 = scalar_select %p377, %s23, 1
      %s379 = smul.addr %s378, 2
      %s380 = scalar_lea.vmem %s6, %s379
      %p381 = pneg %p252
      %p382 = pneg %p249
      %p383 = scmp.lt.s32.totalorder %s23, 1
      %s384 = scalar_select %p383, %s23, 1
      %s385 = smul.addr %s384, 2
      %s386 = scalar_lea.vmem %s7, %s385
      %s387 = smul.u32 %s24, 2
      %s388 = ssub.s32 0, %s387
      %s389 = smul.u32 %s23, %s388
      %s390 = sadd.s32 %s24, %s389
      %s391 = smul.u32 8, %s390
      %p392 = scmp.lt.s32.totalorder %s391, 7
      %s393 = scalar_select %p392, %s391, 7
      %s394 = smul.addr %s393, 2
      %s395 = scalar_lea.vmem %s0, %s394
      %s396 = smul.u32 %s24, 2
      %s397 = ssub.s32 0, %s396
      %s398 = smul.u32 %s23, %s397
      %s399 = sadd.s32 %s24, %s398
      %s400 = smul.u32 8, %s399
      %p401 = scmp.lt.s32.totalorder %s23, 1
      %s402 = scalar_select %p401, %s23, 1
      %s403 = smul.addr %s402, 2
      %s404 = smul.addr %s403, 4
      %s405 = scalar_lea.vmem %s1, %s404
      %p406 = scmp.lt.s32.totalorder %s23, 1
      %s407 = scalar_select %p406, %s23, 1
      %s408 = smul.addr %s407, 4
      %s409 = smul.addr %s408, 4
      %s410 = scalar_lea.vmem %s2, %s409
      %p411 = scmp.lt.s32.totalorder %s23, 1
      %s412 = scalar_select %p411, %s23, 1
      %s413 = scalar_lea.vmem %s3, %s412
      %p414 = scmp.lt.s32.totalorder %s23, 1
      %s415 = scalar_select %p414, %s23, 1
      %s416 = smul.addr %s415, 8
      %s417 = scalar_lea.vmem %s4, %s416
      %s418 = smul.u32 %s24, 2
      %s419 = ssub.s32 0, %s418
      %s420 = smul.u32 %s23, %s419
      %s421 = sadd.s32 %s24, %s420
      %s422 = smul.u32 8, %s421
      %p423 = scmp.lt.s32.totalorder %s23, 1
      %s424 = scalar_select %p423, %s23, 1
      %p425 = scmp.lt.s32.totalorder %s422, 7
      %s426 = scalar_select %p425, %s422, 7
      %s427 = smul.addr %s424, 8
      %s428 = sadd.s32 %s426, %s427
      %s429 = smul.addr %s428, 2
      %s430 = scalar_lea.vmem %s5, %s429
      %s431 = smul.u32 %s24, 2
      %s432 = ssub.s32 0, %s431
      %s433 = smul.u32 %s23, %s432
      %s434 = sadd.s32 %s24, %s433
      %s435 = smul.u32 8, %s434
      %p436 = scmp.lt.s32.totalorder %s23, 1
      %s437 = scalar_select %p436, %s23, 1
      %s438 = smul.addr %s437, 2
      %s439 = scalar_lea.vmem %s6, %s438
      %p440 = scmp.lt.s32.totalorder %s23, 1
      %s441 = scalar_select %p440, %s23, 1
      %s442 = smul.addr %s441, 2
      %s443 = scalar_lea.vmem %s7, %s442
      %p445 = scmp.eq.s32.totalorder %s24, 0
      // Predicated region
      $region41: #{bilstm_forward.1} parent=39 // pred_check
        %p446 = pneg %p445
      $region42: #{bilstm_forward.1} parent=39 // pred_check_branch
        %448 = sbr.rel (%p446) target = $region44
      $region43: #{bilstm_forward.1} parent=39 // pred_region
        %v449 = vld [vmem:[%s417 + $0x4] sm:$0x1]
        %v450 = vlaneseq
        %v451 = vshrl.u32 %v450, 7
        %v452 = vsub.s32 0, %v451
        %v453 = vrot.slane %v449, %v452
        %vm454 = vcmask 254976
        %455 = vst.msk [vmem:[#allocation2] sm:$0x3] %vm454, %v453
        %v456 = vld [vmem:[%s417 + $0x5] sm:$0x1]
        %v457 = vlaneseq
        %v458 = vshrl.u32 %v457, 7
        %v459 = vsub.s32 0, %v458
        %v460 = vrot.slane %v456, %v459
        %461 = vst.msk [vmem:[#allocation3] sm:$0x3] %vm454, %v460
      $region44: #{bilstm_forward.1} parent=39 // pred_fallthru
        _
      %v462 = vld [vmem:[%s417] sm:$0x1]
      %v463 = vld [vmem:[%s417 + $0x1] sm:$0x1]
      %v464 = vld [vmem:[%s417 + $0x2] sm:$0x1]
      %v465 = vld [vmem:[%s417 + $0x3] sm:$0x1]
      %v466 = vld [vmem:[%s405] sm:$0xf]
      %v467 = vld [vmem:[%s405 + $0x4] sm:$0xf]
      %v468 = vld [vmem:[%s410] sm:$0xf]
      %v469 = vld [vmem:[%s410 + $0x4] sm:$0xf]
      %v470 = vld [vmem:[%s410 + $0x8] sm:$0xf]
      %v471 = vld [vmem:[%s410 + $0xc] sm:$0xf]
      %v472 = vld [vmem:[%s413] sm:$0x1]
      %s473 = smul.u32 %s23, 7
      %s474 = smul.u32 %s473, 2
      %s475 = scalar_lea.vmem %s395, %s474
      %v476 = vld [vmem:[%s475] sm:$0x3]
      %v477 = vpack.c.bf16 %v476, %v476
      %v478 = vld [vmem:[#allocation2] sm:$0x3]
      %v479 = vld [vmem:[#allocation3] sm:$0x3]
      %v480 = vpack.c.bf16 %v478, %v478
      %v485 = vunpack.c.l.b16 %v468
      %v486 = vunpack.c.l.b16 %v469
      %v487 = vunpack.c.l.b16 %v470
      %v488 = vunpack.c.l.b16 %v471
      %v489 = vpack.c.b16 %v486, %v485
      %v490 = vpack.c.b16 %v488, %v487
      %vm493 = vcmask 261120
      %v495 = vsel %vm493, %v480, 0
      %497 = vmatprep.subr.bf16.mxu0 0
      %498 = vmatpush1.bf16.msra.mxu0 %v489
      %499 = vmatprep.subr.bf16.mxu0 0
      %500 = vmatpush1.bf16.msra.mxu0 %v490
      %501 = vmatprep.subr.bf16.mxu0 0
      %502 = vmatpush1.bf16.msra.mxu0 0
      %503 = vmatprep.subr.bf16.mxu0 0
      %504 = vmatpush1.bf16.msra.mxu0 0
      %505 = vmatprep.subr.bf16.mxu0 0
      %506 = vmatpush1.bf16.msra.mxu0 0
      %507 = vmatprep.subr.bf16.mxu0 0
      %508 = vmatpush1.bf16.msra.mxu0 0
      %509 = vmatprep.subr.bf16.mxu0 0
      %510 = vmatpush1.bf16.msra.mxu0 0
      %511 = vmatprep.subr.bf16.mxu0 0
      %512 = vmatpush1.bf16.msra.mxu0 0
      %513 = vmatprep.subr.bf16.mxu0 0
      %514 = vmatpush1.bf16.msra.mxu0 0
      %515 = vmatprep.subr.bf16.mxu0 0
      %516 = vmatpush1.bf16.msra.mxu0 0
      %517 = vmatprep.subr.bf16.mxu0 0
      %518 = vmatpush1.bf16.msra.mxu0 0
      %519 = vmatprep.subr.bf16.mxu0 0
      %520 = vmatpush1.bf16.msra.mxu0 0
      %521 = vmatprep.subr.bf16.mxu0 0
      %522 = vmatpush1.bf16.msra.mxu0 0
      %523 = vmatprep.subr.bf16.mxu0 0
      %524 = vmatpush1.bf16.msra.mxu0 0
      %525 = vmatprep.subr.bf16.mxu0 0
      %526 = vmatpush1.bf16.msra.mxu0 0
      %527 = vmatprep.subr.bf16.mxu0 0
      %528 = vmatpush1.bf16.msra.mxu0 0
      %529 = vmatprep.mubr.bf16.mxu0 0
      %530 = vmatmul.mubr.bf16.gmra.mrb[0].mxu0 %v495
      %v531 = vpop.f32.mrb[0].mxu0
      %v532 = vadd.f32 0.0, %v531
      %v533 = vpop.f32.mrb[0].mxu0
      %v534 = vpop.f32.mrb[0].mxu0
      %v535 = vpop.f32.mrb[0].mxu0
      %536 = vdwg.mxu0
      %v539 = vunpack.c.l.b16 %v466
      %v540 = vunpack.c.l.b16 %v467
      %v541 = vpack.c.b16 %v540, %v539
      %vm543 = vcmask 130048
      %v545 = vsel %vm543, %v477, 0
      %547 = vmatprep.subr.bf16.mxu0 0
      %548 = vmatpush1.bf16.msra.mxu0 %v541
      %549 = vmatprep.subr.bf16.mxu0 0
      %550 = vmatpush1.bf16.msra.mxu0 0
      %551 = vmatprep.subr.bf16.mxu0 0
      %552 = vmatpush1.bf16.msra.mxu0 0
      %553 = vmatprep.subr.bf16.mxu0 0
      %554 = vmatpush1.bf16.msra.mxu0 0
      %555 = vmatprep.subr.bf16.mxu0 0
      %556 = vmatpush1.bf16.msra.mxu0 0
      %557 = vmatprep.subr.bf16.mxu0 0
      %558 = vmatpush1.bf16.msra.mxu0 0
      %559 = vmatprep.subr.bf16.mxu0 0
      %560 = vmatpush1.bf16.msra.mxu0 0
      %561 = vmatprep.subr.bf16.mxu0 0
      %562 = vmatpush1.bf16.msra.mxu0 0
      %563 = vmatprep.subr.bf16.mxu0 0
      %564 = vmatpush1.bf16.msra.mxu0 0
      %565 = vmatprep.subr.bf16.mxu0 0
      %566 = vmatpush1.bf16.msra.mxu0 0
      %567 = vmatprep.subr.bf16.mxu0 0
      %568 = vmatpush1.bf16.msra.mxu0 0
      %569 = vmatprep.subr.bf16.mxu0 0
      %570 = vmatpush1.bf16.msra.mxu0 0
      %571 = vmatprep.subr.bf16.mxu0 0
      %572 = vmatpush1.bf16.msra.mxu0 0
      %573 = vmatprep.subr.bf16.mxu0 0
      %574 = vmatpush1.bf16.msra.mxu0 0
      %575 = vmatprep.subr.bf16.mxu0 0
      %576 = vmatpush1.bf16.msra.mxu0 0
      %577 = vmatprep.subr.bf16.mxu0 0
      %578 = vmatpush1.bf16.msra.mxu0 0
      %579 = vmatprep.mubr.bf16.mxu0 0
      %580 = vmatmul.mubr.bf16.gmra.mrb[0].mxu0 %v545
      %v581 = vpop.f32.mrb[0].mxu0
      %v582 = vadd.f32 %v532, %v581
      %v583 = vpop.f32.mrb[0].mxu0
      %v584 = vpop.f32.mrb[0].mxu0
      %v585 = vpop.f32.mrb[0].mxu0
      %586 = vdwg.mxu0
      %v588 = vlaneseq
      %v589 = vshrl.u32 %v588, 7
      %v590 = vsub.s32 0, %v589
      %v591 = vrot.slane %v472, %v590
      %v593 = vadd.f32 %v582, %v591
      %v594 = vxor.u32 %v593, 2147483648
      %v595 = vmul.f32 %v594, 1.442695
      %v596 = vpow.pop %v595
      %v597 = vadd.f32 %v596, 1.0
      %v598 = vrcp.pop %v597
      %v599 = vmul.f32 1.0, %v598
      %v600 = vtanh.pop %v593
      %602 = vrot.lane.b32.xlu0 %v479, 32
      %v603 = vpop.permute.xlu0 %602
      %v605 = vmul.f32 %v599, %v603
      %607 = vrot.lane.b32.xlu0 %v600, 32
      %v608 = vpop.permute.xlu0 %607
      %v610 = vmul.f32 %v599, %v608
      %612 = vrot.lane.b32.xlu0 %v610, 32
      %v613 = vpop.permute.xlu0 %612
      %v615 = vadd.f32 %v605, %v613
      %617 = vrot.lane.b32.xlu0 %v615, 96
      %v618 = vpop.permute.xlu0 %617
      %vm620 = vcmask 254976
      %v621 = vsel %vm620, %v618, 0.0
      %622 = vadd.xlane.f32.xlu0 %v621
      %v623 = vpop.xlane.xlu0 %622
      %v624 = vrcp.pop 32.0
      %v625 = vmul.f32 %v623, %v624
      %v626 = vsub.f32 %v615, %v625
      %v627 = vmul.f32 %v626, %v626
      %629 = vrot.lane.b32.xlu0 %v627, 96
      %v630 = vpop.permute.xlu0 %629
      %v632 = vsel %vm620, %v630, 0.0
      %633 = vadd.xlane.f32.xlu0 %v632
      %v634 = vpop.xlane.xlu0 %633
      %v635 = vmul.f32 %v634, %v624
      %v636 = vadd.f32 %v635, 1e-05
      %v637 = vrsqrt.pop %v636
      %v638 = vmul.f32 %v626, %v637
      %v639 = vlaneseq
      %v640 = vshrl.u32 %v639, 7
      %v641 = vsub.s32 0, %v640
      %v642 = vrot.slane %v462, %v641
      %644 = vrot.lane.b32.xlu0 %v642, 32
      %v645 = vpop.permute.xlu0 %644
      %v647 = vmul.f32 %v638, %v645
      %v648 = vlaneseq
      %v649 = vshrl.u32 %v648, 7
      %v650 = vsub.s32 0, %v649
      %v651 = vrot.slane %v463, %v650
      %653 = vrot.lane.b32.xlu0 %v651, 32
      %v654 = vpop.permute.xlu0 %653
      %v656 = vadd.f32 %v647, %v654
      %v657 = vtanh.pop %v656
      %659 = vrot.lane.b32.xlu0 %v657, 32
      %v660 = vpop.permute.xlu0 %659
      %v662 = vmul.f32 %v599, %v660
      %664 = vrot.lane.b32.xlu0 %v662, 64
      %v665 = vpop.permute.xlu0 %664
      %v667 = vsel %vm620, %v665, 0.0
      %668 = vadd.xlane.f32.xlu0 %v667
      %v669 = vpop.xlane.xlu0 %668
      %v670 = vmul.f32 %v669, %v624
      %v671 = vsub.f32 %v662, %v670
      %v672 = vmul.f32 %v671, %v671
      %674 = vrot.lane.b32.xlu0 %v672, 64
      %v675 = vpop.permute.xlu0 %674
      %v677 = vsel %vm620, %v675, 0.0
      %678 = vadd.xlane.f32.xlu0 %v677
      %v679 = vpop.xlane.xlu0 %678
      %v680 = vmul.f32 %v679, %v624
      %v681 = vadd.f32 %v680, 1e-05
      %v682 = vrsqrt.pop %v681
      %v683 = vmul.f32 %v671, %v682
      %v684 = vlaneseq
      %v685 = vshrl.u32 %v684, 7
      %v686 = vsub.s32 0, %v685
      %v687 = vrot.slane %v464, %v686
      %689 = vrot.lane.b32.xlu0 %v687, 64
      %v690 = vpop.permute.xlu0 %689
      %v692 = vmul.f32 %v683, %v690
      %v693 = vlaneseq
      %v694 = vshrl.u32 %v693, 7
      %v695 = vsub.s32 0, %v694
      %v696 = vrot.slane %v465, %v695
      %698 = vrot.lane.b32.xlu0 %v696, 64
      %v699 = vpop.permute.xlu0 %698
      %v701 = vadd.f32 %v692, %v699
      %703 = vrot.lane.b32.xlu0 %v701, 64
      %v704 = vpop.permute.xlu0 %703
      %706 = vst.msk [vmem:[#allocation2] sm:$0x3] %vm620, %v704
      %708 = vrot.lane.b32.xlu0 %v656, 96
      %v709 = vpop.permute.xlu0 %708
      %711 = vst.msk [vmem:[#allocation3] sm:$0x3] %vm620, %v709
      %s712 = scalar_lea.vmem %s430, %s474
      %713 = vst.msk [vmem:[%s712] sm:$0x3] %vm620, %v704
      %s714 = smul.u32 %s23, 5
      %s715 = sadd.s32 %s714, 1
      %s716 = smul.u32 %s715, 2
      %s717 = scalar_lea.vmem %s395, %s716
      %v718 = vld [vmem:[%s717] sm:$0x3]
      %v719 = vpack.c.bf16 %v718, %v718
      %v720 = vld [vmem:[#allocation2] sm:$0x3]
      %v721 = vld [vmem:[#allocation3] sm:$0x3]
      %v722 = vpack.c.bf16 %v720, %v720
      %v724 = vsel %vm493, %v722, 0
      %726 = vmatprep.subr.bf16.mxu0 0
      %727 = vmatpush1.bf16.msra.mxu0 %v489
      %728 = vmatprep.subr.bf16.mxu0 0
      %729 = vmatpush1.bf16.msra.mxu0 %v490
      %730 = vmatprep.subr.bf16.mxu0 0
      %731 = vmatpush1.bf16.msra.mxu0 0
      %732 = vmatprep.subr.bf16.mxu0 0
      %733 = vmatpush1.bf16.msra.mxu0 0
      %734 = vmatprep.subr.bf16.mxu0 0
      %735 = vmatpush1.bf16.msra.mxu0 0
      %736 = vmatprep.subr.bf16.mxu0 0
      %737 = vmatpush1.bf16.msra.mxu0 0
      %738 = vmatprep.subr.bf16.mxu0 0
      %739 = vmatpush1.bf16.msra.mxu0 0
      %740 = vmatprep.subr.bf16.mxu0 0
      %741 = vmatpush1.bf16.msra.mxu0 0
      %742 = vmatprep.subr.bf16.mxu0 0
      %743 = vmatpush1.bf16.msra.mxu0 0
      %744 = vmatprep.subr.bf16.mxu0 0
      %745 = vmatpush1.bf16.msra.mxu0 0
      %746 = vmatprep.subr.bf16.mxu0 0
      %747 = vmatpush1.bf16.msra.mxu0 0
      %748 = vmatprep.subr.bf16.mxu0 0
      %749 = vmatpush1.bf16.msra.mxu0 0
      %750 = vmatprep.subr.bf16.mxu0 0
      %751 = vmatpush1.bf16.msra.mxu0 0
      %752 = vmatprep.subr.bf16.mxu0 0
      %753 = vmatpush1.bf16.msra.mxu0 0
      %754 = vmatprep.subr.bf16.mxu0 0
      %755 = vmatpush1.bf16.msra.mxu0 0
      %756 = vmatprep.subr.bf16.mxu0 0
      %757 = vmatpush1.bf16.msra.mxu0 0
      %758 = vmatprep.mubr.bf16.mxu0 0
      %759 = vmatmul.mubr.bf16.gmra.mrb[0].mxu0 %v724
      %v760 = vpop.f32.mrb[0].mxu0
      %v761 = vadd.f32 0.0, %v760
      %v762 = vpop.f32.mrb[0].mxu0
      %v763 = vpop.f32.mrb[0].mxu0
      %v764 = vpop.f32.mrb[0].mxu0
      %765 = vdwg.mxu0
      %v767 = vsel %vm543, %v719, 0
      %769 = vmatprep.subr.bf16.mxu0 0
      %770 = vmatpush1.bf16.msra.mxu0 %v541
      %771 = vmatprep.subr.bf16.mxu0 0
      %772 = vmatpush1.bf16.msra.mxu0 0
      %773 = vmatprep.subr.bf16.mxu0 0
      %774 = vmatpush1.bf16.msra.mxu0 0
      %775 = vmatprep.subr.bf16.mxu0 0
      %776 = vmatpush1.bf16.msra.mxu0 0
      %777 = vmatprep.subr.bf16.mxu0 0
      %778 = vmatpush1.bf16.msra.mxu0 0
      %779 = vmatprep.subr.bf16.mxu0 0
      %780 = vmatpush1.bf16.msra.mxu0 0
      %781 = vmatprep.subr.bf16.mxu0 0
      %782 = vmatpush1.bf16.msra.mxu0 0
      %783 = vmatprep.subr.bf16.mxu0 0
      %784 = vmatpush1.bf16.msra.mxu0 0
      %785 = vmatprep.subr.bf16.mxu0 0
      %786 = vmatpush1.bf16.msra.mxu0 0
      %787 = vmatprep.subr.bf16.mxu0 0
      %788 = vmatpush1.bf16.msra.mxu0 0
      %789 = vmatprep.subr.bf16.mxu0 0
      %790 = vmatpush1.bf16.msra.mxu0 0
      %791 = vmatprep.subr.bf16.mxu0 0
      %792 = vmatpush1.bf16.msra.mxu0 0
      %793 = vmatprep.subr.bf16.mxu0 0
      %794 = vmatpush1.bf16.msra.mxu0 0
      %795 = vmatprep.subr.bf16.mxu0 0
      %796 = vmatpush1.bf16.msra.mxu0 0
      %797 = vmatprep.subr.bf16.mxu0 0
      %798 = vmatpush1.bf16.msra.mxu0 0
      %799 = vmatprep.subr.bf16.mxu0 0
      %800 = vmatpush1.bf16.msra.mxu0 0
      %801 = vmatprep.mubr.bf16.mxu0 0
      %802 = vmatmul.mubr.bf16.gmra.mrb[0].mxu0 %v767
      %v803 = vpop.f32.mrb[0].mxu0
      %v804 = vadd.f32 %v761, %v803
      %v805 = vpop.f32.mrb[0].mxu0
      %v806 = vpop.f32.mrb[0].mxu0
      %v807 = vpop.f32.mrb[0].mxu0
      %808 = vdwg.mxu0
      %v809 = vadd.f32 %v804, %v591
      %v810 = vxor.u32 %v809, 2147483648
      %v811 = vmul.f32 %v810, 1.442695
      %v812 = vpow.pop %v811
      %v813 = vadd.f32 %v812, 1.0
      %v814 = vrcp.pop %v813
      %v815 = vmul.f32 1.0, %v814
      %v816 = vtanh.pop %v809
      %818 = vrot.lane.b32.xlu0 %v721, 32
      %v819 = vpop.permute.xlu0 %818
      %v821 = vmul.f32 %v815, %v819
      %823 = vrot.lane.b32.xlu0 %v816, 32
      %v824 = vpop.permute.xlu0 %823
      %v826 = vmul.f32 %v815, %v824
      %828 = vrot.lane.b32.xlu0 %v826, 32
      %v829 = vpop.permute.xlu0 %828
      %v831 = vadd.f32 %v821, %v829
      %833 = vrot.lane.b32.xlu0 %v831, 96
      %v834 = vpop.permute.xlu0 %833
      %v836 = vsel %vm620, %v834, 0.0
      %837 = vadd.xlane.f32.xlu0 %v836
      %v838 = vpop.xlane.xlu0 %837
      %v839 = vmul.f32 %v838, %v624
      %v840 = vsub.f32 %v831, %v839
      %v841 = vmul.f32 %v840, %v840
      %843 = vrot.lane.b32.xlu0 %v841, 96
      %v844 = vpop.permute.xlu0 %843
      %v846 = vsel %vm620, %v844, 0.0
      %847 = vadd.xlane.f32.xlu0 %v846
      %v848 = vpop.xlane.xlu0 %847
      %v849 = vmul.f32 %v848, %v624
      %v850 = vadd.f32 %v849, 1e-05
      %v851 = vrsqrt.pop %v850
      %v852 = vmul.f32 %v840, %v851
      %v853 = vmul.f32 %v852, %v645
      %v854 = vadd.f32 %v853, %v654
      %v855 = vtanh.pop %v854
      %857 = vrot.lane.b32.xlu0 %v855, 32
      %v858 = vpop.permute.xlu0 %857
      %v860 = vmul.f32 %v815, %v858
      %862 = vrot.lane.b32.xlu0 %v860, 64
      %v863 = vpop.permute.xlu0 %862
      %v865 = vsel %vm620, %v863, 0.0
      %866 = vadd.xlane.f32.xlu0 %v865
      %v867 = vpop.xlane.xlu0 %866
      %v868 = vmul.f32 %v867, %v624
      %v869 = vsub.f32 %v860, %v868
      %v870 = vmul.f32 %v869, %v869
      %872 = vrot.lane.b32.xlu0 %v870, 64
      %v873 = vpop.permute.xlu0 %872
      %v875 = vsel %vm620, %v873, 0.0
      %876 = vadd.xlane.f32.xlu0 %v875
      %v877 = vpop.xlane.xlu0 %876
      %v878 = vmul.f32 %v877, %v624
      %v879 = vadd.f32 %v878, 1e-05
      %v880 = vrsqrt.pop %v879
      %v881 = vmul.f32 %v869, %v880
      %v882 = vmul.f32 %v881, %v690
      %v883 = vadd.f32 %v882, %v699
      %885 = vrot.lane.b32.xlu0 %v883, 64
      %v886 = vpop.permute.xlu0 %885
      %888 = vst.msk [vmem:[#allocation2] sm:$0x3] %vm620, %v886
      %890 = vrot.lane.b32.xlu0 %v854, 96
      %v891 = vpop.permute.xlu0 %890
      %893 = vst.msk [vmem:[#allocation3] sm:$0x3] %vm620, %v891
      %s894 = scalar_lea.vmem %s430, %s716
      %895 = vst.msk [vmem:[%s894] sm:$0x3] %vm620, %v886
      %s896 = smul.u32 %s23, 3
      %s897 = sadd.s32 %s896, 2
      %s898 = smul.u32 %s897, 2
      %s899 = scalar_lea.vmem %s395, %s898
      %v900 = vld [vmem:[%s899] sm:$0x3]
      %v901 = vpack.c.bf16 %v900, %v900
      %v902 = vld [vmem:[#allocation2] sm:$0x3]
      %v903 = vld [vmem:[#allocation3] sm:$0x3]
      %v904 = vpack.c.bf16 %v902, %v902
      %v906 = vsel %vm493, %v904, 0
      %908 = vmatprep.subr.bf16.mxu0 0
      %909 = vmatpush1.bf16.msra.mxu0 %v489
      %910 = vmatprep.subr.bf16.mxu0 0
      %911 = vmatpush1.bf16.msra.mxu0 %v490
      %912 = vmatprep.subr.bf16.mxu0 0
      %913 = vmatpush1.bf16.msra.mxu0 0
      %914 = vmatprep.subr.bf16.mxu0 0
      %915 = vmatpush1.bf16.msra.mxu0 0
      %916 = vmatprep.subr.bf16.mxu0 0
      %917 = vmatpush1.bf16.msra.mxu0 0
      %918 = vmatprep.subr.bf16.mxu0 0
      %919 = vmatpush1.bf16.msra.mxu0 0
      %920 = vmatprep.subr.bf16.mxu0 0
      %921 = vmatpush1.bf16.msra.mxu0 0
      %922 = vmatprep.subr.bf16.mxu0 0
      %923 = vmatpush1.bf16.msra.mxu0 0
      %924 = vmatprep.subr.bf16.mxu0 0
      %925 = vmatpush1.bf16.msra.mxu0 0
      %926 = vmatprep.subr.bf16.mxu0 0
      %927 = vmatpush1.bf16.msra.mxu0 0
      %928 = vmatprep.subr.bf16.mxu0 0
      %929 = vmatpush1.bf16.msra.mxu0 0
      %930 = vmatprep.subr.bf16.mxu0 0
      %931 = vmatpush1.bf16.msra.mxu0 0
      %932 = vmatprep.subr.bf16.mxu0 0
      %933 = vmatpush1.bf16.msra.mxu0 0
      %934 = vmatprep.subr.bf16.mxu0 0
      %935 = vmatpush1.bf16.msra.mxu0 0
      %936 = vmatprep.subr.bf16.mxu0 0
      %937 = vmatpush1.bf16.msra.mxu0 0
      %938 = vmatprep.subr.bf16.mxu0 0
      %939 = vmatpush1.bf16.msra.mxu0 0
      %940 = vmatprep.mubr.bf16.mxu0 0
      %941 = vmatmul.mubr.bf16.gmra.mrb[0].mxu0 %v906
      %v942 = vpop.f32.mrb[0].mxu0
      %v943 = vadd.f32 0.0, %v942
      %v944 = vpop.f32.mrb[0].mxu0
      %v945 = vpop.f32.mrb[0].mxu0
      %v946 = vpop.f32.mrb[0].mxu0
      %947 = vdwg.mxu0
      %v949 = vsel %vm543, %v901, 0
      %951 = vmatprep.subr.bf16.mxu0 0
      %952 = vmatpush1.bf16.msra.mxu0 %v541
      %953 = vmatprep.subr.bf16.mxu0 0
      %954 = vmatpush1.bf16.msra.mxu0 0
      %955 = vmatprep.subr.bf16.mxu0 0
      %956 = vmatpush1.bf16.msra.mxu0 0
      %957 = vmatprep.subr.bf16.mxu0 0
      %958 = vmatpush1.bf16.msra.mxu0 0
      %959 = vmatprep.subr.bf16.mxu0 0
      %960 = vmatpush1.bf16.msra.mxu0 0
      %961 = vmatprep.subr.bf16.mxu0 0
      %962 = vmatpush1.bf16.msra.mxu0 0
      %963 = vmatprep.subr.bf16.mxu0 0
      %964 = vmatpush1.bf16.msra.mxu0 0
      %965 = vmatprep.subr.bf16.mxu0 0
      %966 = vmatpush1.bf16.msra.mxu0 0
      %967 = vmatprep.subr.bf16.mxu0 0
      %968 = vmatpush1.bf16.msra.mxu0 0
      %969 = vmatprep.subr.bf16.mxu0 0
      %970 = vmatpush1.bf16.msra.mxu0 0
      %971 = vmatprep.subr.bf16.mxu0 0
      %972 = vmatpush1.bf16.msra.mxu0 0
      %973 = vmatprep.subr.bf16.mxu0 0
      %974 = vmatpush1.bf16.msra.mxu0 0
      %975 = vmatprep.subr.bf16.mxu0 0
      %976 = vmatpush1.bf16.msra.mxu0 0
      %977 = vmatprep.subr.bf16.mxu0 0
      %978 = vmatpush1.bf16.msra.mxu0 0
      %979 = vmatprep.subr.bf16.mxu0 0
      %980 = vmatpush1.bf16.msra.mxu0 0
      %981 = vmatprep.subr.bf16.mxu0 0
      %982 = vmatpush1.bf16.msra.mxu0 0
      %983 = vmatprep.mubr.bf16.mxu0 0
      %984 = vmatmul.mubr.bf16.gmra.mrb[0].mxu0 %v949
      %v985 = vpop.f32.mrb[0].mxu0
      %v986 = vadd.f32 %v943, %v985
      %v987 = vpop.f32.mrb[0].mxu0
      %v988 = vpop.f32.mrb[0].mxu0
      %v989 = vpop.f32.mrb[0].mxu0
      %990 = vdwg.mxu0
      %v991 = vadd.f32 %v986, %v591
      %v992 = vxor.u32 %v991, 2147483648
      %v993 = vmul.f32 %v992, 1.442695
      %v994 = vpow.pop %v993
      %v995 = vadd.f32 %v994, 1.0
      %v996 = vrcp.pop %v995
      %v997 = vmul.f32 1.0, %v996
      %v998 = vtanh.pop %v991
      %1000 = vrot.lane.b32.xlu0 %v903, 32
      %v1001 = vpop.permute.xlu0 %1000
      %v1003 = vmul.f32 %v997, %v1001
      %1005 = vrot.lane.b32.xlu0 %v998, 32
      %v1006 = vpop.permute.xlu0 %1005
      %v1008 = vmul.f32 %v997, %v1006
      %1010 = vrot.lane.b32.xlu0 %v1008, 32
      %v1011 = vpop.permute.xlu0 %1010
      %v1013 = vadd.f32 %v1003, %v1011
      %1015 = vrot.lane.b32.xlu0 %v1013, 96
      %v1016 = vpop.permute.xlu0 %1015
      %v1018 = vsel %vm620, %v1016, 0.0
      %1019 = vadd.xlane.f32.xlu0 %v1018
      %v1020 = vpop.xlane.xlu0 %1019
      %v1021 = vmul.f32 %v1020, %v624
      %v1022 = vsub.f32 %v1013, %v1021
      %v1023 = vmul.f32 %v1022, %v1022
      %1025 = vrot.lane.b32.xlu0 %v1023, 96
      %v1026 = vpop.permute.xlu0 %1025
      %v1028 = vsel %vm620, %v1026, 0.0
      %1029 = vadd.xlane.f32.xlu0 %v1028
      %v1030 = vpop.xlane.xlu0 %1029
      %v1031 = vmul.f32 %v1030, %v624
      %v1032 = vadd.f32 %v1031, 1e-05
      %v1033 = vrsqrt.pop %v1032
      %v1034 = vmul.f32 %v1022, %v1033
      %v1035 = vmul.f32 %v1034, %v645
      %v1036 = vadd.f32 %v1035, %v654
      %v1037 = vtanh.pop %v1036
      %1039 = vrot.lane.b32.xlu0 %v1037, 32
      %v1040 = vpop.permute.xlu0 %1039
      %v1042 = vmul.f32 %v997, %v1040
      %1044 = vrot.lane.b32.xlu0 %v1042, 64
      %v1045 = vpop.permute.xlu0 %1044
      %v1047 = vsel %vm620, %v1045, 0.0
      %1048 = vadd.xlane.f32.xlu0 %v1047
      %v1049 = vpop.xlane.xlu0 %1048
      %v1050 = vmul.f32 %v1049, %v624
      %v1051 = vsub.f32 %v1042, %v1050
      %v1052 = vmul.f32 %v1051, %v1051
      %1054 = vrot.lane.b32.xlu0 %v1052, 64
      %v1055 = vpop.permute.xlu0 %1054
      %v1057 = vsel %vm620, %v1055, 0.0
      %1058 = vadd.xlane.f32.xlu0 %v1057
      %v1059 = vpop.xlane.xlu0 %1058
      %v1060 = vmul.f32 %v1059, %v624
      %v1061 = vadd.f32 %v1060, 1e-05
      %v1062 = vrsqrt.pop %v1061
      %v1063 = vmul.f32 %v1051, %v1062
      %v1064 = vmul.f32 %v1063, %v690
      %v1065 = vadd.f32 %v1064, %v699
      %1067 = vrot.lane.b32.xlu0 %v1065, 64
      %v1068 = vpop.permute.xlu0 %1067
      %1070 = vst.msk [vmem:[#allocation2] sm:$0x3] %vm620, %v1068
      %1072 = vrot.lane.b32.xlu0 %v1036, 96
      %v1073 = vpop.permute.xlu0 %1072
      %1075 = vst.msk [vmem:[#allocation3] sm:$0x3] %vm620, %v1073
      %s1076 = scalar_lea.vmem %s430, %s898
      %1077 = vst.msk [vmem:[%s1076] sm:$0x3] %vm620, %v1068
      %s1078 = sadd.s32 %s23, 3
      %s1079 = smul.u32 %s1078, 2
      %s1080 = scalar_lea.vmem %s395, %s1079
      %v1081 = vld [vmem:[%s1080] sm:$0x3]
      %v1082 = vpack.c.bf16 %v1081, %v1081
      %v1083 = vld [vmem:[#allocation2] sm:$0x3]
      %v1084 = vld [vmem:[#allocation3] sm:$0x3]
      %v1085 = vpack.c.bf16 %v1083, %v1083
      %v1087 = vsel %vm493, %v1085, 0
      %1089 = vmatprep.subr.bf16.mxu0 0
      %1090 = vmatpush1.bf16.msra.mxu0 %v489
      %1091 = vmatprep.subr.bf16.mxu0 0
      %1092 = vmatpush1.bf16.msra.mxu0 %v490
      %1093 = vmatprep.subr.bf16.mxu0 0
      %1094 = vmatpush1.bf16.msra.mxu0 0
      %1095 = vmatprep.subr.bf16.mxu0 0
      %1096 = vmatpush1.bf16.msra.mxu0 0
      %1097 = vmatprep.subr.bf16.mxu0 0
      %1098 = vmatpush1.bf16.msra.mxu0 0
      %1099 = vmatprep.subr.bf16.mxu0 0
      %1100 = vmatpush1.bf16.msra.mxu0 0
      %1101 = vmatprep.subr.bf16.mxu0 0
      %1102 = vmatpush1.bf16.msra.mxu0 0
      %1103 = vmatprep.subr.bf16.mxu0 0
      %1104 = vmatpush1.bf16.msra.mxu0 0
      %1105 = vmatprep.subr.bf16.mxu0 0
      %1106 = vmatpush1.bf16.msra.mxu0 0
      %1107 = vmatprep.subr.bf16.mxu0 0
      %1108 = vmatpush1.bf16.msra.mxu0 0
      %1109 = vmatprep.subr.bf16.mxu0 0
      %1110 = vmatpush1.bf16.msra.mxu0 0
      %1111 = vmatprep.subr.bf16.mxu0 0
      %1112 = vmatpush1.bf16.msra.mxu0 0
      %1113 = vmatprep.subr.bf16.mxu0 0
      %1114 = vmatpush1.bf16.msra.mxu0 0
      %1115 = vmatprep.subr.bf16.mxu0 0
      %1116 = vmatpush1.bf16.msra.mxu0 0
      %1117 = vmatprep.subr.bf16.mxu0 0
      %1118 = vmatpush1.bf16.msra.mxu0 0
      %1119 = vmatprep.subr.bf16.mxu0 0
      %1120 = vmatpush1.bf16.msra.mxu0 0
      %1121 = vmatprep.mubr.bf16.mxu0 0
      %1122 = vmatmul.mubr.bf16.gmra.mrb[0].mxu0 %v1087
      %v1123 = vpop.f32.mrb[0].mxu0
      %v1124 = vadd.f32 0.0, %v1123
      %v1125 = vpop.f32.mrb[0].mxu0
      %v1126 = vpop.f32.mrb[0].mxu0
      %v1127 = vpop.f32.mrb[0].mxu0
      %1128 = vdwg.mxu0
      %v1130 = vsel %vm543, %v1082, 0
      %1132 = vmatprep.subr.bf16.mxu0 0
      %1133 = vmatpush1.bf16.msra.mxu0 %v541
      %1134 = vmatprep.subr.bf16.mxu0 0
      %1135 = vmatpush1.bf16.msra.mxu0 0
      %1136 = vmatprep.subr.bf16.mxu0 0
      %1137 = vmatpush1.bf16.msra.mxu0 0
      %1138 = vmatprep.subr.bf16.mxu0 0
      %1139 = vmatpush1.bf16.msra.mxu0 0
      %1140 = vmatprep.subr.bf16.mxu0 0
      %1141 = vmatpush1.bf16.msra.mxu0 0
      %1142 = vmatprep.subr.bf16.mxu0 0
      %1143 = vmatpush1.bf16.msra.mxu0 0
      %1144 = vmatprep.subr.bf16.mxu0 0
      %1145 = vmatpush1.bf16.msra.mxu0 0
      %1146 = vmatprep.subr.bf16.mxu0 0
      %1147 = vmatpush1.bf16.msra.mxu0 0
      %1148 = vmatprep.subr.bf16.mxu0 0
      %1149 = vmatpush1.bf16.msra.mxu0 0
      %1150 = vmatprep.subr.bf16.mxu0 0
      %1151 = vmatpush1.bf16.msra.mxu0 0
      %1152 = vmatprep.subr.bf16.mxu0 0
      %1153 = vmatpush1.bf16.msra.mxu0 0
      %1154 = vmatprep.subr.bf16.mxu0 0
      %1155 = vmatpush1.bf16.msra.mxu0 0
      %1156 = vmatprep.subr.bf16.mxu0 0
      %1157 = vmatpush1.bf16.msra.mxu0 0
      %1158 = vmatprep.subr.bf16.mxu0 0
      %1159 = vmatpush1.bf16.msra.mxu0 0
      %1160 = vmatprep.subr.bf16.mxu0 0
      %1161 = vmatpush1.bf16.msra.mxu0 0
      %1162 = vmatprep.subr.bf16.mxu0 0
      %1163 = vmatpush1.bf16.msra.mxu0 0
      %1164 = vmatprep.mubr.bf16.mxu0 0
      %1165 = vmatmul.mubr.bf16.gmra.mrb[0].mxu0 %v1130
      %v1166 = vpop.f32.mrb[0].mxu0
      %v1167 = vadd.f32 %v1124, %v1166
      %v1168 = vpop.f32.mrb[0].mxu0
      %v1169 = vpop.f32.mrb[0].mxu0
      %v1170 = vpop.f32.mrb[0].mxu0
      %1171 = vdwg.mxu0
      %v1172 = vadd.f32 %v1167, %v591
      %v1173 = vxor.u32 %v1172, 2147483648
      %v1174 = vmul.f32 %v1173, 1.442695
      %v1175 = vpow.pop %v1174
      %v1176 = vadd.f32 %v1175, 1.0
      %v1177 = vrcp.pop %v1176
      %v1178 = vmul.f32 1.0, %v1177
      %v1179 = vtanh.pop %v1172
      %1181 = vrot.lane.b32.xlu0 %v1084, 32
      %v1182 = vpop.permute.xlu0 %1181
      %v1184 = vmul.f32 %v1178, %v1182
      %1186 = vrot.lane.b32.xlu0 %v1179, 32
      %v1187 = vpop.permute.xlu0 %1186
      %v1189 = vmul.f32 %v1178, %v1187
      %1191 = vrot.lane.b32.xlu0 %v1189, 32
      %v1192 = vpop.permute.xlu0 %1191
      %v1194 = vadd.f32 %v1184, %v1192
      %1196 = vrot.lane.b32.xlu0 %v1194, 96
      %v1197 = vpop.permute.xlu0 %1196
      %v1199 = vsel %vm620, %v1197, 0.0
      %1200 = vadd.xlane.f32.xlu0 %v1199
      %v1201 = vpop.xlane.xlu0 %1200
      %v1202 = vmul.f32 %v1201, %v624
      %v1203 = vsub.f32 %v1194, %v1202
      %v1204 = vmul.f32 %v1203, %v1203
      %1206 = vrot.lane.b32.xlu0 %v1204, 96
      %v1207 = vpop.permute.xlu0 %1206
      %v1209 = vsel %vm620, %v1207, 0.0
      %1210 = vadd.xlane.f32.xlu0 %v1209
      %v1211 = vpop.xlane.xlu0 %1210
      %v1212 = vmul.f32 %v1211, %v624
      %v1213 = vadd.f32 %v1212, 1e-05
      %v1214 = vrsqrt.pop %v1213
      %v1215 = vmul.f32 %v1203, %v1214
      %v1216 = vmul.f32 %v1215, %v645
      %v1217 = vadd.f32 %v1216, %v654
      %v1218 = vtanh.pop %v1217
      %1220 = vrot.lane.b32.xlu0 %v1218, 32
      %v1221 = vpop.permute.xlu0 %1220
      %v1223 = vmul.f32 %v1178, %v1221
      %1225 = vrot.lane.b32.xlu0 %v1223, 64
      %v1226 = vpop.permute.xlu0 %1225
      %v1228 = vsel %vm620, %v1226, 0.0
      %1229 = vadd.xlane.f32.xlu0 %v1228
      %v1230 = vpop.xlane.xlu0 %1229
      %v1231 = vmul.f32 %v1230, %v624
      %v1232 = vsub.f32 %v1223, %v1231
      %v1233 = vmul.f32 %v1232, %v1232
      %1235 = vrot.lane.b32.xlu0 %v1233, 64
      %v1236 = vpop.permute.xlu0 %1235
      %v1238 = vsel %vm620, %v1236, 0.0
      %1239 = vadd.xlane.f32.xlu0 %v1238
      %v1240 = vpop.xlane.xlu0 %1239
      %v1241 = vmul.f32 %v1240, %v624
      %v1242 = vadd.f32 %v1241, 1e-05
      %v1243 = vrsqrt.pop %v1242
      %v1244 = vmul.f32 %v1232, %v1243
      %v1245 = vmul.f32 %v1244, %v690
      %v1246 = vadd.f32 %v1245, %v699
      %1248 = vrot.lane.b32.xlu0 %v1246, 64
      %v1249 = vpop.permute.xlu0 %1248
      %1251 = vst.msk [vmem:[#allocation2] sm:$0x3] %vm620, %v1249
      %1253 = vrot.lane.b32.xlu0 %v1217, 96
      %v1254 = vpop.permute.xlu0 %1253
      %1256 = vst.msk [vmem:[#allocation3] sm:$0x3] %vm620, %v1254
      %s1257 = scalar_lea.vmem %s430, %s1079
      %1258 = vst.msk [vmem:[%s1257] sm:$0x3] %vm620, %v1249
      %s1259 = ssub.s32 4, %s23
      %s1260 = smul.u32 %s1259, 2
      %s1261 = scalar_lea.vmem %s395, %s1260
      %v1262 = vld [vmem:[%s1261] sm:$0x3]
      %v1263 = vpack.c.bf16 %v1262, %v1262
      %v1264 = vld [vmem:[#allocation2] sm:$0x3]
      %v1265 = vld [vmem:[#allocation3] sm:$0x3]
      %v1266 = vpack.c.bf16 %v1264, %v1264
      %v1268 = vsel %vm493, %v1266, 0
      %1270 = vmatprep.subr.bf16.mxu0 0
      %1271 = vmatpush1.bf16.msra.mxu0 %v489
      %1272 = vmatprep.subr.bf16.mxu0 0
      %1273 = vmatpush1.bf16.msra.mxu0 %v490
      %1274 = vmatprep.subr.bf16.mxu0 0
      %1275 = vmatpush1.bf16.msra.mxu0 0
      %1276 = vmatprep.subr.bf16.mxu0 0
      %1277 = vmatpush1.bf16.msra.mxu0 0
      %1278 = vmatprep.subr.bf16.mxu0 0
      %1279 = vmatpush1.bf16.msra.mxu0 0
      %1280 = vmatprep.subr.bf16.mxu0 0
      %1281 = vmatpush1.bf16.msra.mxu0 0
      %1282 = vmatprep.subr.bf16.mxu0 0
      %1283 = vmatpush1.bf16.msra.mxu0 0
      %1284 = vmatprep.subr.bf16.mxu0 0
      %1285 = vmatpush1.bf16.msra.mxu0 0
      %1286 = vmatprep.subr.bf16.mxu0 0
      %1287 = vmatpush1.bf16.msra.mxu0 0
      %1288 = vmatprep.subr.bf16.mxu0 0
      %1289 = vmatpush1.bf16.msra.mxu0 0
      %1290 = vmatprep.subr.bf16.mxu0 0
      %1291 = vmatpush1.bf16.msra.mxu0 0
      %1292 = vmatprep.subr.bf16.mxu0 0
      %1293 = vmatpush1.bf16.msra.mxu0 0
      %1294 = vmatprep.subr.bf16.mxu0 0
      %1295 = vmatpush1.bf16.msra.mxu0 0
      %1296 = vmatprep.subr.bf16.mxu0 0
      %1297 = vmatpush1.bf16.msra.mxu0 0
      %1298 = vmatprep.subr.bf16.mxu0 0
      %1299 = vmatpush1.bf16.msra.mxu0 0
      %1300 = vmatprep.subr.bf16.mxu0 0
      %1301 = vmatpush1.bf16.msra.mxu0 0
      %1302 = vmatprep.mubr.bf16.mxu0 0
      %1303 = vmatmul.mubr.bf16.gmra.mrb[0].mxu0 %v1268
      %v1304 = vpop.f32.mrb[0].mxu0
      %v1305 = vadd.f32 0.0, %v1304
      %v1306 = vpop.f32.mrb[0].mxu0
      %v1307 = vpop.f32.mrb[0].mxu0
      %v1308 = vpop.f32.mrb[0].mxu0
      %1309 = vdwg.mxu0
      %v1311 = vsel %vm543, %v1263, 0
      %1313 = vmatprep.subr.bf16.mxu0 0
      %1314 = vmatpush1.bf16.msra.mxu0 %v541
      %1315 = vmatprep.subr.bf16.mxu0 0
      %1316 = vmatpush1.bf16.msra.mxu0 0
      %1317 = vmatprep.subr.bf16.mxu0 0
      %1318 = vmatpush1.bf16.msra.mxu0 0
      %1319 = vmatprep.subr.bf16.mxu0 0
      %1320 = vmatpush1.bf16.msra.mxu0 0
      %1321 = vmatprep.subr.bf16.mxu0 0
      %1322 = vmatpush1.bf16.msra.mxu0 0
      %1323 = vmatprep.subr.bf16.mxu0 0
      %1324 = vmatpush1.bf16.msra.mxu0 0
      %1325 = vmatprep.subr.bf16.mxu0 0
      %1326 = vmatpush1.bf16.msra.mxu0 0
      %1327 = vmatprep.subr.bf16.mxu0 0
      %1328 = vmatpush1.bf16.msra.mxu0 0
      %1329 = vmatprep.subr.bf16.mxu0 0
      %1330 = vmatpush1.bf16.msra.mxu0 0
      %1331 = vmatprep.subr.bf16.mxu0 0
      %1332 = vmatpush1.bf16.msra.mxu0 0
      %1333 = vmatprep.subr.bf16.mxu0 0
      %1334 = vmatpush1.bf16.msra.mxu0 0
      %1335 = vmatprep.subr.bf16.mxu0 0
      %1336 = vmatpush1.bf16.msra.mxu0 0
      %1337 = vmatprep.subr.bf16.mxu0 0
      %1338 = vmatpush1.bf16.msra.mxu0 0
      %1339 = vmatprep.subr.bf16.mxu0 0
      %1340 = vmatpush1.bf16.msra.mxu0 0
      %1341 = vmatprep.subr.bf16.mxu0 0
      %1342 = vmatpush1.bf16.msra.mxu0 0
      %1343 = vmatprep.subr.bf16.mxu0 0
      %1344 = vmatpush1.bf16.msra.mxu0 0
      %1345 = vmatprep.mubr.bf16.mxu0 0
      %1346 = vmatmul.mubr.bf16.gmra.mrb[0].mxu0 %v1311
      %v1347 = vpop.f32.mrb[0].mxu0
      %v1348 = vadd.f32 %v1305, %v1347
      %v1349 = vpop.f32.mrb[0].mxu0
      %v1350 = vpop.f32.mrb[0].mxu0
      %v1351 = vpop.f32.mrb[0].mxu0
      %1352 = vdwg.mxu0
      %v1353 = vadd.f32 %v1348, %v591
      %v1354 = vxor.u32 %v1353, 2147483648
      %v1355 = vmul.f32 %v1354, 1.442695
      %v1356 = vpow.pop %v1355
      %v1357 = vadd.f32 %v1356, 1.0
      %v1358 = vrcp.pop %v1357
      %v1359 = vmul.f32 1.0, %v1358
      %v1360 = vtanh.pop %v1353
      %1362 = vrot.lane.b32.xlu0 %v1265, 32
      %v1363 = vpop.permute.xlu0 %1362
      %v1365 = vmul.f32 %v1359, %v1363
      %1367 = vrot.lane.b32.xlu0 %v1360, 32
      %v1368 = vpop.permute.xlu0 %1367
      %v1370 = vmul.f32 %v1359, %v1368
      %1372 = vrot.lane.b32.xlu0 %v1370, 32
      %v1373 = vpop.permute.xlu0 %1372
      %v1375 = vadd.f32 %v1365, %v1373
      %1377 = vrot.lane.b32.xlu0 %v1375, 96
      %v1378 = vpop.permute.xlu0 %1377
      %v1380 = vsel %vm620, %v1378, 0.0
      %1381 = vadd.xlane.f32.xlu0 %v1380
      %v1382 = vpop.xlane.xlu0 %1381
      %v1383 = vmul.f32 %v1382, %v624
      %v1384 = vsub.f32 %v1375, %v1383
      %v1385 = vmul.f32 %v1384, %v1384
      %1387 = vrot.lane.b32.xlu0 %v1385, 96
      %v1388 = vpop.permute.xlu0 %1387
      %v1390 = vsel %vm620, %v1388, 0.0
      %1391 = vadd.xlane.f32.xlu0 %v1390
      %v1392 = vpop.xlane.xlu0 %1391
      %v1393 = vmul.f32 %v1392, %v624
      %v1394 = vadd.f32 %v1393, 1e-05
      %v1395 = vrsqrt.pop %v1394
      %v1396 = vmul.f32 %v1384, %v1395
      %v1397 = vmul.f32 %v1396, %v645
      %v1398 = vadd.f32 %v1397, %v654
      %v1399 = vtanh.pop %v1398
      %1401 = vrot.lane.b32.xlu0 %v1399, 32
      %v1402 = vpop.permute.xlu0 %1401
      %v1404 = vmul.f32 %v1359, %v1402
      %1406 = vrot.lane.b32.xlu0 %v1404, 64
      %v1407 = vpop.permute.xlu0 %1406
      %v1409 = vsel %vm620, %v1407, 0.0
      %1410 = vadd.xlane.f32.xlu0 %v1409
      %v1411 = vpop.xlane.xlu0 %1410
      %v1412 = vmul.f32 %v1411, %v624
      %v1413 = vsub.f32 %v1404, %v1412
      %v1414 = vmul.f32 %v1413, %v1413
      %1416 = vrot.lane.b32.xlu0 %v1414, 64
      %v1417 = vpop.permute.xlu0 %1416
      %v1419 = vsel %vm620, %v1417, 0.0
      %1420 = vadd.xlane.f32.xlu0 %v1419
      %v1421 = vpop.xlane.xlu0 %1420
      %v1422 = vmul.f32 %v1421, %v624
      %v1423 = vadd.f32 %v1422, 1e-05
      %v1424 = vrsqrt.pop %v1423
      %v1425 = vmul.f32 %v1413, %v1424
      %v1426 = vmul.f32 %v1425, %v690
      %v1427 = vadd.f32 %v1426, %v699
      %1429 = vrot.lane.b32.xlu0 %v1427, 64
      %v1430 = vpop.permute.xlu0 %1429
      %1432 = vst.msk [vmem:[#allocation2] sm:$0x3] %vm620, %v1430
      %1434 = vrot.lane.b32.xlu0 %v1398, 96
      %v1435 = vpop.permute.xlu0 %1434
      %1437 = vst.msk [vmem:[#allocation3] sm:$0x3] %vm620, %v1435
      %s1438 = scalar_lea.vmem %s430, %s1260
      %1439 = vst.msk [vmem:[%s1438] sm:$0x3] %vm620, %v1430
      %s1440 = smul.u32 %s23, 4294967293
      %s1441 = sadd.s32 %s1440, 5
      %s1442 = smul.u32 %s1441, 2
      %s1443 = scalar_lea.vmem %s395, %s1442
      %v1444 = vld [vmem:[%s1443] sm:$0x3]
      %v1445 = vpack.c.bf16 %v1444, %v1444
      %v1446 = vld [vmem:[#allocation2] sm:$0x3]
      %v1447 = vld [vmem:[#allocation3] sm:$0x3]
      %v1448 = vpack.c.bf16 %v1446, %v1446
      %v1450 = vsel %vm493, %v1448, 0
      %1452 = vmatprep.subr.bf16.mxu0 0
      %1453 = vmatpush1.bf16.msra.mxu0 %v489
      %1454 = vmatprep.subr.bf16.mxu0 0
      %1455 = vmatpush1.bf16.msra.mxu0 %v490
      %1456 = vmatprep.subr.bf16.mxu0 0
      %1457 = vmatpush1.bf16.msra.mxu0 0
      %1458 = vmatprep.subr.bf16.mxu0 0
      %1459 = vmatpush1.bf16.msra.mxu0 0
      %1460 = vmatprep.subr.bf16.mxu0 0
      %1461 = vmatpush1.bf16.msra.mxu0 0
      %1462 = vmatprep.subr.bf16.mxu0 0
      %1463 = vmatpush1.bf16.msra.mxu0 0
      %1464 = vmatprep.subr.bf16.mxu0 0
      %1465 = vmatpush1.bf16.msra.mxu0 0
      %1466 = vmatprep.subr.bf16.mxu0 0
      %1467 = vmatpush1.bf16.msra.mxu0 0
      %1468 = vmatprep.subr.bf16.mxu0 0
      %1469 = vmatpush1.bf16.msra.mxu0 0
      %1470 = vmatprep.subr.bf16.mxu0 0
      %1471 = vmatpush1.bf16.msra.mxu0 0
      %1472 = vmatprep.subr.bf16.mxu0 0
      %1473 = vmatpush1.bf16.msra.mxu0 0
      %1474 = vmatprep.subr.bf16.mxu0 0
      %1475 = vmatpush1.bf16.msra.mxu0 0
      %1476 = vmatprep.subr.bf16.mxu0 0
      %1477 = vmatpush1.bf16.msra.mxu0 0
      %1478 = vmatprep.subr.bf16.mxu0 0
      %1479 = vmatpush1.bf16.msra.mxu0 0
      %1480 = vmatprep.subr.bf16.mxu0 0
      %1481 = vmatpush1.bf16.msra.mxu0 0
      %1482 = vmatprep.subr.bf16.mxu0 0
      %1483 = vmatpush1.bf16.msra.mxu0 0
      %1484 = vmatprep.mubr.bf16.mxu0 0
      %1485 = vmatmul.mubr.bf16.gmra.mrb[0].mxu0 %v1450
      %v1486 = vpop.f32.mrb[0].mxu0
      %v1487 = vadd.f32 0.0, %v1486
      %v1488 = vpop.f32.mrb[0].mxu0
      %v1489 = vpop.f32.mrb[0].mxu0
      %v1490 = vpop.f32.mrb[0].mxu0
      %1491 = vdwg.mxu0
      %v1493 = vsel %vm543, %v1445, 0
      %1495 = vmatprep.subr.bf16.mxu0 0
      %1496 = vmatpush1.bf16.msra.mxu0 %v541
      %1497 = vmatprep.subr.bf16.mxu0 0
      %1498 = vmatpush1.bf16.msra.mxu0 0
      %1499 = vmatprep.subr.bf16.mxu0 0
      %1500 = vmatpush1.bf16.msra.mxu0 0
      %1501 = vmatprep.subr.bf16.mxu0 0
      %1502 = vmatpush1.bf16.msra.mxu0 0
      %1503 = vmatprep.subr.bf16.mxu0 0
      %1504 = vmatpush1.bf16.msra.mxu0 0
      %1505 = vmatprep.subr.bf16.mxu0 0
      %1506 = vmatpush1.bf16.msra.mxu0 0
      %1507 = vmatprep.subr.bf16.mxu0 0
      %1508 = vmatpush1.bf16.msra.mxu0 0
      %1509 = vmatprep.subr.bf16.mxu0 0
      %1510 = vmatpush1.bf16.msra.mxu0 0
      %1511 = vmatprep.subr.bf16.mxu0 0
      %1512 = vmatpush1.bf16.msra.mxu0 0
      %1513 = vmatprep.subr.bf16.mxu0 0
      %1514 = vmatpush1.bf16.msra.mxu0 0
      %1515 = vmatprep.subr.bf16.mxu0 0
      %1516 = vmatpush1.bf16.msra.mxu0 0
      %1517 = vmatprep.subr.bf16.mxu0 0
      %1518 = vmatpush1.bf16.msra.mxu0 0
      %1519 = vmatprep.subr.bf16.mxu0 0
      %1520 = vmatpush1.bf16.msra.mxu0 0
      %1521 = vmatprep.subr.bf16.mxu0 0
      %1522 = vmatpush1.bf16.msra.mxu0 0
      %1523 = vmatprep.subr.bf16.mxu0 0
      %1524 = vmatpush1.bf16.msra.mxu0 0
      %1525 = vmatprep.subr.bf16.mxu0 0
      %1526 = vmatpush1.bf16.msra.mxu0 0
      %1527 = vmatprep.mubr.bf16.mxu0 0
      %1528 = vmatmul.mubr.bf16.gmra.mrb[0].mxu0 %v1493
      %v1529 = vpop.f32.mrb[0].mxu0
      %v1530 = vadd.f32 %v1487, %v1529
      %v1531 = vpop.f32.mrb[0].mxu0
      %v1532 = vpop.f32.mrb[0].mxu0
      %v1533 = vpop.f32.mrb[0].mxu0
      %1534 = vdwg.mxu0
      %v1535 = vadd.f32 %v1530, %v591
      %v1536 = vxor.u32 %v1535, 2147483648
      %v1537 = vmul.f32 %v1536, 1.442695
      %v1538 = vpow.pop %v1537
      %v1539 = vadd.f32 %v1538, 1.0
      %v1540 = vrcp.pop %v1539
      %v1541 = vmul.f32 1.0, %v1540
      %v1542 = vtanh.pop %v1535
      %1544 = vrot.lane.b32.xlu0 %v1447, 32
      %v1545 = vpop.permute.xlu0 %1544
      %v1547 = vmul.f32 %v1541, %v1545
      %1549 = vrot.lane.b32.xlu0 %v1542, 32
      %v1550 = vpop.permute.xlu0 %1549
      %v1552 = vmul.f32 %v1541, %v1550
      %1554 = vrot.lane.b32.xlu0 %v1552, 32
      %v1555 = vpop.permute.xlu0 %1554
      %v1557 = vadd.f32 %v1547, %v1555
      %1559 = vrot.lane.b32.xlu0 %v1557, 96
      %v1560 = vpop.permute.xlu0 %1559
      %v1562 = vsel %vm620, %v1560, 0.0
      %1563 = vadd.xlane.f32.xlu0 %v1562
      %v1564 = vpop.xlane.xlu0 %1563
      %v1565 = vmul.f32 %v1564, %v624
      %v1566 = vsub.f32 %v1557, %v1565
      %v1567 = vmul.f32 %v1566, %v1566
      %1569 = vrot.lane.b32.xlu0 %v1567, 96
      %v1570 = vpop.permute.xlu0 %1569
      %v1572 = vsel %vm620, %v1570, 0.0
      %1573 = vadd.xlane.f32.xlu0 %v1572
      %v1574 = vpop.xlane.xlu0 %1573
      %v1575 = vmul.f32 %v1574, %v624
      %v1576 = vadd.f32 %v1575, 1e-05
      %v1577 = vrsqrt.pop %v1576
      %v1578 = vmul.f32 %v1566, %v1577
      %v1579 = vmul.f32 %v1578, %v645
      %v1580 = vadd.f32 %v1579, %v654
      %v1581 = vtanh.pop %v1580
      %1583 = vrot.lane.b32.xlu0 %v1581, 32
      %v1584 = vpop.permute.xlu0 %1583
      %v1586 = vmul.f32 %v1541, %v1584
      %1588 = vrot.lane.b32.xlu0 %v1586, 64
      %v1589 = vpop.permute.xlu0 %1588
      %v1591 = vsel %vm620, %v1589, 0.0
      %1592 = vadd.xlane.f32.xlu0 %v1591
      %v1593 = vpop.xlane.xlu0 %1592
      %v1594 = vmul.f32 %v1593, %v624
      %v1595 = vsub.f32 %v1586, %v1594
      %v1596 = vmul.f32 %v1595, %v1595
      %1598 = vrot.lane.b32.xlu0 %v1596, 64
      %v1599 = vpop.permute.xlu0 %1598
      %v1601 = vsel %vm620, %v1599, 0.0
      %1602 = vadd.xlane.f32.xlu0 %v1601
      %v1603 = vpop.xlane.xlu0 %1602
      %v1604 = vmul.f32 %v1603, %v624
      %v1605 = vadd.f32 %v1604, 1e-05
      %v1606 = vrsqrt.pop %v1605
      %v1607 = vmul.f32 %v1595, %v1606
      %v1608 = vmul.f32 %v1607, %v690
      %v1609 = vadd.f32 %v1608, %v699
      %1611 = vrot.lane.b32.xlu0 %v1609, 64
      %v1612 = vpop.permute.xlu0 %1611
      %1614 = vst.msk [vmem:[#allocation2] sm:$0x3] %vm620, %v1612
      %1616 = vrot.lane.b32.xlu0 %v1580, 96
      %v1617 = vpop.permute.xlu0 %1616
      %1619 = vst.msk [vmem:[#allocation3] sm:$0x3] %vm620, %v1617
      %s1620 = scalar_lea.vmem %s430, %s1442
      %1621 = vst.msk [vmem:[%s1620] sm:$0x3] %vm620, %v1612
      %s1622 = smul.u32 %s23, 4294967291
      %s1623 = sadd.s32 %s1622, 6
      %s1624 = smul.u32 %s1623, 2
      %s1625 = scalar_lea.vmem %s395, %s1624
      %v1626 = vld [vmem:[%s1625] sm:$0x3]
      %v1627 = vpack.c.bf16 %v1626, %v1626
      %v1628 = vld [vmem:[#allocation2] sm:$0x3]
      %v1629 = vld [vmem:[#allocation3] sm:$0x3]
      %v1630 = vpack.c.bf16 %v1628, %v1628
      %v1632 = vsel %vm493, %v1630, 0
      %1634 = vmatprep.subr.bf16.mxu0 0
      %1635 = vmatpush1.bf16.msra.mxu0 %v489
      %1636 = vmatprep.subr.bf16.mxu0 0
      %1637 = vmatpush1.bf16.msra.mxu0 %v490
      %1638 = vmatprep.subr.bf16.mxu0 0
      %1639 = vmatpush1.bf16.msra.mxu0 0
      %1640 = vmatprep.subr.bf16.mxu0 0
      %1641 = vmatpush1.bf16.msra.mxu0 0
      %1642 = vmatprep.subr.bf16.mxu0 0
      %1643 = vmatpush1.bf16.msra.mxu0 0
      %1644 = vmatprep.subr.bf16.mxu0 0
      %1645 = vmatpush1.bf16.msra.mxu0 0
      %1646 = vmatprep.subr.bf16.mxu0 0
      %1647 = vmatpush1.bf16.msra.mxu0 0
      %1648 = vmatprep.subr.bf16.mxu0 0
      %1649 = vmatpush1.bf16.msra.mxu0 0
      %1650 = vmatprep.subr.bf16.mxu0 0
      %1651 = vmatpush1.bf16.msra.mxu0 0
      %1652 = vmatprep.subr.bf16.mxu0 0
      %1653 = vmatpush1.bf16.msra.mxu0 0
      %1654 = vmatprep.subr.bf16.mxu0 0
      %1655 = vmatpush1.bf16.msra.mxu0 0
      %1656 = vmatprep.subr.bf16.mxu0 0
      %1657 = vmatpush1.bf16.msra.mxu0 0
      %1658 = vmatprep.subr.bf16.mxu0 0
      %1659 = vmatpush1.bf16.msra.mxu0 0
      %1660 = vmatprep.subr.bf16.mxu0 0
      %1661 = vmatpush1.bf16.msra.mxu0 0
      %1662 = vmatprep.subr.bf16.mxu0 0
      %1663 = vmatpush1.bf16.msra.mxu0 0
      %1664 = vmatprep.subr.bf16.mxu0 0
      %1665 = vmatpush1.bf16.msra.mxu0 0
      %1666 = vmatprep.mubr.bf16.mxu0 0
      %1667 = vmatmul.mubr.bf16.gmra.mrb[0].mxu0 %v1632
      %v1668 = vpop.f32.mrb[0].mxu0
      %v1669 = vadd.f32 0.0, %v1668
      %v1670 = vpop.f32.mrb[0].mxu0
      %v1671 = vpop.f32.mrb[0].mxu0
      %v1672 = vpop.f32.mrb[0].mxu0
      %1673 = vdwg.mxu0
      %v1675 = vsel %vm543, %v1627, 0
      %1677 = vmatprep.subr.bf16.mxu0 0
      %1678 = vmatpush1.bf16.msra.mxu0 %v541
      %1679 = vmatprep.subr.bf16.mxu0 0
      %1680 = vmatpush1.bf16.msra.mxu0 0
      %1681 = vmatprep.subr.bf16.mxu0 0
      %1682 = vmatpush1.bf16.msra.mxu0 0
      %1683 = vmatprep.subr.bf16.mxu0 0
      %1684 = vmatpush1.bf16.msra.mxu0 0
      %1685 = vmatprep.subr.bf16.mxu0 0
      %1686 = vmatpush1.bf16.msra.mxu0 0
      %1687 = vmatprep.subr.bf16.mxu0 0
      %1688 = vmatpush1.bf16.msra.mxu0 0
      %1689 = vmatprep.subr.bf16.mxu0 0
      %1690 = vmatpush1.bf16.msra.mxu0 0
      %1691 = vmatprep.subr.bf16.mxu0 0
      %1692 = vmatpush1.bf16.msra.mxu0 0
      %1693 = vmatprep.subr.bf16.mxu0 0
      %1694 = vmatpush1.bf16.msra.mxu0 0
      %1695 = vmatprep.subr.bf16.mxu0 0
      %1696 = vmatpush1.bf16.msra.mxu0 0
      %1697 = vmatprep.subr.bf16.mxu0 0
      %1698 = vmatpush1.bf16.msra.mxu0 0
      %1699 = vmatprep.subr.bf16.mxu0 0
      %1700 = vmatpush1.bf16.msra.mxu0 0
      %1701 = vmatprep.subr.bf16.mxu0 0
      %1702 = vmatpush1.bf16.msra.mxu0 0
      %1703 = vmatprep.subr.bf16.mxu0 0
      %1704 = vmatpush1.bf16.msra.mxu0 0
      %1705 = vmatprep.subr.bf16.mxu0 0
      %1706 = vmatpush1.bf16.msra.mxu0 0
      %1707 = vmatprep.subr.bf16.mxu0 0
      %1708 = vmatpush1.bf16.msra.mxu0 0
      %1709 = vmatprep.mubr.bf16.mxu0 0
      %1710 = vmatmul.mubr.bf16.gmra.mrb[0].mxu0 %v1675
      %v1711 = vpop.f32.mrb[0].mxu0
      %v1712 = vadd.f32 %v1669, %v1711
      %v1713 = vpop.f32.mrb[0].mxu0
      %v1714 = vpop.f32.mrb[0].mxu0
      %v1715 = vpop.f32.mrb[0].mxu0
      %1716 = vdwg.mxu0
      %v1717 = vadd.f32 %v1712, %v591
      %v1718 = vxor.u32 %v1717, 2147483648
      %v1719 = vmul.f32 %v1718, 1.442695
      %v1720 = vpow.pop %v1719
      %v1721 = vadd.f32 %v1720, 1.0
      %v1722 = vrcp.pop %v1721
      %v1723 = vmul.f32 1.0, %v1722
      %v1724 = vtanh.pop %v1717
      %1726 = vrot.lane.b32.xlu0 %v1629, 32
      %v1727 = vpop.permute.xlu0 %1726
      %v1729 = vmul.f32 %v1723, %v1727
      %1731 = vrot.lane.b32.xlu0 %v1724, 32
      %v1732 = vpop.permute.xlu0 %1731
      %v1734 = vmul.f32 %v1723, %v1732
      %1736 = vrot.lane.b32.xlu0 %v1734, 32
      %v1737 = vpop.permute.xlu0 %1736
      %v1739 = vadd.f32 %v1729, %v1737
      %1741 = vrot.lane.b32.xlu0 %v1739, 96
      %v1742 = vpop.permute.xlu0 %1741
      %v1744 = vsel %vm620, %v1742, 0.0
      %1745 = vadd.xlane.f32.xlu0 %v1744
      %v1746 = vpop.xlane.xlu0 %1745
      %v1747 = vmul.f32 %v1746, %v624
      %v1748 = vsub.f32 %v1739, %v1747
      %v1749 = vmul.f32 %v1748, %v1748
      %1751 = vrot.lane.b32.xlu0 %v1749, 96
      %v1752 = vpop.permute.xlu0 %1751
      %v1754 = vsel %vm620, %v1752, 0.0
      %1755 = vadd.xlane.f32.xlu0 %v1754
      %v1756 = vpop.xlane.xlu0 %1755
      %v1757 = vmul.f32 %v1756, %v624
      %v1758 = vadd.f32 %v1757, 1e-05
      %v1759 = vrsqrt.pop %v1758
      %v1760 = vmul.f32 %v1748, %v1759
      %v1761 = vmul.f32 %v1760, %v645
      %v1762 = vadd.f32 %v1761, %v654
      %v1763 = vtanh.pop %v1762
      %1765 = vrot.lane.b32.xlu0 %v1763, 32
      %v1766 = vpop.permute.xlu0 %1765
      %v1768 = vmul.f32 %v1723, %v1766
      %1770 = vrot.lane.b32.xlu0 %v1768, 64
      %v1771 = vpop.permute.xlu0 %1770
      %v1773 = vsel %vm620, %v1771, 0.0
      %1774 = vadd.xlane.f32.xlu0 %v1773
      %v1775 = vpop.xlane.xlu0 %1774
      %v1776 = vmul.f32 %v1775, %v624
      %v1777 = vsub.f32 %v1768, %v1776
      %v1778 = vmul.f32 %v1777, %v1777
      %1780 = vrot.lane.b32.xlu0 %v1778, 64
      %v1781 = vpop.permute.xlu0 %1780
      %v1783 = vsel %vm620, %v1781, 0.0
      %1784 = vadd.xlane.f32.xlu0 %v1783
      %v1785 = vpop.xlane.xlu0 %1784
      %v1786 = vmul.f32 %v1785, %v624
      %v1787 = vadd.f32 %v1786, 1e-05
      %v1788 = vrsqrt.pop %v1787
      %v1789 = vmul.f32 %v1777, %v1788
      %v1790 = vmul.f32 %v1789, %v690
      %v1791 = vadd.f32 %v1790, %v699
      %1793 = vrot.lane.b32.xlu0 %v1791, 64
      %v1794 = vpop.permute.xlu0 %1793
      %1796 = vst.msk [vmem:[#allocation2] sm:$0x3] %vm620, %v1794
      %1798 = vrot.lane.b32.xlu0 %v1762, 96
      %v1799 = vpop.permute.xlu0 %1798
      %1801 = vst.msk [vmem:[#allocation3] sm:$0x3] %vm620, %v1799
      %s1802 = scalar_lea.vmem %s430, %s1624
      %1803 = vst.msk [vmem:[%s1802] sm:$0x3] %vm620, %v1794
      %s1804 = smul.u32 %s23, 4294967289
      %s1805 = sadd.s32 %s1804, 7
      %s1806 = smul.u32 %s1805, 2
      %s1807 = scalar_lea.vmem %s395, %s1806
      %v1808 = vld [vmem:[%s1807] sm:$0x3]
      %v1809 = vpack.c.bf16 %v1808, %v1808
      %v1810 = vld [vmem:[#allocation2] sm:$0x3]
      %v1811 = vld [vmem:[#allocation3] sm:$0x3]
      %v1812 = vpack.c.bf16 %v1810, %v1810
      %v1814 = vsel %vm493, %v1812, 0
      %1816 = vmatprep.subr.bf16.mxu0 0
      %1817 = vmatpush1.bf16.msra.mxu0 %v489
      %1818 = vmatprep.subr.bf16.mxu0 0
      %1819 = vmatpush1.bf16.msra.mxu0 %v490
      %1820 = vmatprep.subr.bf16.mxu0 0
      %1821 = vmatpush1.bf16.msra.mxu0 0
      %1822 = vmatprep.subr.bf16.mxu0 0
      %1823 = vmatpush1.bf16.msra.mxu0 0
      %1824 = vmatprep.subr.bf16.mxu0 0
      %1825 = vmatpush1.bf16.msra.mxu0 0
      %1826 = vmatprep.subr.bf16.mxu0 0
      %1827 = vmatpush1.bf16.msra.mxu0 0
      %1828 = vmatprep.subr.bf16.mxu0 0
      %1829 = vmatpush1.bf16.msra.mxu0 0
      %1830 = vmatprep.subr.bf16.mxu0 0
      %1831 = vmatpush1.bf16.msra.mxu0 0
      %1832 = vmatprep.subr.bf16.mxu0 0
      %1833 = vmatpush1.bf16.msra.mxu0 0
      %1834 = vmatprep.subr.bf16.mxu0 0
      %1835 = vmatpush1.bf16.msra.mxu0 0
      %1836 = vmatprep.subr.bf16.mxu0 0
      %1837 = vmatpush1.bf16.msra.mxu0 0
      %1838 = vmatprep.subr.bf16.mxu0 0
      %1839 = vmatpush1.bf16.msra.mxu0 0
      %1840 = vmatprep.subr.bf16.mxu0 0
      %1841 = vmatpush1.bf16.msra.mxu0 0
      %1842 = vmatprep.subr.bf16.mxu0 0
      %1843 = vmatpush1.bf16.msra.mxu0 0
      %1844 = vmatprep.subr.bf16.mxu0 0
      %1845 = vmatpush1.bf16.msra.mxu0 0
      %1846 = vmatprep.subr.bf16.mxu0 0
      %1847 = vmatpush1.bf16.msra.mxu0 0
      %1848 = vmatprep.mubr.bf16.mxu0 0
      %1849 = vmatmul.mubr.bf16.gmra.mrb[0].mxu0 %v1814
      %v1850 = vpop.f32.mrb[0].mxu0
      %v1851 = vadd.f32 0.0, %v1850
      %v1852 = vpop.f32.mrb[0].mxu0
      %v1853 = vpop.f32.mrb[0].mxu0
      %v1854 = vpop.f32.mrb[0].mxu0
      %1855 = vdwg.mxu0
      %v1857 = vsel %vm543, %v1809, 0
      %1859 = vmatprep.subr.bf16.mxu0 0
      %1860 = vmatpush1.bf16.msra.mxu0 %v541
      %1861 = vmatprep.subr.bf16.mxu0 0
      %1862 = vmatpush1.bf16.msra.mxu0 0
      %1863 = vmatprep.subr.bf16.mxu0 0
      %1864 = vmatpush1.bf16.msra.mxu0 0
      %1865 = vmatprep.subr.bf16.mxu0 0
      %1866 = vmatpush1.bf16.msra.mxu0 0
      %1867 = vmatprep.subr.bf16.mxu0 0
      %1868 = vmatpush1.bf16.msra.mxu0 0
      %1869 = vmatprep.subr.bf16.mxu0 0
      %1870 = vmatpush1.bf16.msra.mxu0 0
      %1871 = vmatprep.subr.bf16.mxu0 0
      %1872 = vmatpush1.bf16.msra.mxu0 0
      %1873 = vmatprep.subr.bf16.mxu0 0
      %1874 = vmatpush1.bf16.msra.mxu0 0
      %1875 = vmatprep.subr.bf16.mxu0 0
      %1876 = vmatpush1.bf16.msra.mxu0 0
      %1877 = vmatprep.subr.bf16.mxu0 0
      %1878 = vmatpush1.bf16.msra.mxu0 0
      %1879 = vmatprep.subr.bf16.mxu0 0
      %1880 = vmatpush1.bf16.msra.mxu0 0
      %1881 = vmatprep.subr.bf16.mxu0 0
      %1882 = vmatpush1.bf16.msra.mxu0 0
      %1883 = vmatprep.subr.bf16.mxu0 0
      %1884 = vmatpush1.bf16.msra.mxu0 0
      %1885 = vmatprep.subr.bf16.mxu0 0
      %1886 = vmatpush1.bf16.msra.mxu0 0
      %1887 = vmatprep.subr.bf16.mxu0 0
      %1888 = vmatpush1.bf16.msra.mxu0 0
      %1889 = vmatprep.subr.bf16.mxu0 0
      %1890 = vmatpush1.bf16.msra.mxu0 0
      %1891 = vmatprep.mubr.bf16.mxu0 0
      %1892 = vmatmul.mubr.bf16.gmra.mrb[0].mxu0 %v1857
      %v1893 = vpop.f32.mrb[0].mxu0
      %v1894 = vadd.f32 %v1851, %v1893
      %v1895 = vpop.f32.mrb[0].mxu0
      %v1896 = vpop.f32.mrb[0].mxu0
      %v1897 = vpop.f32.mrb[0].mxu0
      %1898 = vdwg.mxu0
      %v1899 = vadd.f32 %v1894, %v591
      %v1900 = vxor.u32 %v1899, 2147483648
      %v1901 = vmul.f32 %v1900, 1.442695
      %v1902 = vpow.pop %v1901
      %v1903 = vadd.f32 %v1902, 1.0
      %v1904 = vrcp.pop %v1903
      %v1905 = vmul.f32 1.0, %v1904
      %v1906 = vtanh.pop %v1899
      %1908 = vrot.lane.b32.xlu0 %v1811, 32
      %v1909 = vpop.permute.xlu0 %1908
      %v1911 = vmul.f32 %v1905, %v1909
      %1913 = vrot.lane.b32.xlu0 %v1906, 32
      %v1914 = vpop.permute.xlu0 %1913
      %v1916 = vmul.f32 %v1905, %v1914
      %1918 = vrot.lane.b32.xlu0 %v1916, 32
      %v1919 = vpop.permute.xlu0 %1918
      %v1921 = vadd.f32 %v1911, %v1919
      %1923 = vrot.lane.b32.xlu0 %v1921, 96
      %v1924 = vpop.permute.xlu0 %1923
      %v1926 = vsel %vm620, %v1924, 0.0
      %1927 = vadd.xlane.f32.xlu0 %v1926
      %v1928 = vpop.xlane.xlu0 %1927
      %v1929 = vmul.f32 %v1928, %v624
      %v1930 = vsub.f32 %v1921, %v1929
      %v1931 = vmul.f32 %v1930, %v1930
      %1933 = vrot.lane.b32.xlu0 %v1931, 96
      %v1934 = vpop.permute.xlu0 %1933
      %v1936 = vsel %vm620, %v1934, 0.0
      %1937 = vadd.xlane.f32.xlu0 %v1936
      %v1938 = vpop.xlane.xlu0 %1937
      %v1939 = vmul.f32 %v1938, %v624
      %v1940 = vadd.f32 %v1939, 1e-05
      %v1941 = vrsqrt.pop %v1940
      %v1942 = vmul.f32 %v1930, %v1941
      %v1943 = vmul.f32 %v1942, %v645
      %v1944 = vadd.f32 %v1943, %v654
      %v1945 = vtanh.pop %v1944
      %1947 = vrot.lane.b32.xlu0 %v1945, 32
      %v1948 = vpop.permute.xlu0 %1947
      %v1950 = vmul.f32 %v1905, %v1948
      %1952 = vrot.lane.b32.xlu0 %v1950, 64
      %v1953 = vpop.permute.xlu0 %1952
      %v1955 = vsel %vm620, %v1953, 0.0
      %1956 = vadd.xlane.f32.xlu0 %v1955
      %v1957 = vpop.xlane.xlu0 %1956
      %v1958 = vmul.f32 %v1957, %v624
      %v1959 = vsub.f32 %v1950, %v1958
      %v1960 = vmul.f32 %v1959, %v1959
      %1962 = vrot.lane.b32.xlu0 %v1960, 64
      %v1963 = vpop.permute.xlu0 %1962
      %v1965 = vsel %vm620, %v1963, 0.0
      %1966 = vadd.xlane.f32.xlu0 %v1965
      %v1967 = vpop.xlane.xlu0 %1966
      %v1968 = vmul.f32 %v1967, %v624
      %v1969 = vadd.f32 %v1968, 1e-05
      %v1970 = vrsqrt.pop %v1969
      %v1971 = vmul.f32 %v1959, %v1970
      %v1972 = vmul.f32 %v1971, %v690
      %v1973 = vadd.f32 %v1972, %v699
      %1975 = vrot.lane.b32.xlu0 %v1973, 64
      %v1976 = vpop.permute.xlu0 %1975
      %1978 = vst.msk [vmem:[#allocation2] sm:$0x3] %vm620, %v1976
      %1980 = vrot.lane.b32.xlu0 %v1944, 96
      %v1981 = vpop.permute.xlu0 %1980
      %1983 = vst.msk [vmem:[#allocation3] sm:$0x3] %vm620, %v1981
      %s1984 = scalar_lea.vmem %s430, %s1806
      %1985 = vst.msk [vmem:[%s1984] sm:$0x3] %vm620, %v1976
      // Predicated region
      $region45: #{bilstm_forward.1} parent=39 // pred_check
        %p1986 = pneg %p445
      $region46: #{bilstm_forward.1} parent=39 // pred_check_branch
        %1988 = sbr.rel (%p1986) target = $region48
      $region47: #{bilstm_forward.1} parent=39 // pred_region
        %v1989 = vld [vmem:[#allocation2] sm:$0x3]
        %1990 = vst.msk [vmem:[%s439] sm:$0x3] %vm620, %v1989
        %v1991 = vld [vmem:[#allocation3] sm:$0x3]
        %1992 = vst.msk [vmem:[%s443] sm:$0x3] %vm620, %v1991
      $region48: #{bilstm_forward.1} parent=39 // pred_fallthru
        _
      %s1993 = smul.u32 %s24, 2
      %s1994 = ssub.s32 0, %s1993
      %s1995 = smul.u32 %s23, %s1994
      %s1996 = sadd.s32 %s24, %s1995
      %s1997 = smul.u32 8, %s1996
      %p1998 = scmp.lt.s32.totalorder %s23, 1
      %s1999 = scalar_select %p1998, %s23, 1
      %p2000 = scmp.lt.s32.totalorder %s1997, 7
      %s2001 = scalar_select %p2000, %s1997, 7
      %s2002 = smul.addr %s1999, 8
      %s2003 = sadd.s32 %s2001, %s2002
      %s2004 = smul.addr %s2003, 2
      %s2005 = scalar_lea.vmem %s5, %s2004
      %p2006 = scmp.lt.s32.totalorder %s23, 1
      %s2007 = scalar_select %p2006, %s23, 1
      %s2008 = smul.addr %s2007, 2
      %s2009 = scalar_lea.vmem %s6, %s2008
      %p2010 = scmp.lt.s32.totalorder %s23, 1
      %s2011 = scalar_select %p2010, %s23, 1
      %s2012 = smul.addr %s2011, 2
      %s2013 = scalar_lea.vmem %s7, %s2012
      // Predicated region
      $region49: #{bilstm_forward.1} parent=39 // pred_check
        %p2014 = pneg %p197
      $region50: #{bilstm_forward.1} parent=39 // pred_check_branch
        %2016 = sbr.rel (%p2014) target = $region52
      $region51: #{bilstm_forward.1} parent=39 // pred_region
        %s2017 = smul.u32 %s24, 2
        %s2018 = ssub.s32 0, %s2017
        %s2019 = smul.u32 %s23, %s2018
        %s2020 = sadd.s32 %s24, %s2019
        %s2021 = smul.u32 8, %s2020
      $region52: #{bilstm_forward.1} parent=39 // pred_fallthru
        _
      // Predicated region
      $region53: #{bilstm_forward.1} parent=39 // pred_check
        %p2022 = pneg %p223
      $region54: #{bilstm_forward.1} parent=39 // pred_check_branch
        %2024 = sbr.rel (%p2022) target = $region56
      $region55: #{bilstm_forward.1} parent=39 // pred_region
        _
      $region56: #{bilstm_forward.1} parent=39 // pred_fallthru
        _
      // Predicated region
      $region57: #{bilstm_forward.1} parent=39 // pred_check
        %p2025 = pneg %p249
      $region58: #{bilstm_forward.1} parent=39 // pred_check_branch
        %2027 = sbr.rel (%p2025) target = $region60
      $region59: #{bilstm_forward.1} parent=39 // pred_region
        _
      $region60: #{bilstm_forward.1} parent=39 // pred_fallthru
        _
    $region40: #{bilstm_forward.1} parent=5 // pred_fallthru
      _
    %p2028 = scmp.le.s32.totalorder 2, %s14
    // Predicated region
    $region61: #{bilstm_forward.1} parent=5 // pred_check
      %p2029 = pneg %p2028
    $region62: #{bilstm_forward.1} parent=5 // pred_check_branch
      %2031 = sbr.rel (%p2029) target = $region64
    $region63: #{bilstm_forward.1} parent=5 // pred_region
      %s2032 = ssub.s32 %s14, 2
      // Predicated region
      $region65: #{bilstm_forward.1} parent=63 // pred_check
        %p2033 = pneg %p203
      $region66: #{bilstm_forward.1} parent=63 // pred_check_branch
        %2035 = sbr.rel (%p2033) target = $region68
      $region67: #{bilstm_forward.1} parent=63 // pred_region
        %s2036 = smul.u32 %s26, 2
        %s2037 = ssub.s32 0, %s2036
        %s2038 = smul.u32 %s25, %s2037
        %s2039 = sadd.s32 %s26, %s2038
        %s2040 = smul.u32 8, %s2039
        %p2041 = scmp.lt.s32.totalorder %s25, 1
        %s2042 = scalar_select %p2041, %s25, 1
        %p2043 = scmp.lt.s32.totalorder %s2040, 7
        %s2044 = scalar_select %p2043, %s2040, 7
        %s2045 = smul.addr %s2042, 8
        %s2046 = sadd.s32 %s2044, %s2045
        %s2047 = smul.addr %s2046, 2
        %s2048 = scalar_lea.vmem %s5, %s2047
      $region68: #{bilstm_forward.1} parent=63 // pred_fallthru
        _
      // Predicated region
      $region69: #{bilstm_forward.1} parent=63 // pred_check
        %p2049 = pneg %p229
      $region70: #{bilstm_forward.1} parent=63 // pred_check_branch
        %2051 = sbr.rel (%p2049) target = $region72
      $region71: #{bilstm_forward.1} parent=63 // pred_region
        %p2052 = scmp.lt.s32.totalorder %s25, 1
        %s2053 = scalar_select %p2052, %s25, 1
        %s2054 = smul.addr %s2053, 2
        %s2055 = scalar_lea.vmem %s6, %s2054
      $region72: #{bilstm_forward.1} parent=63 // pred_fallthru
        _
      // Predicated region
      $region73: #{bilstm_forward.1} parent=63 // pred_check
        %p2056 = pneg %p255
      $region74: #{bilstm_forward.1} parent=63 // pred_check_branch
        %2058 = sbr.rel (%p2056) target = $region76
      $region75: #{bilstm_forward.1} parent=63 // pred_region
        %p2059 = scmp.lt.s32.totalorder %s25, 1
        %s2060 = scalar_select %p2059, %s25, 1
        %s2061 = smul.addr %s2060, 2
        %s2062 = scalar_lea.vmem %s7, %s2061
      $region76: #{bilstm_forward.1} parent=63 // pred_fallthru
        _
    $region64: #{bilstm_forward.1} parent=5 // pred_fallthru
      _
  $region6: #{bilstm_forward.1} parent=0 // loop_footer
    %s18 = sadd.s32 1, %s14
  $region7: #{bilstm_forward.1} parent=0 // loop_footer_branch
    %13 = sbr.rel target = $region3
  $region8: #{bilstm_forward.1} parent=0 // loop_exit
    _

</llo_original>
